<compile_context>
chip_gen: v7x
topology: tpu7x:2x2x1
jax: 0.10.0
libtpu: 0.0.40
codegen_flags: <defaults>
</compile_context>

<pallas_src>
import functools

import jax
import jax.numpy as jnp
from jax import lax
from jax.experimental import pallas as pl
from jax.experimental.pallas import tpu as pltpu

K = 4                        # conv kernel size for all three convs
C1, C2, C3 = 32, 64, 96
C3P = 128                    # conv3 output channels padded to a full lane width

# WESAD_Opt['num_modalities'] stand-in (deterministic, no dataset access).
WESAD_NUM_MODALITIES = 4

ROWS_BUDGET = 8192           # max TB*Tw rows per grid step (VMEM control)


def _round_up(x, m):
    return (x + m - 1) // m * m


def _encoder_kernel(t_valid, avail_ref, x_ref, w1_ref, b1_ref, w2_ref, b2_ref,
                    w3_ref, b3_ref, out_ref, im2_ref, im3_ref):
    """One (modality, batch-tile) grid step of the fused Dynamic_Encoder.

    x_ref  : (1, TB, Lp)         single-modality signal tile (Lp = Tw + 3)
    w1_ref : (1, K, C1)  f32     conv1 weights, W1[j, c] = w1_torch[c, 0, j]
    w2_ref : (1, K*C1, C2) bf16  conv2 im2col weights, row = j*C1 + c_in
    w3_ref : (1, K*C2, C3P) bf16 conv3 im2col weights (out chans padded to 128)
    b*_ref : (1, 1, C*) f32      biases
    out_ref: (1, TB, C3P)        global-max-pooled features (lane-dense)
    im2_ref: (TB, Tw, K*C1) f32  VMEM scratch: conv2 im2col
    im3_ref: (TB, Tw, K*C2) f32  VMEM scratch: conv3 im2col
    """
    del avail_ref                                   # used by BlockSpec index maps
    x = x_ref[0]                                    # (TB, Lp) f32
    TB = x.shape[0]
    Tw = im2_ref.shape[1]                           # padded working time length

    w1 = w1_ref[0]                                  # (K, C1) f32
    b1 = b1_ref[0]                                  # (1, C1) f32
    w2 = w2_ref[0]                                  # (K*C1, C2) bf16
    b2 = b2_ref[0]                                  # (1, C2) f32
    w3 = w3_ref[0]                                  # (K*C2, C3P) bf16
    b3 = b3_ref[0]                                  # (1, C3P) f32

    # ---- Conv1d(1 -> 32, k=4) + ReLU on the VPU: per-tap fused broadcast FMA
    # (no materialized (TB, L, 32) broadcast).
    xt = x[:, :, None]                              # (TB, Lp, 1): time on sublanes
    acc1 = xt[:, 0:Tw, :] * w1[0:1, :][None, :, :]
    for j in range(1, K):
        acc1 = acc1 + xt[:, j:j + Tw, :] * w1[j:j + 1, :][None, :, :]
    h1 = jnp.maximum(acc1 + b1[None, :, :], 0.0)    # (TB, Tw, C1) f32
    # Dropout(0.1) is identity at inference time.

    # ---- Conv1d(32 -> 64, k=4) + ReLU: one 128-deep MXU matmul via im2col.
    im2_ref[:, Tw - 8:Tw, :] = jnp.zeros((TB, 8, K * C1), jnp.float32)
    im2_ref[:, :, 0:C1] = h1
    for j in range(1, K):
        im2_ref[:, 0:Tw - j, j * C1:(j + 1) * C1] = h1[:, j:Tw, :]
    lhs2 = im2_ref[...].reshape(TB * Tw, K * C1).astype(jnp.bfloat16)
    acc2 = jnp.dot(lhs2, w2, preferred_element_type=jnp.float32)    # (TB*Tw, C2)
    h2 = jnp.maximum(acc2 + b2, 0.0).reshape(TB, Tw, C2)            # f32

    # ---- Conv1d(64 -> 96->128pad, k=4) + ReLU: one 256-deep MXU matmul.
    im3_ref[:, Tw - 8:Tw, :] = jnp.zeros((TB, 8, K * C2), jnp.float32)
    im3_ref[:, :, 0:C2] = h2
    for j in range(1, K):
        im3_ref[:, 0:Tw - j, j * C2:(j + 1) * C2] = h2[:, j:Tw, :]
    lhs3 = im3_ref[...].reshape(TB * Tw, K * C2).astype(jnp.bfloat16)
    acc3 = jnp.dot(lhs3, w3, preferred_element_type=jnp.float32)    # (TB*Tw, C3P)
    h3 = jnp.maximum(acc3 + b3, 0.0).reshape(TB, Tw, C3P)           # f32

    # ---- AdaptiveMaxPool1d(1): mask conv-invalid / padded time rows, reduce.
    # (all valid values are relu outputs >= 0, so masking with 0 is exact)
    t_idx = lax.broadcasted_iota(jnp.int32, (1, Tw, C3P), 1)
    h3 = jnp.where(t_idx < t_valid, h3, 0.0)
    out_ref[0] = jnp.max(h3, axis=1)                # (TB, C3P) lane-dense store


def dynamic_encoder_forward(x, avail_idx, stacked_params, *, tb=None):
    """x: (B, M, L) f32, avail_idx: (Ma,) int32 -> (Ma, B, C3) f32 features."""
    w1s, b1s, w2s, b2s, w3s, b3s = stacked_params
    B, _, L = x.shape
    Ma = int(avail_idx.shape[0])
    assert L >= 3 * (K - 1) + 1, "signal too short for three k=4 valid convs"

    T1 = L - (K - 1)
    T3 = L - 3 * (K - 1)                 # valid conv3 / pooled length
    Tw = _round_up(T1, 8)                # padded working time length
    Lp = Tw + (K - 1)                    # padded input length fed to the kernel

    if tb is None:
        # Batch tile: multiple of 8 sublanes, capped by a row budget so im2col
        # scratch + transients stay well inside VMEM (v7x: 64 MiB physical).
        cap = max(8, min(128, (ROWS_BUDGET // max(Tw, 1)) // 8 * 8))
        tb = min(_round_up(B, 8), cap)
    B_pad = _round_up(B, tb)
    nb = B_pad // tb
    # Megacore balance: avoid an odd total grid with a single batch tile.
    if nb == 1 and Ma > 1 and Ma % 2 == 1 and tb >= 16 and tb % 16 == 0:
        tb //= 2
        B_pad = _round_up(B, tb)
        nb = B_pad // tb

    # (B, M, L) -> (M, B_pad, Lp): modality-major so each grid step DMAs one
    # contiguous signal tile selected by the prefetched modality index.
    x_t = jnp.transpose(x, (1, 0, 2))
    x_t = jnp.pad(x_t, ((0, 0), (0, B_pad - B), (0, Lp - L)))

    flops = 2 * Ma * B_pad * Tw * (K * C1 + K * C1 * C2 + K * C2 * C3P)
    bytes_accessed = (4 * Ma * B_pad * (Lp + C3P)
                      + Ma * 2 * (K * C1 * C2 + K * C2 * C3P)
                      + 4 * Ma * (K * C1 + C1 + C2 + C3P))

    kernel = functools.partial(_encoder_kernel, T3)

    out = pl.pallas_call(
        kernel,
        out_shape=jax.ShapeDtypeStruct((Ma, B_pad, C3P), jnp.float32),
        grid_spec=pltpu.PrefetchScalarGridSpec(
            num_scalar_prefetch=1,
            grid=(Ma, nb),
            in_specs=[
                # signal: modality selected via the prefetched index table
                pl.BlockSpec((1, tb, Lp), lambda m, b, av: (av[m], b, 0)),
                # stacked per-modality weights / biases (full, selected by m)
                pl.BlockSpec((1, K, C1), lambda m, b, av: (m, 0, 0)),
                pl.BlockSpec((1, 1, C1), lambda m, b, av: (m, 0, 0)),
                pl.BlockSpec((1, K * C1, C2), lambda m, b, av: (m, 0, 0)),
                pl.BlockSpec((1, 1, C2), lambda m, b, av: (m, 0, 0)),
                pl.BlockSpec((1, K * C2, C3P), lambda m, b, av: (m, 0, 0)),
                pl.BlockSpec((1, 1, C3P), lambda m, b, av: (m, 0, 0)),
            ],
            out_specs=pl.BlockSpec((1, tb, C3P), lambda m, b, av: (m, b, 0)),
            scratch_shapes=[
                pltpu.VMEM((tb, Tw, K * C1), jnp.float32),   # conv2 im2col
                pltpu.VMEM((tb, Tw, K * C2), jnp.float32),   # conv3 im2col
            ],
        ),
        compiler_params=pltpu.CompilerParams(
            dimension_semantics=("parallel", "parallel"),
            vmem_limit_bytes=48 * 1024 * 1024,
        ),
        cost_estimate=pl.CostEstimate(flops=flops, transcendentals=0,
                                      bytes_accessed=bytes_accessed),
    )(avail_idx, x_t, w1s, b1s, w2s, b2s, w3s, b3s)

    # strip batch padding and the 96->128 channel padding
    return out[:, :B, :C3]


def init_single_modal_params(key):
    """Deterministic synthetic parameters in PyTorch Conv1d shapes, plus the
    folded (im2col) kernel layout used by the Pallas kernel."""
    k1, k2, k3, k4, k5, k6 = jax.random.split(key, 6)
    # PyTorch Conv1d weight shape: (out_ch, in_ch, k)
    w1 = jax.random.uniform(k1, (C1, 1, K), jnp.float32, -0.5, 0.5)
    b1 = jax.random.uniform(k2, (C1,), jnp.float32, -0.5, 0.5)
    w2 = jax.random.uniform(k3, (C2, C1, K), jnp.float32, -0.09, 0.09)
    b2 = jax.random.uniform(k4, (C2,), jnp.float32, -0.09, 0.09)
    w3 = jax.random.uniform(k5, (C3, C2, K), jnp.float32, -0.06, 0.06)
    b3 = jax.random.uniform(k6, (C3,), jnp.float32, -0.06, 0.06)
    torch_params = (w1, b1, w2, b2, w3, b3)

    # conv1: W1[j, c] = w1_torch[c, 0, j]  (f32, used on the VPU)
    w1k = jnp.transpose(w1[:, 0, :], (1, 0))                           # (K, C1)
    # conv2/conv3: folded im2col weights, row index = j*Cin + c_in (bf16 for MXU)
    w2k = jnp.transpose(w2, (2, 1, 0)).reshape(K * C1, C2).astype(jnp.bfloat16)
    w3k = jnp.transpose(w3, (2, 1, 0)).reshape(K * C2, C3)
    w3k = jnp.pad(w3k, ((0, 0), (0, C3P - C3))).astype(jnp.bfloat16)   # (K*C2, 128)
    kernel_params = (w1k, b1.reshape(1, C1),
                     w2k, b2.reshape(1, C2),
                     w3k, jnp.pad(b3, (0, C3P - C3)).reshape(1, C3P))
    return torch_params, kernel_params


class DynamicEncoderPallas:
    """Pallas equivalent of Dynamic_Encoder: one fused kernel over all
    available modalities (returns a list of per-modality (B, 96) features)."""

    def __init__(self, modality_indices, key):
        assert len(modality_indices) == WESAD_NUM_MODALITIES
        self.modality_indices = list(modality_indices)
        self.avail = [i for i, a in enumerate(modality_indices) if a]
        self.torch_params = [None] * len(modality_indices)
        keys = jax.random.split(key, len(modality_indices))
        per_modality = []
        for idx in self.avail:
            tp, kp = init_single_modal_params(keys[idx])
            self.torch_params[idx] = tp
            per_modality.append(kp)
        if per_modality:
            # Stack per-modality parameters along a leading modality axis.
            self.stacked_params = tuple(
                jnp.stack([p[i] for p in per_modality]) for i in range(6))
            self.avail_idx = jnp.asarray(self.avail, dtype=jnp.int32)
        else:
            self.stacked_params = None
            self.avail_idx = None

    def __call__(self, x):  # x: (B, M, L)
        if not self.avail:
            return []
        feats = dynamic_encoder_forward(x, self.avail_idx, self.stacked_params)
        return [feats[i] for i in range(len(self.avail))]


# ---------------- pure-JAX reference (correctness check only) ----------------
def _ref_single_modal(x_1d, torch_params):
    w1, b1, w2, b2, w3, b3 = torch_params
    dn = ('NCH', 'OIH', 'NCH')
    h = x_1d[:, None, :]                                              # (B, 1, L)
    h = lax.conv_general_dilated(h, w1, (1,), 'VALID', dimension_numbers=dn)
    h = jnp.maximum(h + b1[None, :, None], 0.0)
    h = lax.conv_general_dilated(h, w2, (1,), 'VALID', dimension_numbers=dn)
    h = jnp.maximum(h + b2[None, :, None], 0.0)
    h = lax.conv_general_dilated(h, w3, (1,), 'VALID', dimension_numbers=dn)
    h = jnp.maximum(h + b3[None, :, None], 0.0)
    return jnp.max(h, axis=2)                                         # (B, C3)


if __name__ == "__main__":
    key = jax.random.PRNGKey(0)
    k_x, k_p = jax.random.split(key)

    B, M, L = 2, WESAD_NUM_MODALITIES, 32
    modality_indices = [True, False, True, True]   # 3 of 4 modalities available

    x = jax.random.normal(k_x, (B, M, L), dtype=jnp.float32)

    encoder = DynamicEncoderPallas(modality_indices, k_p)
    outputs = encoder(x)
    outputs = [jax.block_until_ready(o) for o in outputs]

    # sanity: shapes + match pure-JAX f32 reference (kernel matmuls run in bf16)
    assert len(outputs) == sum(modality_indices)
    o_i = 0
    for idx, avail in enumerate(modality_indices):
        if not avail:
            continue
        out = outputs[o_i]
        o_i += 1
        assert out.shape == (B, C3), out.shape
        ref = _ref_single_modal(x[:, idx, :], encoder.torch_params[idx])
        err = float(jnp.max(jnp.abs(out - ref)))
        assert jnp.allclose(out, ref, atol=2e-2, rtol=2e-2), (
            f"mismatch on modality {idx}: max abs err {err}")
        o_i = o_i  # keep ordering explicit

    print("KERNEL_OK")
</pallas_src>

<mosaic_0001>
module attributes {stable_mosaic.version = 11 : i64} {
  func.func @_encoder_kernel(%arg0: i32, %arg1: i32, %arg2: memref<3xi32, #tpu.memory_space<smem>>, %arg3: memref<1x8x35xf32, #tpu.memory_space<vmem>>, %arg4: memref<1x4x32xf32, #tpu.memory_space<vmem>>, %arg5: memref<1x1x32xf32, #tpu.memory_space<vmem>>, %arg6: memref<1x128x64xbf16, #tpu.memory_space<vmem>>, %arg7: memref<1x1x64xf32, #tpu.memory_space<vmem>>, %arg8: memref<1x256x128xbf16, #tpu.memory_space<vmem>>, %arg9: memref<1x1x128xf32, #tpu.memory_space<vmem>>, %arg10: memref<1x8x128xf32, #tpu.memory_space<vmem>>, %arg11: memref<8x32x128xf32, #tpu.memory_space<vmem>>, %arg12: memref<8x32x256xf32, #tpu.memory_space<vmem>>) attributes {dimension_semantics = [#tpu.dimension_semantics<parallel>, #tpu.dimension_semantics<parallel>], iteration_bounds = array<i64: 3, 1>, scalar_prefetch = 1 : i64, scratch_operands = 2 : i64, tpu.core_type = #tpu.core_type<tc>, window_params = [{transform_indices = @transform_0, window_bounds = array<i64: 1, 8, 35>}, {transform_indices = @transform_1, window_bounds = array<i64: 1, 4, 32>}, {transform_indices = @transform_2, window_bounds = array<i64: 1, 1, 32>}, {transform_indices = @transform_3, window_bounds = array<i64: 1, 128, 64>}, {transform_indices = @transform_4, window_bounds = array<i64: 1, 1, 64>}, {transform_indices = @transform_5, window_bounds = array<i64: 1, 256, 128>}, {transform_indices = @transform_6, window_bounds = array<i64: 1, 1, 128>}, {transform_indices = @transform_7, window_bounds = array<i64: 1, 8, 128>}]} {
    %c0 = arith.constant 0 : index
    %c0_0 = arith.constant 0 : index
    %c0_1 = arith.constant 0 : index
    %0 = vector.load %arg3[%c0, %c0_0, %c0_1] : memref<1x8x35xf32, #tpu.memory_space<vmem>>, vector<1x8x35xf32>
    %1 = vector.shape_cast %0 : vector<1x8x35xf32> to vector<8x35xf32>
    %c0_2 = arith.constant 0 : index
    %c0_3 = arith.constant 0 : index
    %c0_4 = arith.constant 0 : index
    %2 = vector.load %arg4[%c0_2, %c0_3, %c0_4] : memref<1x4x32xf32, #tpu.memory_space<vmem>>, vector<1x4x32xf32>
    %3 = vector.shape_cast %2 : vector<1x4x32xf32> to vector<4x32xf32>
    %c0_5 = arith.constant 0 : index
    %c0_6 = arith.constant 0 : index
    %c0_7 = arith.constant 0 : index
    %4 = vector.load %arg5[%c0_5, %c0_6, %c0_7] : memref<1x1x32xf32, #tpu.memory_space<vmem>>, vector<1x1x32xf32>
    %5 = vector.shape_cast %4 : vector<1x1x32xf32> to vector<1x32xf32>
    %c0_8 = arith.constant 0 : index
    %c0_9 = arith.constant 0 : index
    %c0_10 = arith.constant 0 : index
    %6 = vector.load %arg6[%c0_8, %c0_9, %c0_10] : memref<1x128x64xbf16, #tpu.memory_space<vmem>>, vector<1x128x64xbf16>
    %7 = vector.shape_cast %6 : vector<1x128x64xbf16> to vector<128x64xbf16>
    %c0_11 = arith.constant 0 : index
    %c0_12 = arith.constant 0 : index
    %c0_13 = arith.constant 0 : index
    %8 = vector.load %arg7[%c0_11, %c0_12, %c0_13] : memref<1x1x64xf32, #tpu.memory_space<vmem>>, vector<1x1x64xf32>
    %9 = vector.shape_cast %8 : vector<1x1x64xf32> to vector<1x64xf32>
    %c0_14 = arith.constant 0 : index
    %c0_15 = arith.constant 0 : index
    %c0_16 = arith.constant 0 : index
    %10 = vector.load %arg8[%c0_14, %c0_15, %c0_16] : memref<1x256x128xbf16, #tpu.memory_space<vmem>>, vector<1x256x128xbf16>
    %11 = vector.shape_cast %10 : vector<1x256x128xbf16> to vector<256x128xbf16>
    %c0_17 = arith.constant 0 : index
    %c0_18 = arith.constant 0 : index
    %c0_19 = arith.constant 0 : index
    %12 = vector.load %arg9[%c0_17, %c0_18, %c0_19] : memref<1x1x128xf32, #tpu.memory_space<vmem>>, vector<1x1x128xf32>
    %13 = vector.shape_cast %12 : vector<1x1x128xf32> to vector<1x128xf32>
    %14 = vector.shape_cast %1 : vector<8x35xf32> to vector<8x35x1xf32>
    %15 = vector.extract_strided_slice %14 {offsets = [0, 0, 0], sizes = [8, 32, 1], strides = [1, 1, 1]} : vector<8x35x1xf32> to vector<8x32x1xf32>
    %16 = vector.extract_strided_slice %3 {offsets = [0, 0], sizes = [1, 32], strides = [1, 1]} : vector<4x32xf32> to vector<1x32xf32>
    %17 = vector.shape_cast %16 : vector<1x32xf32> to vector<1x1x32xf32>
    %18 = vector.broadcast %15 : vector<8x32x1xf32> to vector<8x32x32xf32>
    %19 = vector.broadcast %17 : vector<1x1x32xf32> to vector<8x32x32xf32>
    %20 = arith.mulf %18, %19 : vector<8x32x32xf32>
    %21 = vector.extract_strided_slice %14 {offsets = [0, 1, 0], sizes = [8, 32, 1], strides = [1, 1, 1]} : vector<8x35x1xf32> to vector<8x32x1xf32>
    %22 = vector.extract_strided_slice %3 {offsets = [1, 0], sizes = [1, 32], strides = [1, 1]} : vector<4x32xf32> to vector<1x32xf32>
    %23 = vector.shape_cast %22 : vector<1x32xf32> to vector<1x1x32xf32>
    %24 = vector.broadcast %21 : vector<8x32x1xf32> to vector<8x32x32xf32>
    %25 = vector.broadcast %23 : vector<1x1x32xf32> to vector<8x32x32xf32>
    %26 = arith.mulf %24, %25 : vector<8x32x32xf32>
    %27 = arith.addf %20, %26 : vector<8x32x32xf32>
    %28 = vector.extract_strided_slice %14 {offsets = [0, 2, 0], sizes = [8, 32, 1], strides = [1, 1, 1]} : vector<8x35x1xf32> to vector<8x32x1xf32>
    %29 = vector.extract_strided_slice %3 {offsets = [2, 0], sizes = [1, 32], strides = [1, 1]} : vector<4x32xf32> to vector<1x32xf32>
    %30 = vector.shape_cast %29 : vector<1x32xf32> to vector<1x1x32xf32>
    %31 = vector.broadcast %28 : vector<8x32x1xf32> to vector<8x32x32xf32>
    %32 = vector.broadcast %30 : vector<1x1x32xf32> to vector<8x32x32xf32>
    %33 = arith.mulf %31, %32 : vector<8x32x32xf32>
    %34 = arith.addf %27, %33 : vector<8x32x32xf32>
    %35 = vector.extract_strided_slice %14 {offsets = [0, 3, 0], sizes = [8, 32, 1], strides = [1, 1, 1]} : vector<8x35x1xf32> to vector<8x32x1xf32>
    %36 = vector.extract_strided_slice %3 {offsets = [3, 0], sizes = [1, 32], strides = [1, 1]} : vector<4x32xf32> to vector<1x32xf32>
    %37 = vector.shape_cast %36 : vector<1x32xf32> to vector<1x1x32xf32>
    %38 = vector.broadcast %35 : vector<8x32x1xf32> to vector<8x32x32xf32>
    %39 = vector.broadcast %37 : vector<1x1x32xf32> to vector<8x32x32xf32>
    %40 = arith.mulf %38, %39 : vector<8x32x32xf32>
    %41 = arith.addf %34, %40 : vector<8x32x32xf32>
    %42 = vector.shape_cast %5 : vector<1x32xf32> to vector<1x1x32xf32>
    %43 = vector.broadcast %42 : vector<1x1x32xf32> to vector<8x32x32xf32>
    %44 = arith.addf %41, %43 : vector<8x32x32xf32>
    %cst = arith.constant 0.000000e+00 : f32
    %45 = vector.broadcast %cst : f32 to vector<8x32x32xf32>
    %46 = arith.maximumf %44, %45 : vector<8x32x32xf32>
    %cst_20 = arith.constant 0.000000e+00 : f32
    %47 = vector.broadcast %cst_20 : f32 to vector<8x8x128xf32>
    %c0_21 = arith.constant 0 : index
    %c24 = arith.constant 24 : index
    %c0_22 = arith.constant 0 : index
    %48 = vector.load %arg11[%c0_21, %c24, %c0_22] : memref<8x32x128xf32, #tpu.memory_space<vmem>>, vector<8x8x128xf32>
    tpu.vector_store %arg11[%c0_21, %c24, %c0_22], %47 {strides = array<i32>} : memref<8x32x128xf32, #tpu.memory_space<vmem>>, vector<8x8x128xf32>,
    %c0_23 = arith.constant 0 : index
    %c0_24 = arith.constant 0 : index
    %c0_25 = arith.constant 0 : index
    %49 = vector.load %arg11[%c0_23, %c0_24, %c0_25] : memref<8x32x128xf32, #tpu.memory_space<vmem>>, vector<8x32x32xf32>
    tpu.vector_store %arg11[%c0_23, %c0_24, %c0_25], %46 {strides = array<i32>} : memref<8x32x128xf32, #tpu.memory_space<vmem>>, vector<8x32x32xf32>,
    %50 = vector.extract_strided_slice %46 {offsets = [0, 1, 0], sizes = [8, 31, 32], strides = [1, 1, 1]} : vector<8x32x32xf32> to vector<8x31x32xf32>
    %c0_26 = arith.constant 0 : index
    %c0_27 = arith.constant 0 : index
    %c32 = arith.constant 32 : index
    %51 = vector.load %arg11[%c0_26, %c0_27, %c32] : memref<8x32x128xf32, #tpu.memory_space<vmem>>, vector<8x31x32xf32>
    tpu.vector_store %arg11[%c0_26, %c0_27, %c32], %50 {strides = array<i32>} : memref<8x32x128xf32, #tpu.memory_space<vmem>>, vector<8x31x32xf32>,
    %52 = vector.extract_strided_slice %46 {offsets = [0, 2, 0], sizes = [8, 30, 32], strides = [1, 1, 1]} : vector<8x32x32xf32> to vector<8x30x32xf32>
    %c0_28 = arith.constant 0 : index
    %c0_29 = arith.constant 0 : index
    %c64 = arith.constant 64 : index
    %53 = vector.load %arg11[%c0_28, %c0_29, %c64] : memref<8x32x128xf32, #tpu.memory_space<vmem>>, vector<8x30x32xf32>
    tpu.vector_store %arg11[%c0_28, %c0_29, %c64], %52 {strides = array<i32>} : memref<8x32x128xf32, #tpu.memory_space<vmem>>, vector<8x30x32xf32>,
    %54 = vector.extract_strided_slice %46 {offsets = [0, 3, 0], sizes = [8, 29, 32], strides = [1, 1, 1]} : vector<8x32x32xf32> to vector<8x29x32xf32>
    %c0_30 = arith.constant 0 : index
    %c0_31 = arith.constant 0 : index
    %c96 = arith.constant 96 : index
    %55 = vector.load %arg11[%c0_30, %c0_31, %c96] : memref<8x32x128xf32, #tpu.memory_space<vmem>>, vector<8x29x32xf32>
    tpu.vector_store %arg11[%c0_30, %c0_31, %c96], %54 {strides = array<i32>} : memref<8x32x128xf32, #tpu.memory_space<vmem>>, vector<8x29x32xf32>,
    %c0_32 = arith.constant 0 : index
    %c0_33 = arith.constant 0 : index
    %c0_34 = arith.constant 0 : index
    %56 = vector.load %arg11[%c0_32, %c0_33, %c0_34] : memref<8x32x128xf32, #tpu.memory_space<vmem>>, vector<8x32x128xf32>
    %57 = vector.shape_cast %56 : vector<8x32x128xf32> to vector<256x128xf32>
    %58 = arith.truncf %57 : vector<256x128xf32> to vector<256x128xbf16>
    %cst_35 = arith.constant dense<0.000000e+00> : vector<256x64xf32>
    %59 = tpu.matmul %58, %7, %cst_35 {dimension_numbers = #tpu.dot_dimension_numbers<[1], [0], [0], [1], [0, 0, 1, 1], [], []>} : vector<256x128xbf16>, vector<128x64xbf16>, vector<256x64xf32> -> vector<256x64xf32>
    %60 = vector.broadcast %9 : vector<1x64xf32> to vector<256x64xf32>
    %61 = arith.addf %59, %60 : vector<256x64xf32>
    %cst_36 = arith.constant 0.000000e+00 : f32
    %62 = vector.broadcast %cst_36 : f32 to vector<256x64xf32>
    %63 = arith.maximumf %61, %62 : vector<256x64xf32>
    %64 = vector.shape_cast %63 : vector<256x64xf32> to vector<8x32x64xf32>
    %cst_37 = arith.constant 0.000000e+00 : f32
    %65 = vector.broadcast %cst_37 : f32 to vector<8x8x256xf32>
    %c0_38 = arith.constant 0 : index
    %c24_39 = arith.constant 24 : index
    %c0_40 = arith.constant 0 : index
    %66 = vector.load %arg12[%c0_38, %c24_39, %c0_40] : memref<8x32x256xf32, #tpu.memory_space<vmem>>, vector<8x8x256xf32>
    tpu.vector_store %arg12[%c0_38, %c24_39, %c0_40], %65 {strides = array<i32>} : memref<8x32x256xf32, #tpu.memory_space<vmem>>, vector<8x8x256xf32>,
    %c0_41 = arith.constant 0 : index
    %c0_42 = arith.constant 0 : index
    %c0_43 = arith.constant 0 : index
    %67 = vector.load %arg12[%c0_41, %c0_42, %c0_43] : memref<8x32x256xf32, #tpu.memory_space<vmem>>, vector<8x32x64xf32>
    tpu.vector_store %arg12[%c0_41, %c0_42, %c0_43], %64 {strides = array<i32>} : memref<8x32x256xf32, #tpu.memory_space<vmem>>, vector<8x32x64xf32>,
    %68 = vector.extract_strided_slice %64 {offsets = [0, 1, 0], sizes = [8, 31, 64], strides = [1, 1, 1]} : vector<8x32x64xf32> to vector<8x31x64xf32>
    %c0_44 = arith.constant 0 : index
    %c0_45 = arith.constant 0 : index
    %c64_46 = arith.constant 64 : index
    %69 = vector.load %arg12[%c0_44, %c0_45, %c64_46] : memref<8x32x256xf32, #tpu.memory_space<vmem>>, vector<8x31x64xf32>
    tpu.vector_store %arg12[%c0_44, %c0_45, %c64_46], %68 {strides = array<i32>} : memref<8x32x256xf32, #tpu.memory_space<vmem>>, vector<8x31x64xf32>,
    %70 = vector.extract_strided_slice %64 {offsets = [0, 2, 0], sizes = [8, 30, 64], strides = [1, 1, 1]} : vector<8x32x64xf32> to vector<8x30x64xf32>
    %c0_47 = arith.constant 0 : index
    %c0_48 = arith.constant 0 : index
    %c128 = arith.constant 128 : index
    %71 = vector.load %arg12[%c0_47, %c0_48, %c128] : memref<8x32x256xf32, #tpu.memory_space<vmem>>, vector<8x30x64xf32>
    tpu.vector_store %arg12[%c0_47, %c0_48, %c128], %70 {strides = array<i32>} : memref<8x32x256xf32, #tpu.memory_space<vmem>>, vector<8x30x64xf32>,
    %72 = vector.extract_strided_slice %64 {offsets = [0, 3, 0], sizes = [8, 29, 64], strides = [1, 1, 1]} : vector<8x32x64xf32> to vector<8x29x64xf32>
    %c0_49 = arith.constant 0 : index
    %c0_50 = arith.constant 0 : index
    %c192 = arith.constant 192 : index
    %73 = vector.load %arg12[%c0_49, %c0_50, %c192] : memref<8x32x256xf32, #tpu.memory_space<vmem>>, vector<8x29x64xf32>
    tpu.vector_store %arg12[%c0_49, %c0_50, %c192], %72 {strides = array<i32>} : memref<8x32x256xf32, #tpu.memory_space<vmem>>, vector<8x29x64xf32>,
    %c0_51 = arith.constant 0 : index
    %c0_52 = arith.constant 0 : index
    %c0_53 = arith.constant 0 : index
    %74 = vector.load %arg12[%c0_51, %c0_52, %c0_53] : memref<8x32x256xf32, #tpu.memory_space<vmem>>, vector<8x32x256xf32>
    %75 = vector.shape_cast %74 : vector<8x32x256xf32> to vector<256x256xf32>
    %76 = arith.truncf %75 : vector<256x256xf32> to vector<256x256xbf16>
    %cst_54 = arith.constant dense<0.000000e+00> : vector<256x128xf32>
    %77 = tpu.matmul %76, %11, %cst_54 {dimension_numbers = #tpu.dot_dimension_numbers<[1], [0], [0], [1], [0, 0, 1, 1], [], []>} : vector<256x256xbf16>, vector<256x128xbf16>, vector<256x128xf32> -> vector<256x128xf32>
    %78 = vector.broadcast %13 : vector<1x128xf32> to vector<256x128xf32>
    %79 = arith.addf %77, %78 : vector<256x128xf32>
    %cst_55 = arith.constant 0.000000e+00 : f32
    %80 = vector.broadcast %cst_55 : f32 to vector<256x128xf32>
    %81 = arith.maximumf %79, %80 : vector<256x128xf32>
    %82 = vector.shape_cast %81 : vector<256x128xf32> to vector<8x32x128xf32>
    %83 = tpu.iota {dimensions = array<i32: 1>} : vector<1x32x128xi32>
    %c23_i32 = arith.constant 23 : i32
    %84 = vector.broadcast %c23_i32 : i32 to vector<1x32x128xi32>
    %85 = arith.cmpi slt, %83, %84 : vector<1x32x128xi32>
    %cst_56 = arith.constant 0.000000e+00 : f32
    %86 = vector.shape_cast %85 : vector<1x32x128xi1> to vector<1x32x128xi1>
    %87 = vector.broadcast %86 : vector<1x32x128xi1> to vector<8x32x128xi1>
    %88 = vector.broadcast %cst_56 : f32 to vector<8x32x128xf32>
    %89 = arith.select %87, %82, %88 : vector<8x32x128xi1>, vector<8x32x128xf32>
    %cst_57 = arith.constant dense<0xFF800000> : vector<8x128xf32>
    %90 = vector.multi_reduction <maximumf>, %89, %cst_57 [1] : vector<8x32x128xf32> to vector<8x128xf32>
    %c0_58 = arith.constant 0 : index
    %c0_59 = arith.constant 0 : index
    %c0_60 = arith.constant 0 : index
    %91 = vector.load %arg10[%c0_58, %c0_59, %c0_60] : memref<1x8x128xf32, #tpu.memory_space<vmem>>, vector<1x8x128xf32>
    %92 = vector.shape_cast %91 : vector<1x8x128xf32> to vector<8x128xf32>
    %93 = vector.shape_cast %90 : vector<8x128xf32> to vector<1x8x128xf32>
    tpu.vector_store %arg10[%c0_58, %c0_59, %c0_60], %93 {strides = array<i32>} : memref<1x8x128xf32, #tpu.memory_space<vmem>>, vector<1x8x128xf32>,
    return
  }
  func.func @transform_0(%arg0: i32, %arg1: i32, %arg2: memref<3xi32, #tpu.memory_space<smem>>) -> (i32, i32, i32) {
    %0 = arith.index_cast %arg0 : i32 to index
    %1 = memref.load %arg2[%0] : memref<3xi32, #tpu.memory_space<smem>>
    %c0_i32 = arith.constant 0 : i32
    %c0_i32_0 = arith.constant 0 : i32
    return %1, %arg1, %c0_i32 : i32, i32, i32
  }
  func.func @transform_1(%arg0: i32, %arg1: i32, %arg2: memref<3xi32, #tpu.memory_space<smem>>) -> (i32, i32, i32) {
    %c0_i32 = arith.constant 0 : i32
    %c0_i32_0 = arith.constant 0 : i32
    %c0_i32_1 = arith.constant 0 : i32
    return %arg0, %c0_i32, %c0_i32_0 : i32, i32, i32
  }
  func.func @transform_2(%arg0: i32, %arg1: i32, %arg2: memref<3xi32, #tpu.memory_space<smem>>) -> (i32, i32, i32) {
    %c0_i32 = arith.constant 0 : i32
    %c0_i32_0 = arith.constant 0 : i32
    %c0_i32_1 = arith.constant 0 : i32
    return %arg0, %c0_i32, %c0_i32_0 : i32, i32, i32
  }
  func.func @transform_3(%arg0: i32, %arg1: i32, %arg2: memref<3xi32, #tpu.memory_space<smem>>) -> (i32, i32, i32) {
    %c0_i32 = arith.constant 0 : i32
    %c0_i32_0 = arith.constant 0 : i32
    %c0_i32_1 = arith.constant 0 : i32
    return %arg0, %c0_i32, %c0_i32_0 : i32, i32, i32
  }
  func.func @transform_4(%arg0: i32, %arg1: i32, %arg2: memref<3xi32, #tpu.memory_space<smem>>) -> (i32, i32, i32) {
    %c0_i32 = arith.constant 0 : i32
    %c0_i32_0 = arith.constant 0 : i32
    %c0_i32_1 = arith.constant 0 : i32
    return %arg0, %c0_i32, %c0_i32_0 : i32, i32, i32
  }
  func.func @transform_5(%arg0: i32, %arg1: i32, %arg2: memref<3xi32, #tpu.memory_space<smem>>) -> (i32, i32, i32) {
    %c0_i32 = arith.constant 0 : i32
    %c0_i32_0 = arith.constant 0 : i32
    %c0_i32_1 = arith.constant 0 : i32
    return %arg0, %c0_i32, %c0_i32_0 : i32, i32, i32
  }
  func.func @transform_6(%arg0: i32, %arg1: i32, %arg2: memref<3xi32, #tpu.memory_space<smem>>) -> (i32, i32, i32) {
    %c0_i32 = arith.constant 0 : i32
    %c0_i32_0 = arith.constant 0 : i32
    %c0_i32_1 = arith.constant 0 : i32
    return %arg0, %c0_i32, %c0_i32_0 : i32, i32, i32
  }
  func.func @transform_7(%arg0: i32, %arg1: i32, %arg2: memref<3xi32, #tpu.memory_space<smem>>) -> (i32, i32, i32) {
    %c0_i32 = arith.constant 0 : i32
    %c0_i32_0 = arith.constant 0 : i32
    return %arg0, %arg1, %c0_i32 : i32, i32, i32
  }
}

</mosaic_0001>

<llo_original>
// kernel: tpu_custom_call.1
$region0: #{tpu_custom_call.1}
  #allocation0 [shape = 'u32[]', space=smem, size = 0x4, offset = 0x4, fixed_abs, tag = 'smem constant byte address 0x4 - core index']
  #allocation1 [shape = 'u32[144,128]{1,0:T(1,128)}', space=vmem, size = 0x12000, scoped, tag = 'internal scratch']
  #allocation2 [shape = 'f32[8,32,128]{2,1,0:T(8,128)}', space=vmem, size = 0x20000, scoped, tag = 'scratch operand']
  #allocation3 [shape = 'f32[8,32,256]{2,1,0:T(8,128)}', space=vmem, size = 0x40000, scoped, tag = 'scratch operand']
  #allocation4 [shape = 's32[1]{0}', space=sflag, size = 0x4, scoped, tag = 'scoped memory for tpu_custom_call.1']
  #allocation5 [shape = 'u8[512]{0}', space=smem, size = 0x200, scoped, tag = 'prefetched SMEM operand 0']
  %s0 = inlined_call_operand.vmem [shape: s32[3], index: 0, kind: input, shape index: {}]
  %s1 = inlined_call_operand.vmem [shape: f32[4,8,35], index: 1, kind: input, shape index: {}]
  %s2 = inlined_call_operand.vmem [shape: f32[3,4,32], index: 2, kind: input, shape index: {}]
  %s3 = inlined_call_operand.vmem [shape: f32[3,1,32], index: 3, kind: input, shape index: {}]
  %s4 = inlined_call_operand.vmem [shape: bf16[3,128,64], index: 4, kind: input, shape index: {}]
  %s5 = inlined_call_operand.vmem [shape: f32[3,1,64], index: 5, kind: input, shape index: {}]
  %s6 = inlined_call_operand.hbm [shape: bf16[3,256,128], index: 6, kind: input, shape index: {}]
  %s7 = inlined_call_operand.vmem [shape: f32[3,1,128], index: 7, kind: input, shape index: {}]
  %s8 = inlined_call_operand.hbm [shape: f32[3,8,128], index: 8, kind: output, shape index: {}]
  %s9 = sld [smem:[#allocation0]]
  $region65: #{tpu_custom_call.1} parent=0
    _
  %s11 = ssub.s32 1, %s9
  %s12 = scalar_select 0, %s11, %s9
  %s13 = sshll.u32 %s0, 4
  %s14 = int_to_ptr.vmem [resolvable:$true] %s13
  %16 = dma.vmem_to_smem %s14, 16, [#allocation5], [#allocation4]
  %17 = dma.done [#allocation4], 16
  %18 = sfence
  $region1: #{tpu_custom_call.1} parent=0
    #allocation6 [shape = 'u8[131072]{0}', space=vmem, size = 0x20000, scoped, tag = 'input window, operand 6']
    #allocation7 [shape = 's32[2]{0}', space=sflag, size = 0x8, scoped, tag = 'scoped memory for tpu_custom_call.1']
    #allocation8 [shape = 's32[2]{0}', space=sflag, size = 0x8, scoped, tag = 'scoped memory for tpu_custom_call.1']
    #allocation9 [shape = 'u8[8192]{0}', space=vmem, size = 0x2000, scoped, tag = 'output window, operand 0']
    %19 = vsyncpa [#allocation7], 0
    %s20 = scalar_lea.sflag [#allocation7], 1
    %21 = vsyncpa %s20, 0
    %22 = vsyncpa [#allocation8], 0
    %s23 = scalar_lea.sflag [#allocation8], 1
    %24 = vsyncpa %s23, 0
    loop: start=0, step=1, limit=5
    $region2: #{tpu_custom_call.1} parent=1 // loop_pre_header
      _
    $region3: #{tpu_custom_call.1} parent=1 // loop_header
      %s26 = sphi 0, %s30
      %p27 = scmp.ge.s32.totalorder %s26, 5
      %s33 = sphi 0, %s45
      %s34 = sphi 0, %s41
      %s35 = sphi 0, %s33
      %s36 = sphi 0, %s34
      %s37 = sphi 0, %s35
      %s38 = sphi 0, %s36
      %s52 = sphi 0, %s54
      %s55 = sphi 0, %s52
      %s56 = sphi 0, %s55
      %s72 = sphi 0, %s56
      %s78 = sphi 0, %s80
      %s81 = sphi 0, %s78
      %s82 = sphi 0, %s81
      %s98 = sphi 0, %s82
      %s104 = sphi 0, %s106
      %s107 = sphi 0, %s104
      %s108 = sphi 0, %s107
      %s124 = sphi 0, %s108
      %s130 = sphi 0, %s132
      %s133 = sphi 0, %s130
      %s134 = sphi 0, %s133
      %s150 = sphi 0, %s134
      %s156 = sphi 0, %s158
      %s159 = sphi 0, %s156
      %s160 = sphi 0, %s159
      %s176 = sphi 0, %s160
      %s182 = sphi 0, %s184
      %s185 = sphi 0, %s182
      %s186 = sphi 0, %s185
      %s202 = sphi 0, %s186
      %s208 = sphi 0, %s210
      %s211 = sphi 0, %s208
      %s212 = sphi 0, %s211
      %s228 = sphi 0, %s212
      %s236 = sphi 0, %s238
      %s239 = sphi 0, %s236
      %s240 = sphi 0, %s239
      %s256 = sphi 0, %s240
    $region4: #{tpu_custom_call.1} parent=1 // loop_header_branch
      %29 = sbr.rel (%p27) target = $region8
    $region5: #{tpu_custom_call.1} parent=1 // loop_body
      %s31 = ssub.s32 %s26, 1
      %s32 = ssub.s32 %s26, 2
      %s39 = sadd.s32 1, %s34
      %p40 = scmp.ge.s32.totalorder %s39, 1
      %s41 = scalar_select %p40, 0, %s39
      %s42 = sadd.s32 1, %s33
      %s43 = scalar_select %p40, %s42, %s33
      %p44 = scmp.ge.s32.totalorder %s43, 3
      %s45 = scalar_select %p44, 0, %s43
      %s46 = sld [smem:[#allocation5 + %s33]]
      %s47 = sld [smem:[#allocation5 + %s45]]
      %s48 = ssub.s32 %s46, %s47
      %s49 = ssub.s32 %s34, %s41
      %s50 = sor.u32 %s48, %s49
      %p51 = scmp.eq.s32.totalorder %s50, 0
      %s53 = sadd.s32 %s52, 1
      %s54 = scalar_select %p51, %s52, %s53
      %p57 = pneg %p51
      %p58 = scmp.eq.s32.totalorder %s26, 2
      %p59 = por %p57, %p58
      %p60 = scmp.ne.s32.totalorder %s52, %s55
      %p61 = scmp.eq.s32.totalorder %s26, 0
      %p62 = por %p60, %p61
      %p63 = scmp.ne.s32.totalorder %s52, %s55
      %p64 = scmp.eq.s32.totalorder %s31, 2
      %p65 = por %p63, %p64
      %p66 = scmp.ne.s32.totalorder %s55, %s56
      %p67 = scmp.eq.s32.totalorder %s31, 0
      %p68 = por %p66, %p67
      %p69 = scmp.ne.s32.totalorder %s55, %s56
      %p70 = scmp.eq.s32.totalorder %s32, 2
      %p71 = por %p69, %p70
      %p73 = scmp.ne.s32.totalorder %s56, %s72
      %p74 = scmp.eq.s32.totalorder %s32, 0
      %p75 = por %p73, %p74
      %s76 = ssub.s32 %s33, %s45
      %p77 = scmp.eq.s32.totalorder %s76, 0
      %s79 = sadd.s32 %s78, 1
      %s80 = scalar_select %p77, %s78, %s79
      %p83 = pneg %p77
      %p84 = scmp.eq.s32.totalorder %s26, 2
      %p85 = por %p83, %p84
      %p86 = scmp.ne.s32.totalorder %s78, %s81
      %p87 = scmp.eq.s32.totalorder %s26, 0
      %p88 = por %p86, %p87
      %p89 = scmp.ne.s32.totalorder %s78, %s81
      %p90 = scmp.eq.s32.totalorder %s31, 2
      %p91 = por %p89, %p90
      %p92 = scmp.ne.s32.totalorder %s81, %s82
      %p93 = scmp.eq.s32.totalorder %s31, 0
      %p94 = por %p92, %p93
      %p95 = scmp.ne.s32.totalorder %s81, %s82
      %p96 = scmp.eq.s32.totalorder %s32, 2
      %p97 = por %p95, %p96
      %p99 = scmp.ne.s32.totalorder %s82, %s98
      %p100 = scmp.eq.s32.totalorder %s32, 0
      %p101 = por %p99, %p100
      %s102 = ssub.s32 %s33, %s45
      %p103 = scmp.eq.s32.totalorder %s102, 0
      %s105 = sadd.s32 %s104, 1
      %s106 = scalar_select %p103, %s104, %s105
      %p109 = pneg %p103
      %p110 = scmp.eq.s32.totalorder %s26, 2
      %p111 = por %p109, %p110
      %p112 = scmp.ne.s32.totalorder %s104, %s107
      %p113 = scmp.eq.s32.totalorder %s26, 0
      %p114 = por %p112, %p113
      %p115 = scmp.ne.s32.totalorder %s104, %s107
      %p116 = scmp.eq.s32.totalorder %s31, 2
      %p117 = por %p115, %p116
      %p118 = scmp.ne.s32.totalorder %s107, %s108
      %p119 = scmp.eq.s32.totalorder %s31, 0
      %p120 = por %p118, %p119
      %p121 = scmp.ne.s32.totalorder %s107, %s108
      %p122 = scmp.eq.s32.totalorder %s32, 2
      %p123 = por %p121, %p122
      %p125 = scmp.ne.s32.totalorder %s108, %s124
      %p126 = scmp.eq.s32.totalorder %s32, 0
      %p127 = por %p125, %p126
      %s128 = ssub.s32 %s33, %s45
      %p129 = scmp.eq.s32.totalorder %s128, 0
      %s131 = sadd.s32 %s130, 1
      %s132 = scalar_select %p129, %s130, %s131
      %p135 = pneg %p129
      %p136 = scmp.eq.s32.totalorder %s26, 2
      %p137 = por %p135, %p136
      %p138 = scmp.ne.s32.totalorder %s130, %s133
      %p139 = scmp.eq.s32.totalorder %s26, 0
      %p140 = por %p138, %p139
      %p141 = scmp.ne.s32.totalorder %s130, %s133
      %p142 = scmp.eq.s32.totalorder %s31, 2
      %p143 = por %p141, %p142
      %p144 = scmp.ne.s32.totalorder %s133, %s134
      %p145 = scmp.eq.s32.totalorder %s31, 0
      %p146 = por %p144, %p145
      %p147 = scmp.ne.s32.totalorder %s133, %s134
      %p148 = scmp.eq.s32.totalorder %s32, 2
      %p149 = por %p147, %p148
      %p151 = scmp.ne.s32.totalorder %s134, %s150
      %p152 = scmp.eq.s32.totalorder %s32, 0
      %p153 = por %p151, %p152
      %s154 = ssub.s32 %s33, %s45
      %p155 = scmp.eq.s32.totalorder %s154, 0
      %s157 = sadd.s32 %s156, 1
      %s158 = scalar_select %p155, %s156, %s157
      %p161 = pneg %p155
      %p162 = scmp.eq.s32.totalorder %s26, 2
      %p163 = por %p161, %p162
      %p164 = scmp.ne.s32.totalorder %s156, %s159
      %p165 = scmp.eq.s32.totalorder %s26, 0
      %p166 = por %p164, %p165
      %p167 = scmp.ne.s32.totalorder %s156, %s159
      %p168 = scmp.eq.s32.totalorder %s31, 2
      %p169 = por %p167, %p168
      %p170 = scmp.ne.s32.totalorder %s159, %s160
      %p171 = scmp.eq.s32.totalorder %s31, 0
      %p172 = por %p170, %p171
      %p173 = scmp.ne.s32.totalorder %s159, %s160
      %p174 = scmp.eq.s32.totalorder %s32, 2
      %p175 = por %p173, %p174
      %p177 = scmp.ne.s32.totalorder %s160, %s176
      %p178 = scmp.eq.s32.totalorder %s32, 0
      %p179 = por %p177, %p178
      %s180 = ssub.s32 %s33, %s45
      %p181 = scmp.eq.s32.totalorder %s180, 0
      %s183 = sadd.s32 %s182, 1
      %s184 = scalar_select %p181, %s182, %s183
      %p187 = pneg %p181
      %p188 = scmp.eq.s32.totalorder %s26, 2
      %p189 = por %p187, %p188
      %p190 = scmp.ne.s32.totalorder %s182, %s185
      %p191 = scmp.eq.s32.totalorder %s26, 0
      %p192 = por %p190, %p191
      %p193 = scmp.ne.s32.totalorder %s182, %s185
      %p194 = scmp.eq.s32.totalorder %s31, 2
      %p195 = por %p193, %p194
      %p196 = scmp.ne.s32.totalorder %s185, %s186
      %p197 = scmp.eq.s32.totalorder %s31, 0
      %p198 = por %p196, %p197
      %p199 = scmp.ne.s32.totalorder %s185, %s186
      %p200 = scmp.eq.s32.totalorder %s32, 2
      %p201 = por %p199, %p200
      %p203 = scmp.ne.s32.totalorder %s186, %s202
      %p204 = scmp.eq.s32.totalorder %s32, 0
      %p205 = por %p203, %p204
      %s206 = ssub.s32 %s33, %s45
      %p207 = scmp.eq.s32.totalorder %s206, 0
      %s209 = sadd.s32 %s208, 1
      %s210 = scalar_select %p207, %s208, %s209
      %p213 = pneg %p207
      %p214 = scmp.eq.s32.totalorder %s26, 2
      %p215 = por %p213, %p214
      %p216 = scmp.ne.s32.totalorder %s208, %s211
      %p217 = scmp.eq.s32.totalorder %s26, 0
      %p218 = por %p216, %p217
      %p219 = scmp.ne.s32.totalorder %s208, %s211
      %p220 = scmp.eq.s32.totalorder %s31, 2
      %p221 = por %p219, %p220
      %p222 = scmp.ne.s32.totalorder %s211, %s212
      %p223 = scmp.eq.s32.totalorder %s31, 0
      %p224 = por %p222, %p223
      %p225 = scmp.ne.s32.totalorder %s211, %s212
      %p226 = scmp.eq.s32.totalorder %s32, 2
      %p227 = por %p225, %p226
      %p229 = scmp.ne.s32.totalorder %s212, %s228
      %p230 = scmp.eq.s32.totalorder %s32, 0
      %p231 = por %p229, %p230
      %s232 = ssub.s32 %s33, %s45
      %s233 = ssub.s32 %s34, %s41
      %s234 = sor.u32 %s232, %s233
      %p235 = scmp.eq.s32.totalorder %s234, 0
      %s237 = sadd.s32 %s236, 1
      %s238 = scalar_select %p235, %s236, %s237
      %p241 = pneg %p235
      %p242 = scmp.eq.s32.totalorder %s26, 2
      %p243 = por %p241, %p242
      %p244 = scmp.ne.s32.totalorder %s236, %s239
      %p245 = scmp.eq.s32.totalorder %s26, 0
      %p246 = por %p244, %p245
      %p247 = scmp.ne.s32.totalorder %s236, %s239
      %p248 = scmp.eq.s32.totalorder %s31, 2
      %p249 = por %p247, %p248
      %p250 = scmp.ne.s32.totalorder %s239, %s240
      %p251 = scmp.eq.s32.totalorder %s31, 0
      %p252 = por %p250, %p251
      %p253 = scmp.ne.s32.totalorder %s239, %s240
      %p254 = scmp.eq.s32.totalorder %s32, 2
      %p255 = por %p253, %p254
      %p257 = scmp.ne.s32.totalorder %s240, %s256
      %p258 = scmp.eq.s32.totalorder %s32, 0
      %p259 = por %p257, %p258
      %p260 = scmp.le.s32.totalorder 1, %s26
      %p261 = scmp.lt.s32.totalorder %s26, 4
      %p262 = pnand %p260, %p261
      %p263 = pneg %p262
      // Predicated region
      $region9: #{tpu_custom_call.1} parent=5 // pred_check
        _
      $region10: #{tpu_custom_call.1} parent=5 // pred_check_branch
        %265 = sbr.rel (%p262) target = $region12
      $region11: #{tpu_custom_call.1} parent=5 // pred_region
        %s266 = ssub.s32 %s26, 1
      $region12: #{tpu_custom_call.1} parent=5 // pred_fallthru
        _
      %p267 = scmp.lt.s32.totalorder %s26, 3
      // Predicated region
      $region13: #{tpu_custom_call.1} parent=5 // pred_check
        %p268 = pneg %p267
      $region14: #{tpu_custom_call.1} parent=5 // pred_check_branch
        %270 = sbr.rel (%p268) target = $region16
      $region15: #{tpu_custom_call.1} parent=5 // pred_region
        // Predicated region
        $region17: #{tpu_custom_call.1} parent=15 // pred_check
          %p271 = pneg %p62
        $region18: #{tpu_custom_call.1} parent=15 // pred_check_branch
          %273 = sbr.rel (%p271) target = $region20
        $region19: #{tpu_custom_call.1} parent=15 // pred_region
          %s274 = sld [smem:[#allocation5 + %s33]]
          %p275 = scmp.lt.s32.totalorder %s274, 3
          %s276 = scalar_select %p275, %s274, 3
          %p277 = scmp.lt.s32.totalorder %s34, 0
          %s278 = scalar_select %p277, %s34, 0
          %s279 = sadd.s32 %s278, %s276
          %s280 = smul.addr %s279, 8
          %s281 = scalar_lea.vmem %s1, %s280
          %s282 = sld [smem:[#allocation5 + %s33]]
        $region20: #{tpu_custom_call.1} parent=15 // pred_fallthru
          _
        // Predicated region
        $region21: #{tpu_custom_call.1} parent=15 // pred_check
          %p283 = pneg %p88
        $region22: #{tpu_custom_call.1} parent=15 // pred_check_branch
          %285 = sbr.rel (%p283) target = $region24
        $region23: #{tpu_custom_call.1} parent=15 // pred_region
          %p286 = scmp.lt.s32.totalorder %s33, 2
          %s287 = scalar_select %p286, %s33, 2
          %s288 = smul.addr %s287, 4
          %s289 = scalar_lea.vmem %s2, %s288
        $region24: #{tpu_custom_call.1} parent=15 // pred_fallthru
          _
        // Predicated region
        $region25: #{tpu_custom_call.1} parent=15 // pred_check
          %p290 = pneg %p114
        $region26: #{tpu_custom_call.1} parent=15 // pred_check_branch
          %292 = sbr.rel (%p290) target = $region28
        $region27: #{tpu_custom_call.1} parent=15 // pred_region
          %p293 = scmp.lt.s32.totalorder %s33, 2
          %s294 = scalar_select %p293, %s33, 2
          %s295 = scalar_lea.vmem %s3, %s294
        $region28: #{tpu_custom_call.1} parent=15 // pred_fallthru
          _
        // Predicated region
        $region29: #{tpu_custom_call.1} parent=15 // pred_check
          %p296 = pneg %p140
        $region30: #{tpu_custom_call.1} parent=15 // pred_check_branch
          %298 = sbr.rel (%p296) target = $region32
        $region31: #{tpu_custom_call.1} parent=15 // pred_region
          %p299 = scmp.lt.s32.totalorder %s33, 2
          %s300 = scalar_select %p299, %s33, 2
          %s301 = smul.addr %s300, 16
          %s302 = smul.addr %s301, 4
          %s303 = scalar_lea.vmem %s4, %s302
        $region32: #{tpu_custom_call.1} parent=15 // pred_fallthru
          _
        // Predicated region
        $region33: #{tpu_custom_call.1} parent=15 // pred_check
          %p304 = pneg %p166
        $region34: #{tpu_custom_call.1} parent=15 // pred_check_branch
          %306 = sbr.rel (%p304) target = $region36
        $region35: #{tpu_custom_call.1} parent=15 // pred_region
          %p307 = scmp.lt.s32.totalorder %s33, 2
          %s308 = scalar_select %p307, %s33, 2
          %s309 = scalar_lea.vmem %s5, %s308
        $region36: #{tpu_custom_call.1} parent=15 // pred_fallthru
          _
        // Predicated region
        $region37: #{tpu_custom_call.1} parent=15 // pred_check
          %p310 = pneg %p192
        $region38: #{tpu_custom_call.1} parent=15 // pred_check_branch
          %312 = sbr.rel (%p310) target = $region40
        $region39: #{tpu_custom_call.1} parent=15 // pred_region
          %s313 = sand.u32 %s182, 1
          %s314 = scalar_lea.sflag [#allocation7], %s313
          %s315 = sand.u32 %s182, 1
          %s316 = smul.addr %s315, 128
          %s317 = scalar_lea.vmem [#allocation6], %s316
          %s319 = ssub.s32 2048, 2048
          %320 = vsyncadd %s314, %s319
          %s321 = smul.addr %s33, 32
          %s322 = smul.addr %s321, 64
          %s323 = scalar_lea.hbm %s6, %s322
          %s324 = sshll.u32 %s317, 4
          %s325 = int_to_ptr.vmem [resolvable:$true] %s324
          %330 = dma.hbm_to_vmem [thread:$0]  %s323, 2048, %s325, %s314, 64, 64, 4
        $region40: #{tpu_custom_call.1} parent=15 // pred_fallthru
          _
        // Predicated region
        $region41: #{tpu_custom_call.1} parent=15 // pred_check
          %p331 = pneg %p218
        $region42: #{tpu_custom_call.1} parent=15 // pred_check_branch
          %333 = sbr.rel (%p331) target = $region44
        $region43: #{tpu_custom_call.1} parent=15 // pred_region
          %p334 = scmp.lt.s32.totalorder %s33, 2
          %s335 = scalar_select %p334, %s33, 2
          %s336 = scalar_lea.vmem %s7, %s335
        $region44: #{tpu_custom_call.1} parent=15 // pred_fallthru
          _
      $region16: #{tpu_custom_call.1} parent=5 // pred_fallthru
        _
      %p337 = scmp.le.s32.totalorder 1, %s26
      %p338 = scmp.lt.s32.totalorder %s26, 4
      %p339 = pnand %p337, %p338
      %p340 = pneg %p339
      // Predicated region
      $region45: #{tpu_custom_call.1} parent=5 // pred_check
        _
      $region46: #{tpu_custom_call.1} parent=5 // pred_check_branch
        %342 = sbr.rel (%p339) target = $region48
      $region47: #{tpu_custom_call.1} parent=5 // pred_region
        %s343 = ssub.s32 %s26, 1
        %s344 = sand.u32 %s185, 1
        %s345 = scalar_lea.sflag [#allocation7], %s344
        %s346 = sand.u32 %s185, 1
        %s347 = smul.addr %s346, 128
        %s348 = scalar_lea.vmem [#allocation6], %s347
        // Predicated region
        $region49: #{tpu_custom_call.1} parent=47 // pred_check
          %p349 = pneg %p198
        $region50: #{tpu_custom_call.1} parent=47 // pred_check_branch
          %351 = sbr.rel (%p349) target = $region52
        $region51: #{tpu_custom_call.1} parent=47 // pred_region
          %352 = dma.done %s345, 2048
        $region52: #{tpu_custom_call.1} parent=47 // pred_fallthru
          _
        %s353 = sld [smem:[#allocation5 + %s35]]
        %p354 = scmp.lt.s32.totalorder %s353, 3
        %s355 = scalar_select %p354, %s353, 3
        %p356 = scmp.lt.s32.totalorder %s36, 0
        %s357 = scalar_select %p356, %s36, 0
        %s358 = sadd.s32 %s357, %s355
        %s359 = smul.addr %s358, 8
        %s360 = scalar_lea.vmem %s1, %s359
        %p361 = pneg %p68
        %p362 = pneg %p65
        %p363 = scmp.lt.s32.totalorder %s35, 2
        %s364 = scalar_select %p363, %s35, 2
        %s365 = smul.addr %s364, 4
        %s366 = scalar_lea.vmem %s2, %s365
        %p367 = pneg %p94
        %p368 = pneg %p91
        %p369 = scmp.lt.s32.totalorder %s35, 2
        %s370 = scalar_select %p369, %s35, 2
        %s371 = scalar_lea.vmem %s3, %s370
        %p372 = pneg %p120
        %p373 = pneg %p117
        %p374 = scmp.lt.s32.totalorder %s35, 2
        %s375 = scalar_select %p374, %s35, 2
        %s376 = smul.addr %s375, 16
        %s377 = smul.addr %s376, 4
        %s378 = scalar_lea.vmem %s4, %s377
        %p379 = pneg %p146
        %p380 = pneg %p143
        %p381 = scmp.lt.s32.totalorder %s35, 2
        %s382 = scalar_select %p381, %s35, 2
        %s383 = scalar_lea.vmem %s5, %s382
        %p384 = pneg %p172
        %p385 = pneg %p169
        %s386 = sand.u32 %s185, 1
        %s387 = scalar_lea.sflag [#allocation7], %s386
        %s388 = sand.u32 %s185, 1
        %s389 = smul.addr %s388, 128
        %s390 = scalar_lea.vmem [#allocation6], %s389
        %p391 = pneg %p198
        %p392 = pneg %p195
        %p393 = scmp.lt.s32.totalorder %s35, 2
        %s394 = scalar_select %p393, %s35, 2
        %s395 = scalar_lea.vmem %s7, %s394
        %p396 = pneg %p224
        %p397 = pneg %p221
        %p398 = pneg %p252
        %p399 = pneg %p249
        %s400 = sand.u32 %s239, 1
        %s401 = scalar_lea.sflag [#allocation8], %s400
        %s402 = sand.u32 %s239, 1
        %s403 = smul.addr %s402, 8
        %s404 = scalar_lea.vmem [#allocation9], %s403
        %s405 = sld [smem:[#allocation5 + %s35]]
        %p406 = scmp.lt.s32.totalorder %s405, 3
        %s407 = scalar_select %p406, %s405, 3
        %p408 = scmp.lt.s32.totalorder %s36, 0
        %s409 = scalar_select %p408, %s36, 0
        %s410 = sadd.s32 %s409, %s407
        %s411 = smul.addr %s410, 8
        %s412 = scalar_lea.vmem %s1, %s411
        %s413 = sld [smem:[#allocation5 + %s35]]
        %p414 = scmp.lt.s32.totalorder %s35, 2
        %s415 = scalar_select %p414, %s35, 2
        %s416 = smul.addr %s415, 4
        %s417 = scalar_lea.vmem %s2, %s416
        %p418 = scmp.lt.s32.totalorder %s35, 2
        %s419 = scalar_select %p418, %s35, 2
        %s420 = scalar_lea.vmem %s3, %s419
        %p421 = scmp.lt.s32.totalorder %s35, 2
        %s422 = scalar_select %p421, %s35, 2
        %s423 = smul.addr %s422, 16
        %s424 = smul.addr %s423, 4
        %s425 = scalar_lea.vmem %s4, %s424
        %p426 = scmp.lt.s32.totalorder %s35, 2
        %s427 = scalar_select %p426, %s35, 2
        %s428 = scalar_lea.vmem %s5, %s427
        %p429 = scmp.lt.s32.totalorder %s35, 2
        %s430 = scalar_select %p429, %s35, 2
        %s431 = scalar_lea.vmem %s7, %s430
        %v433 = vld [vmem:[%s412] sm:$0xff]
        %v434 = vld [vmem:[%s417] sm:$0xf]
        %v435 = vld [vmem:[%s420] sm:$0x1]
        %v436 = vld [vmem:[%s425] sm:$0xf]
        %v437 = vld [vmem:[%s425 + $0x4] sm:$0xf]
        %v438 = vld [vmem:[%s425 + $0x8] sm:$0xf]
        %v439 = vld [vmem:[%s425 + $0xc] sm:$0xf]
        %v440 = vld [vmem:[%s425 + $0x10] sm:$0xf]
        %v441 = vld [vmem:[%s425 + $0x14] sm:$0xf]
        %v442 = vld [vmem:[%s425 + $0x18] sm:$0xf]
        %v443 = vld [vmem:[%s425 + $0x1c] sm:$0xf]
        %v444 = vld [vmem:[%s425 + $0x20] sm:$0xf]
        %v445 = vld [vmem:[%s425 + $0x24] sm:$0xf]
        %v446 = vld [vmem:[%s425 + $0x28] sm:$0xf]
        %v447 = vld [vmem:[%s425 + $0x2c] sm:$0xf]
        %v448 = vld [vmem:[%s425 + $0x30] sm:$0xf]
        %v449 = vld [vmem:[%s425 + $0x34] sm:$0xf]
        %v450 = vld [vmem:[%s425 + $0x38] sm:$0xf]
        %v451 = vld [vmem:[%s425 + $0x3c] sm:$0xf]
        %v452 = vld [vmem:[%s428] sm:$0x1]
        %v453 = vld [vmem:[%s348] sm:$0xf]
        %v454 = vld [vmem:[%s348 + $0x4] sm:$0xf]
        %v455 = vld [vmem:[%s348 + $0x8] sm:$0xf]
        %v456 = vld [vmem:[%s348 + $0xc] sm:$0xf]
        %v457 = vld [vmem:[%s348 + $0x10] sm:$0xf]
        %v458 = vld [vmem:[%s348 + $0x14] sm:$0xf]
        %v459 = vld [vmem:[%s348 + $0x18] sm:$0xf]
        %v460 = vld [vmem:[%s348 + $0x1c] sm:$0xf]
        %v461 = vld [vmem:[%s348 + $0x20] sm:$0xf]
        %v462 = vld [vmem:[%s348 + $0x24] sm:$0xf]
        %v463 = vld [vmem:[%s348 + $0x28] sm:$0xf]
        %v464 = vld [vmem:[%s348 + $0x2c] sm:$0xf]
        %v465 = vld [vmem:[%s348 + $0x30] sm:$0xf]
        %v466 = vld [vmem:[%s348 + $0x34] sm:$0xf]
        %v467 = vld [vmem:[%s348 + $0x38] sm:$0xf]
        %v468 = vld [vmem:[%s348 + $0x3c] sm:$0xf]
        %v469 = vld [vmem:[%s348 + $0x40] sm:$0xf]
        %v470 = vld [vmem:[%s348 + $0x44] sm:$0xf]
        %v471 = vld [vmem:[%s348 + $0x48] sm:$0xf]
        %v472 = vld [vmem:[%s348 + $0x4c] sm:$0xf]
        %v473 = vld [vmem:[%s348 + $0x50] sm:$0xf]
        %v474 = vld [vmem:[%s348 + $0x54] sm:$0xf]
        %v475 = vld [vmem:[%s348 + $0x58] sm:$0xf]
        %v476 = vld [vmem:[%s348 + $0x5c] sm:$0xf]
        %v477 = vld [vmem:[%s348 + $0x60] sm:$0xf]
        %v478 = vld [vmem:[%s348 + $0x64] sm:$0xf]
        %v479 = vld [vmem:[%s348 + $0x68] sm:$0xf]
        %v480 = vld [vmem:[%s348 + $0x6c] sm:$0xf]
        %v481 = vld [vmem:[%s348 + $0x70] sm:$0xf]
        %v482 = vld [vmem:[%s348 + $0x74] sm:$0xf]
        %v483 = vld [vmem:[%s348 + $0x78] sm:$0xf]
        %v484 = vld [vmem:[%s348 + $0x7c] sm:$0xf]
        %v485 = vld [vmem:[%s431] sm:$0x1]
        %v486 = vlaneseq
        %v487 = vshrl.u32 %v486, 7
        %v488 = vsub.s32 0, %v487
        %v489 = vrot.slane %v433, %v488
        %491 = vbcast.lane.b32.xlu0 %v489, 256
        %v492 = vpop.permute.xlu0 %491
        %s494 = sor.u32 256, 8
        %495 = vbcast.lane.b32.xlu0 %v489, %s494
        %v496 = vpop.permute.xlu0 %495
        %s498 = sor.u32 256, 16
        %499 = vbcast.lane.b32.xlu0 %v489, %s498
        %v500 = vpop.permute.xlu0 %499
        %s502 = sor.u32 256, 24
        %503 = vbcast.lane.b32.xlu0 %v489, %s502
        %v504 = vpop.permute.xlu0 %503
        %s506 = sor.u32 256, 32
        %507 = vbcast.lane.b32.xlu0 %v489, %s506
        %v508 = vpop.permute.xlu0 %507
        %v509 = vlaneseq
        %v510 = vshrl.u32 %v509, 7
        %v511 = vsub.s32 1, %v510
        %v512 = vrot.slane %v433, %v511
        %514 = vbcast.lane.b32.xlu0 %v512, 256
        %v515 = vpop.permute.xlu0 %514
        %s517 = sor.u32 256, 8
        %518 = vbcast.lane.b32.xlu0 %v512, %s517
        %v519 = vpop.permute.xlu0 %518
        %s521 = sor.u32 256, 16
        %522 = vbcast.lane.b32.xlu0 %v512, %s521
        %v523 = vpop.permute.xlu0 %522
        %s525 = sor.u32 256, 24
        %526 = vbcast.lane.b32.xlu0 %v512, %s525
        %v527 = vpop.permute.xlu0 %526
        %s529 = sor.u32 256, 32
        %530 = vbcast.lane.b32.xlu0 %v512, %s529
        %v531 = vpop.permute.xlu0 %530
        %v532 = vlaneseq
        %v533 = vshrl.u32 %v532, 7
        %v534 = vsub.s32 2, %v533
        %v535 = vrot.slane %v433, %v534
        %537 = vbcast.lane.b32.xlu0 %v535, 256
        %v538 = vpop.permute.xlu0 %537
        %s540 = sor.u32 256, 8
        %541 = vbcast.lane.b32.xlu0 %v535, %s540
        %v542 = vpop.permute.xlu0 %541
        %s544 = sor.u32 256, 16
        %545 = vbcast.lane.b32.xlu0 %v535, %s544
        %v546 = vpop.permute.xlu0 %545
        %s548 = sor.u32 256, 24
        %549 = vbcast.lane.b32.xlu0 %v535, %s548
        %v550 = vpop.permute.xlu0 %549
        %s552 = sor.u32 256, 32
        %553 = vbcast.lane.b32.xlu0 %v535, %s552
        %v554 = vpop.permute.xlu0 %553
        %v555 = vlaneseq
        %v556 = vshrl.u32 %v555, 7
        %v557 = vsub.s32 3, %v556
        %v558 = vrot.slane %v433, %v557
        %560 = vbcast.lane.b32.xlu0 %v558, 256
        %v561 = vpop.permute.xlu0 %560
        %s563 = sor.u32 256, 8
        %564 = vbcast.lane.b32.xlu0 %v558, %s563
        %v565 = vpop.permute.xlu0 %564
        %s567 = sor.u32 256, 16
        %568 = vbcast.lane.b32.xlu0 %v558, %s567
        %v569 = vpop.permute.xlu0 %568
        %s571 = sor.u32 256, 24
        %572 = vbcast.lane.b32.xlu0 %v558, %s571
        %v573 = vpop.permute.xlu0 %572
        %s575 = sor.u32 256, 32
        %576 = vbcast.lane.b32.xlu0 %v558, %s575
        %v577 = vpop.permute.xlu0 %576
        %v578 = vlaneseq
        %v579 = vshrl.u32 %v578, 7
        %v580 = vsub.s32 4, %v579
        %v581 = vrot.slane %v433, %v580
        %583 = vbcast.lane.b32.xlu0 %v581, 256
        %v584 = vpop.permute.xlu0 %583
        %s586 = sor.u32 256, 8
        %587 = vbcast.lane.b32.xlu0 %v581, %s586
        %v588 = vpop.permute.xlu0 %587
        %s590 = sor.u32 256, 16
        %591 = vbcast.lane.b32.xlu0 %v581, %s590
        %v592 = vpop.permute.xlu0 %591
        %s594 = sor.u32 256, 24
        %595 = vbcast.lane.b32.xlu0 %v581, %s594
        %v596 = vpop.permute.xlu0 %595
        %s598 = sor.u32 256, 32
        %599 = vbcast.lane.b32.xlu0 %v581, %s598
        %v600 = vpop.permute.xlu0 %599
        %v601 = vlaneseq
        %v602 = vshrl.u32 %v601, 7
        %v603 = vsub.s32 5, %v602
        %v604 = vrot.slane %v433, %v603
        %606 = vbcast.lane.b32.xlu0 %v604, 256
        %v607 = vpop.permute.xlu0 %606
        %s609 = sor.u32 256, 8
        %610 = vbcast.lane.b32.xlu0 %v604, %s609
        %v611 = vpop.permute.xlu0 %610
        %s613 = sor.u32 256, 16
        %614 = vbcast.lane.b32.xlu0 %v604, %s613
        %v615 = vpop.permute.xlu0 %614
        %s617 = sor.u32 256, 24
        %618 = vbcast.lane.b32.xlu0 %v604, %s617
        %v619 = vpop.permute.xlu0 %618
        %s621 = sor.u32 256, 32
        %622 = vbcast.lane.b32.xlu0 %v604, %s621
        %v623 = vpop.permute.xlu0 %622
        %v624 = vlaneseq
        %v625 = vshrl.u32 %v624, 7
        %v626 = vsub.s32 6, %v625
        %v627 = vrot.slane %v433, %v626
        %629 = vbcast.lane.b32.xlu0 %v627, 256
        %v630 = vpop.permute.xlu0 %629
        %s632 = sor.u32 256, 8
        %633 = vbcast.lane.b32.xlu0 %v627, %s632
        %v634 = vpop.permute.xlu0 %633
        %s636 = sor.u32 256, 16
        %637 = vbcast.lane.b32.xlu0 %v627, %s636
        %v638 = vpop.permute.xlu0 %637
        %s640 = sor.u32 256, 24
        %641 = vbcast.lane.b32.xlu0 %v627, %s640
        %v642 = vpop.permute.xlu0 %641
        %s644 = sor.u32 256, 32
        %645 = vbcast.lane.b32.xlu0 %v627, %s644
        %v646 = vpop.permute.xlu0 %645
        %v647 = vlaneseq
        %v648 = vshrl.u32 %v647, 7
        %v649 = vsub.s32 7, %v648
        %v650 = vrot.slane %v433, %v649
        %652 = vbcast.lane.b32.xlu0 %v650, 256
        %v653 = vpop.permute.xlu0 %652
        %s655 = sor.u32 256, 8
        %656 = vbcast.lane.b32.xlu0 %v650, %s655
        %v657 = vpop.permute.xlu0 %656
        %s659 = sor.u32 256, 16
        %660 = vbcast.lane.b32.xlu0 %v650, %s659
        %v661 = vpop.permute.xlu0 %660
        %s663 = sor.u32 256, 24
        %664 = vbcast.lane.b32.xlu0 %v650, %s663
        %v665 = vpop.permute.xlu0 %664
        %s667 = sor.u32 256, 32
        %668 = vbcast.lane.b32.xlu0 %v650, %s667
        %v669 = vpop.permute.xlu0 %668
        %v670 = vlaneseq
        %v671 = vshrl.u32 %v670, 7
        %v672 = vsub.s32 0, %v671
        %v673 = vrot.slane %v434, %v672
        %v674 = vmul.f32 %v492, %v673
        %v675 = vmul.f32 %v496, %v673
        %v676 = vmul.f32 %v500, %v673
        %v677 = vmul.f32 %v504, %v673
        %v678 = vmul.f32 %v515, %v673
        %v679 = vmul.f32 %v519, %v673
        %v680 = vmul.f32 %v523, %v673
        %v681 = vmul.f32 %v527, %v673
        %v682 = vmul.f32 %v538, %v673
        %v683 = vmul.f32 %v542, %v673
        %v684 = vmul.f32 %v546, %v673
        %v685 = vmul.f32 %v550, %v673
        %v686 = vmul.f32 %v561, %v673
        %v687 = vmul.f32 %v565, %v673
        %v688 = vmul.f32 %v569, %v673
        %v689 = vmul.f32 %v573, %v673
        %v690 = vmul.f32 %v584, %v673
        %v691 = vmul.f32 %v588, %v673
        %v692 = vmul.f32 %v592, %v673
        %v693 = vmul.f32 %v596, %v673
        %v694 = vmul.f32 %v607, %v673
        %v695 = vmul.f32 %v611, %v673
        %v696 = vmul.f32 %v615, %v673
        %v697 = vmul.f32 %v619, %v673
        %v698 = vmul.f32 %v630, %v673
        %v699 = vmul.f32 %v634, %v673
        %v700 = vmul.f32 %v638, %v673
        %v701 = vmul.f32 %v642, %v673
        %v702 = vmul.f32 %v653, %v673
        %v703 = vmul.f32 %v657, %v673
        %v704 = vmul.f32 %v661, %v673
        %v705 = vmul.f32 %v665, %v673
        %v706 = vlaneseq
        %v707 = vshrl.u32 %v706, 7
        %v708 = vsub.s32 1, %v707
        %v709 = vrot.slane %v434, %v708
        %v710 = vmul.f32 %v492, %v709
        %v711 = vmul.f32 %v496, %v709
        %v712 = vmul.f32 %v500, %v709
        %v713 = vmul.f32 %v504, %v709
        %v714 = vmul.f32 %v508, %v709
        %v715 = vmul.f32 %v515, %v709
        %v716 = vmul.f32 %v519, %v709
        %v717 = vmul.f32 %v523, %v709
        %v718 = vmul.f32 %v527, %v709
        %v719 = vmul.f32 %v531, %v709
        %v720 = vmul.f32 %v538, %v709
        %v721 = vmul.f32 %v542, %v709
        %v722 = vmul.f32 %v546, %v709
        %v723 = vmul.f32 %v550, %v709
        %v724 = vmul.f32 %v554, %v709
        %v725 = vmul.f32 %v561, %v709
        %v726 = vmul.f32 %v565, %v709
        %v727 = vmul.f32 %v569, %v709
        %v728 = vmul.f32 %v573, %v709
        %v729 = vmul.f32 %v577, %v709
        %v730 = vmul.f32 %v584, %v709
        %v731 = vmul.f32 %v588, %v709
        %v732 = vmul.f32 %v592, %v709
        %v733 = vmul.f32 %v596, %v709
        %v734 = vmul.f32 %v600, %v709
        %v735 = vmul.f32 %v607, %v709
        %v736 = vmul.f32 %v611, %v709
        %v737 = vmul.f32 %v615, %v709
        %v738 = vmul.f32 %v619, %v709
        %v739 = vmul.f32 %v623, %v709
        %v740 = vmul.f32 %v630, %v709
        %v741 = vmul.f32 %v634, %v709
        %v742 = vmul.f32 %v638, %v709
        %v743 = vmul.f32 %v642, %v709
        %v744 = vmul.f32 %v646, %v709
        %v745 = vmul.f32 %v653, %v709
        %v746 = vmul.f32 %v657, %v709
        %v747 = vmul.f32 %v661, %v709
        %v748 = vmul.f32 %v665, %v709
        %v749 = vmul.f32 %v669, %v709
        %vm790 = vcmask 1046528
        %v791 = vrot.slane %v710, 1
        %v792 = vrot.slane %v711, 1
        %v793 = vsel %vm790, %v791, %v792
        %v794 = vrot.slane %v712, 1
        %v795 = vsel %vm790, %v792, %v794
        %v796 = vrot.slane %v713, 1
        %v797 = vsel %vm790, %v794, %v796
        %v798 = vrot.slane %v714, 1
        %v799 = vsel %vm790, %v796, %v798
        %v800 = vrot.slane %v715, 1
        %v801 = vrot.slane %v716, 1
        %v802 = vsel %vm790, %v800, %v801
        %v803 = vrot.slane %v717, 1
        %v804 = vsel %vm790, %v801, %v803
        %v805 = vrot.slane %v718, 1
        %v806 = vsel %vm790, %v803, %v805
        %v807 = vrot.slane %v719, 1
        %v808 = vsel %vm790, %v805, %v807
        %v809 = vrot.slane %v720, 1
        %v810 = vrot.slane %v721, 1
        %v811 = vsel %vm790, %v809, %v810
        %v812 = vrot.slane %v722, 1
        %v813 = vsel %vm790, %v810, %v812
        %v814 = vrot.slane %v723, 1
        %v815 = vsel %vm790, %v812, %v814
        %v816 = vrot.slane %v724, 1
        %v817 = vsel %vm790, %v814, %v816
        %v818 = vrot.slane %v725, 1
        %v819 = vrot.slane %v726, 1
        %v820 = vsel %vm790, %v818, %v819
        %v821 = vrot.slane %v727, 1
        %v822 = vsel %vm790, %v819, %v821
        %v823 = vrot.slane %v728, 1
        %v824 = vsel %vm790, %v821, %v823
        %v825 = vrot.slane %v729, 1
        %v826 = vsel %vm790, %v823, %v825
        %v827 = vrot.slane %v730, 1
        %v828 = vrot.slane %v731, 1
        %v829 = vsel %vm790, %v827, %v828
        %v830 = vrot.slane %v732, 1
        %v831 = vsel %vm790, %v828, %v830
        %v832 = vrot.slane %v733, 1
        %v833 = vsel %vm790, %v830, %v832
        %v834 = vrot.slane %v734, 1
        %v835 = vsel %vm790, %v832, %v834
        %v836 = vrot.slane %v735, 1
        %v837 = vrot.slane %v736, 1
        %v838 = vsel %vm790, %v836, %v837
        %v839 = vrot.slane %v737, 1
        %v840 = vsel %vm790, %v837, %v839
        %v841 = vrot.slane %v738, 1
        %v842 = vsel %vm790, %v839, %v841
        %v843 = vrot.slane %v739, 1
        %v844 = vsel %vm790, %v841, %v843
        %v845 = vrot.slane %v740, 1
        %v846 = vrot.slane %v741, 1
        %v847 = vsel %vm790, %v845, %v846
        %v848 = vrot.slane %v742, 1
        %v849 = vsel %vm790, %v846, %v848
        %v850 = vrot.slane %v743, 1
        %v851 = vsel %vm790, %v848, %v850
        %v852 = vrot.slane %v744, 1
        %v853 = vsel %vm790, %v850, %v852
        %v854 = vrot.slane %v745, 1
        %v855 = vrot.slane %v746, 1
        %v856 = vsel %vm790, %v854, %v855
        %v857 = vrot.slane %v747, 1
        %v858 = vsel %vm790, %v855, %v857
        %v859 = vrot.slane %v748, 1
        %v860 = vsel %vm790, %v857, %v859
        %v861 = vrot.slane %v749, 1
        %v862 = vsel %vm790, %v859, %v861
        %v895 = vadd.f32 %v674, %v793
        %v896 = vadd.f32 %v675, %v795
        %v897 = vadd.f32 %v676, %v797
        %v898 = vadd.f32 %v677, %v799
        %v899 = vadd.f32 %v678, %v802
        %v900 = vadd.f32 %v679, %v804
        %v901 = vadd.f32 %v680, %v806
        %v902 = vadd.f32 %v681, %v808
        %v903 = vadd.f32 %v682, %v811
        %v904 = vadd.f32 %v683, %v813
        %v905 = vadd.f32 %v684, %v815
        %v906 = vadd.f32 %v685, %v817
        %v907 = vadd.f32 %v686, %v820
        %v908 = vadd.f32 %v687, %v822
        %v909 = vadd.f32 %v688, %v824
        %v910 = vadd.f32 %v689, %v826
        %v911 = vadd.f32 %v690, %v829
        %v912 = vadd.f32 %v691, %v831
        %v913 = vadd.f32 %v692, %v833
        %v914 = vadd.f32 %v693, %v835
        %v915 = vadd.f32 %v694, %v838
        %v916 = vadd.f32 %v695, %v840
        %v917 = vadd.f32 %v696, %v842
        %v918 = vadd.f32 %v697, %v844
        %v919 = vadd.f32 %v698, %v847
        %v920 = vadd.f32 %v699, %v849
        %v921 = vadd.f32 %v700, %v851
        %v922 = vadd.f32 %v701, %v853
        %v923 = vadd.f32 %v702, %v856
        %v924 = vadd.f32 %v703, %v858
        %v925 = vadd.f32 %v704, %v860
        %v926 = vadd.f32 %v705, %v862
        %v927 = vlaneseq
        %v928 = vshrl.u32 %v927, 7
        %v929 = vsub.s32 2, %v928
        %v930 = vrot.slane %v434, %v929
        %v931 = vmul.f32 %v492, %v930
        %v932 = vmul.f32 %v496, %v930
        %v933 = vmul.f32 %v500, %v930
        %v934 = vmul.f32 %v504, %v930
        %v935 = vmul.f32 %v508, %v930
        %v936 = vmul.f32 %v515, %v930
        %v937 = vmul.f32 %v519, %v930
        %v938 = vmul.f32 %v523, %v930
        %v939 = vmul.f32 %v527, %v930
        %v940 = vmul.f32 %v531, %v930
        %v941 = vmul.f32 %v538, %v930
        %v942 = vmul.f32 %v542, %v930
        %v943 = vmul.f32 %v546, %v930
        %v944 = vmul.f32 %v550, %v930
        %v945 = vmul.f32 %v554, %v930
        %v946 = vmul.f32 %v561, %v930
        %v947 = vmul.f32 %v565, %v930
        %v948 = vmul.f32 %v569, %v930
        %v949 = vmul.f32 %v573, %v930
        %v950 = vmul.f32 %v577, %v930
        %v951 = vmul.f32 %v584, %v930
        %v952 = vmul.f32 %v588, %v930
        %v953 = vmul.f32 %v592, %v930
        %v954 = vmul.f32 %v596, %v930
        %v955 = vmul.f32 %v600, %v930
        %v956 = vmul.f32 %v607, %v930
        %v957 = vmul.f32 %v611, %v930
        %v958 = vmul.f32 %v615, %v930
        %v959 = vmul.f32 %v619, %v930
        %v960 = vmul.f32 %v623, %v930
        %v961 = vmul.f32 %v630, %v930
        %v962 = vmul.f32 %v634, %v930
        %v963 = vmul.f32 %v638, %v930
        %v964 = vmul.f32 %v642, %v930
        %v965 = vmul.f32 %v646, %v930
        %v966 = vmul.f32 %v653, %v930
        %v967 = vmul.f32 %v657, %v930
        %v968 = vmul.f32 %v661, %v930
        %v969 = vmul.f32 %v665, %v930
        %v970 = vmul.f32 %v669, %v930
        %vm1011 = vcmask 1045504
        %v1012 = vrot.slane %v931, 2
        %v1013 = vrot.slane %v932, 2
        %v1014 = vsel %vm1011, %v1012, %v1013
        %v1015 = vrot.slane %v933, 2
        %v1016 = vsel %vm1011, %v1013, %v1015
        %v1017 = vrot.slane %v934, 2
        %v1018 = vsel %vm1011, %v1015, %v1017
        %v1019 = vrot.slane %v935, 2
        %v1020 = vsel %vm1011, %v1017, %v1019
        %v1021 = vrot.slane %v936, 2
        %v1022 = vrot.slane %v937, 2
        %v1023 = vsel %vm1011, %v1021, %v1022
        %v1024 = vrot.slane %v938, 2
        %v1025 = vsel %vm1011, %v1022, %v1024
        %v1026 = vrot.slane %v939, 2
        %v1027 = vsel %vm1011, %v1024, %v1026
        %v1028 = vrot.slane %v940, 2
        %v1029 = vsel %vm1011, %v1026, %v1028
        %v1030 = vrot.slane %v941, 2
        %v1031 = vrot.slane %v942, 2
        %v1032 = vsel %vm1011, %v1030, %v1031
        %v1033 = vrot.slane %v943, 2
        %v1034 = vsel %vm1011, %v1031, %v1033
        %v1035 = vrot.slane %v944, 2
        %v1036 = vsel %vm1011, %v1033, %v1035
        %v1037 = vrot.slane %v945, 2
        %v1038 = vsel %vm1011, %v1035, %v1037
        %v1039 = vrot.slane %v946, 2
        %v1040 = vrot.slane %v947, 2
        %v1041 = vsel %vm1011, %v1039, %v1040
        %v1042 = vrot.slane %v948, 2
        %v1043 = vsel %vm1011, %v1040, %v1042
        %v1044 = vrot.slane %v949, 2
        %v1045 = vsel %vm1011, %v1042, %v1044
        %v1046 = vrot.slane %v950, 2
        %v1047 = vsel %vm1011, %v1044, %v1046
        %v1048 = vrot.slane %v951, 2
        %v1049 = vrot.slane %v952, 2
        %v1050 = vsel %vm1011, %v1048, %v1049
        %v1051 = vrot.slane %v953, 2
        %v1052 = vsel %vm1011, %v1049, %v1051
        %v1053 = vrot.slane %v954, 2
        %v1054 = vsel %vm1011, %v1051, %v1053
        %v1055 = vrot.slane %v955, 2
        %v1056 = vsel %vm1011, %v1053, %v1055
        %v1057 = vrot.slane %v956, 2
        %v1058 = vrot.slane %v957, 2
        %v1059 = vsel %vm1011, %v1057, %v1058
        %v1060 = vrot.slane %v958, 2
        %v1061 = vsel %vm1011, %v1058, %v1060
        %v1062 = vrot.slane %v959, 2
        %v1063 = vsel %vm1011, %v1060, %v1062
        %v1064 = vrot.slane %v960, 2
        %v1065 = vsel %vm1011, %v1062, %v1064
        %v1066 = vrot.slane %v961, 2
        %v1067 = vrot.slane %v962, 2
        %v1068 = vsel %vm1011, %v1066, %v1067
        %v1069 = vrot.slane %v963, 2
        %v1070 = vsel %vm1011, %v1067, %v1069
        %v1071 = vrot.slane %v964, 2
        %v1072 = vsel %vm1011, %v1069, %v1071
        %v1073 = vrot.slane %v965, 2
        %v1074 = vsel %vm1011, %v1071, %v1073
        %v1075 = vrot.slane %v966, 2
        %v1076 = vrot.slane %v967, 2
        %v1077 = vsel %vm1011, %v1075, %v1076
        %v1078 = vrot.slane %v968, 2
        %v1079 = vsel %vm1011, %v1076, %v1078
        %v1080 = vrot.slane %v969, 2
        %v1081 = vsel %vm1011, %v1078, %v1080
        %v1082 = vrot.slane %v970, 2
        %v1083 = vsel %vm1011, %v1080, %v1082
        %v1116 = vadd.f32 %v895, %v1014
        %v1117 = vadd.f32 %v896, %v1016
        %v1118 = vadd.f32 %v897, %v1018
        %v1119 = vadd.f32 %v898, %v1020
        %v1120 = vadd.f32 %v899, %v1023
        %v1121 = vadd.f32 %v900, %v1025
        %v1122 = vadd.f32 %v901, %v1027
        %v1123 = vadd.f32 %v902, %v1029
        %v1124 = vadd.f32 %v903, %v1032
        %v1125 = vadd.f32 %v904, %v1034
        %v1126 = vadd.f32 %v905, %v1036
        %v1127 = vadd.f32 %v906, %v1038
        %v1128 = vadd.f32 %v907, %v1041
        %v1129 = vadd.f32 %v908, %v1043
        %v1130 = vadd.f32 %v909, %v1045
        %v1131 = vadd.f32 %v910, %v1047
        %v1132 = vadd.f32 %v911, %v1050
        %v1133 = vadd.f32 %v912, %v1052
        %v1134 = vadd.f32 %v913, %v1054
        %v1135 = vadd.f32 %v914, %v1056
        %v1136 = vadd.f32 %v915, %v1059
        %v1137 = vadd.f32 %v916, %v1061
        %v1138 = vadd.f32 %v917, %v1063
        %v1139 = vadd.f32 %v918, %v1065
        %v1140 = vadd.f32 %v919, %v1068
        %v1141 = vadd.f32 %v920, %v1070
        %v1142 = vadd.f32 %v921, %v1072
        %v1143 = vadd.f32 %v922, %v1074
        %v1144 = vadd.f32 %v923, %v1077
        %v1145 = vadd.f32 %v924, %v1079
        %v1146 = vadd.f32 %v925, %v1081
        %v1147 = vadd.f32 %v926, %v1083
        %v1148 = vlaneseq
        %v1149 = vshrl.u32 %v1148, 7
        %v1150 = vsub.s32 3, %v1149
        %v1151 = vrot.slane %v434, %v1150
        %v1152 = vmul.f32 %v492, %v1151
        %v1153 = vmul.f32 %v496, %v1151
        %v1154 = vmul.f32 %v500, %v1151
        %v1155 = vmul.f32 %v504, %v1151
        %v1156 = vmul.f32 %v508, %v1151
        %v1157 = vmul.f32 %v515, %v1151
        %v1158 = vmul.f32 %v519, %v1151
        %v1159 = vmul.f32 %v523, %v1151
        %v1160 = vmul.f32 %v527, %v1151
        %v1161 = vmul.f32 %v531, %v1151
        %v1162 = vmul.f32 %v538, %v1151
        %v1163 = vmul.f32 %v542, %v1151
        %v1164 = vmul.f32 %v546, %v1151
        %v1165 = vmul.f32 %v550, %v1151
        %v1166 = vmul.f32 %v554, %v1151
        %v1167 = vmul.f32 %v561, %v1151
        %v1168 = vmul.f32 %v565, %v1151
        %v1169 = vmul.f32 %v569, %v1151
        %v1170 = vmul.f32 %v573, %v1151
        %v1171 = vmul.f32 %v577, %v1151
        %v1172 = vmul.f32 %v584, %v1151
        %v1173 = vmul.f32 %v588, %v1151
        %v1174 = vmul.f32 %v592, %v1151
        %v1175 = vmul.f32 %v596, %v1151
        %v1176 = vmul.f32 %v600, %v1151
        %v1177 = vmul.f32 %v607, %v1151
        %v1178 = vmul.f32 %v611, %v1151
        %v1179 = vmul.f32 %v615, %v1151
        %v1180 = vmul.f32 %v619, %v1151
        %v1181 = vmul.f32 %v623, %v1151
        %v1182 = vmul.f32 %v630, %v1151
        %v1183 = vmul.f32 %v634, %v1151
        %v1184 = vmul.f32 %v638, %v1151
        %v1185 = vmul.f32 %v642, %v1151
        %v1186 = vmul.f32 %v646, %v1151
        %v1187 = vmul.f32 %v653, %v1151
        %v1188 = vmul.f32 %v657, %v1151
        %v1189 = vmul.f32 %v661, %v1151
        %v1190 = vmul.f32 %v665, %v1151
        %v1191 = vmul.f32 %v669, %v1151
        %vm1232 = vcmask 1044480
        %v1233 = vrot.slane %v1152, 3
        %v1234 = vrot.slane %v1153, 3
        %v1235 = vsel %vm1232, %v1233, %v1234
        %v1236 = vrot.slane %v1154, 3
        %v1237 = vsel %vm1232, %v1234, %v1236
        %v1238 = vrot.slane %v1155, 3
        %v1239 = vsel %vm1232, %v1236, %v1238
        %v1240 = vrot.slane %v1156, 3
        %v1241 = vsel %vm1232, %v1238, %v1240
        %v1242 = vrot.slane %v1157, 3
        %v1243 = vrot.slane %v1158, 3
        %v1244 = vsel %vm1232, %v1242, %v1243
        %v1245 = vrot.slane %v1159, 3
        %v1246 = vsel %vm1232, %v1243, %v1245
        %v1247 = vrot.slane %v1160, 3
        %v1248 = vsel %vm1232, %v1245, %v1247
        %v1249 = vrot.slane %v1161, 3
        %v1250 = vsel %vm1232, %v1247, %v1249
        %v1251 = vrot.slane %v1162, 3
        %v1252 = vrot.slane %v1163, 3
        %v1253 = vsel %vm1232, %v1251, %v1252
        %v1254 = vrot.slane %v1164, 3
        %v1255 = vsel %vm1232, %v1252, %v1254
        %v1256 = vrot.slane %v1165, 3
        %v1257 = vsel %vm1232, %v1254, %v1256
        %v1258 = vrot.slane %v1166, 3
        %v1259 = vsel %vm1232, %v1256, %v1258
        %v1260 = vrot.slane %v1167, 3
        %v1261 = vrot.slane %v1168, 3
        %v1262 = vsel %vm1232, %v1260, %v1261
        %v1263 = vrot.slane %v1169, 3
        %v1264 = vsel %vm1232, %v1261, %v1263
        %v1265 = vrot.slane %v1170, 3
        %v1266 = vsel %vm1232, %v1263, %v1265
        %v1267 = vrot.slane %v1171, 3
        %v1268 = vsel %vm1232, %v1265, %v1267
        %v1269 = vrot.slane %v1172, 3
        %v1270 = vrot.slane %v1173, 3
        %v1271 = vsel %vm1232, %v1269, %v1270
        %v1272 = vrot.slane %v1174, 3
        %v1273 = vsel %vm1232, %v1270, %v1272
        %v1274 = vrot.slane %v1175, 3
        %v1275 = vsel %vm1232, %v1272, %v1274
        %v1276 = vrot.slane %v1176, 3
        %v1277 = vsel %vm1232, %v1274, %v1276
        %v1278 = vrot.slane %v1177, 3
        %v1279 = vrot.slane %v1178, 3
        %v1280 = vsel %vm1232, %v1278, %v1279
        %v1281 = vrot.slane %v1179, 3
        %v1282 = vsel %vm1232, %v1279, %v1281
        %v1283 = vrot.slane %v1180, 3
        %v1284 = vsel %vm1232, %v1281, %v1283
        %v1285 = vrot.slane %v1181, 3
        %v1286 = vsel %vm1232, %v1283, %v1285
        %v1287 = vrot.slane %v1182, 3
        %v1288 = vrot.slane %v1183, 3
        %v1289 = vsel %vm1232, %v1287, %v1288
        %v1290 = vrot.slane %v1184, 3
        %v1291 = vsel %vm1232, %v1288, %v1290
        %v1292 = vrot.slane %v1185, 3
        %v1293 = vsel %vm1232, %v1290, %v1292
        %v1294 = vrot.slane %v1186, 3
        %v1295 = vsel %vm1232, %v1292, %v1294
        %v1296 = vrot.slane %v1187, 3
        %v1297 = vrot.slane %v1188, 3
        %v1298 = vsel %vm1232, %v1296, %v1297
        %v1299 = vrot.slane %v1189, 3
        %v1300 = vsel %vm1232, %v1297, %v1299
        %v1301 = vrot.slane %v1190, 3
        %v1302 = vsel %vm1232, %v1299, %v1301
        %v1303 = vrot.slane %v1191, 3
        %v1304 = vsel %vm1232, %v1301, %v1303
        %v1337 = vadd.f32 %v1116, %v1235
        %v1338 = vadd.f32 %v1117, %v1237
        %v1339 = vadd.f32 %v1118, %v1239
        %v1340 = vadd.f32 %v1119, %v1241
        %v1341 = vadd.f32 %v1120, %v1244
        %v1342 = vadd.f32 %v1121, %v1246
        %v1343 = vadd.f32 %v1122, %v1248
        %v1344 = vadd.f32 %v1123, %v1250
        %v1345 = vadd.f32 %v1124, %v1253
        %v1346 = vadd.f32 %v1125, %v1255
        %v1347 = vadd.f32 %v1126, %v1257
        %v1348 = vadd.f32 %v1127, %v1259
        %v1349 = vadd.f32 %v1128, %v1262
        %v1350 = vadd.f32 %v1129, %v1264
        %v1351 = vadd.f32 %v1130, %v1266
        %v1352 = vadd.f32 %v1131, %v1268
        %v1353 = vadd.f32 %v1132, %v1271
        %v1354 = vadd.f32 %v1133, %v1273
        %v1355 = vadd.f32 %v1134, %v1275
        %v1356 = vadd.f32 %v1135, %v1277
        %v1357 = vadd.f32 %v1136, %v1280
        %v1358 = vadd.f32 %v1137, %v1282
        %v1359 = vadd.f32 %v1138, %v1284
        %v1360 = vadd.f32 %v1139, %v1286
        %v1361 = vadd.f32 %v1140, %v1289
        %v1362 = vadd.f32 %v1141, %v1291
        %v1363 = vadd.f32 %v1142, %v1293
        %v1364 = vadd.f32 %v1143, %v1295
        %v1365 = vadd.f32 %v1144, %v1298
        %v1366 = vadd.f32 %v1145, %v1300
        %v1367 = vadd.f32 %v1146, %v1302
        %v1368 = vadd.f32 %v1147, %v1304
        %v1370 = vlaneseq
        %v1371 = vshrl.u32 %v1370, 7
        %v1372 = vsub.s32 0, %v1371
        %v1373 = vrot.slane %v435, %v1372
        %v1375 = vadd.f32 %v1337, %v1373
        %v1376 = vadd.f32 %v1338, %v1373
        %v1377 = vadd.f32 %v1339, %v1373
        %v1378 = vadd.f32 %v1340, %v1373
        %v1379 = vadd.f32 %v1341, %v1373
        %v1380 = vadd.f32 %v1342, %v1373
        %v1381 = vadd.f32 %v1343, %v1373
        %v1382 = vadd.f32 %v1344, %v1373
        %v1383 = vadd.f32 %v1345, %v1373
        %v1384 = vadd.f32 %v1346, %v1373
        %v1385 = vadd.f32 %v1347, %v1373
        %v1386 = vadd.f32 %v1348, %v1373
        %v1387 = vadd.f32 %v1349, %v1373
        %v1388 = vadd.f32 %v1350, %v1373
        %v1389 = vadd.f32 %v1351, %v1373
        %v1390 = vadd.f32 %v1352, %v1373
        %v1391 = vadd.f32 %v1353, %v1373
        %v1392 = vadd.f32 %v1354, %v1373
        %v1393 = vadd.f32 %v1355, %v1373
        %v1394 = vadd.f32 %v1356, %v1373
        %v1395 = vadd.f32 %v1357, %v1373
        %v1396 = vadd.f32 %v1358, %v1373
        %v1397 = vadd.f32 %v1359, %v1373
        %v1398 = vadd.f32 %v1360, %v1373
        %v1399 = vadd.f32 %v1361, %v1373
        %v1400 = vadd.f32 %v1362, %v1373
        %v1401 = vadd.f32 %v1363, %v1373
        %v1402 = vadd.f32 %v1364, %v1373
        %v1403 = vadd.f32 %v1365, %v1373
        %v1404 = vadd.f32 %v1366, %v1373
        %v1405 = vadd.f32 %v1367, %v1373
        %v1406 = vadd.f32 %v1368, %v1373
        %v1407 = vmax.f32 %v1375, 0.0
        %v1408 = vmax.f32 %v1376, 0.0
        %v1409 = vmax.f32 %v1377, 0.0
        %v1410 = vmax.f32 %v1378, 0.0
        %v1411 = vmax.f32 %v1379, 0.0
        %v1412 = vmax.f32 %v1380, 0.0
        %v1413 = vmax.f32 %v1381, 0.0
        %v1414 = vmax.f32 %v1382, 0.0
        %v1415 = vmax.f32 %v1383, 0.0
        %v1416 = vmax.f32 %v1384, 0.0
        %v1417 = vmax.f32 %v1385, 0.0
        %v1418 = vmax.f32 %v1386, 0.0
        %v1419 = vmax.f32 %v1387, 0.0
        %v1420 = vmax.f32 %v1388, 0.0
        %v1421 = vmax.f32 %v1389, 0.0
        %v1422 = vmax.f32 %v1390, 0.0
        %v1423 = vmax.f32 %v1391, 0.0
        %v1424 = vmax.f32 %v1392, 0.0
        %v1425 = vmax.f32 %v1393, 0.0
        %v1426 = vmax.f32 %v1394, 0.0
        %v1427 = vmax.f32 %v1395, 0.0
        %v1428 = vmax.f32 %v1396, 0.0
        %v1429 = vmax.f32 %v1397, 0.0
        %v1430 = vmax.f32 %v1398, 0.0
        %v1431 = vmax.f32 %v1399, 0.0
        %v1432 = vmax.f32 %v1400, 0.0
        %v1433 = vmax.f32 %v1401, 0.0
        %v1434 = vmax.f32 %v1402, 0.0
        %v1435 = vmax.f32 %v1403, 0.0
        %v1436 = vmax.f32 %v1404, 0.0
        %v1437 = vmax.f32 %v1405, 0.0
        %v1438 = vmax.f32 %v1406, 0.0
        %1439 = vst [vmem:[#allocation2 + $0x18] sm:$0xff] 0.0
        %1440 = vst [vmem:[#allocation2 + $0x38] sm:$0xff] 0.0
        %1441 = vst [vmem:[#allocation2 + $0x58] sm:$0xff] 0.0
        %1442 = vst [vmem:[#allocation2 + $0x78] sm:$0xff] 0.0
        %1443 = vst [vmem:[#allocation2 + $0x98] sm:$0xff] 0.0
        %1444 = vst [vmem:[#allocation2 + $0xb8] sm:$0xff] 0.0
        %1445 = vst [vmem:[#allocation2 + $0xd8] sm:$0xff] 0.0
        %1446 = vst [vmem:[#allocation2 + $0xf8] sm:$0xff] 0.0
        %vm1447 = vcmask 261120
        %1448 = vst.msk [vmem:[#allocation2] sm:$0xff] %vm1447, %v1407
        %1449 = vst.msk [vmem:[#allocation2 + $0x8] sm:$0xff] %vm1447, %v1408
        %1450 = vst.msk [vmem:[#allocation2 + $0x10] sm:$0xff] %vm1447, %v1409
        %1451 = vst.msk [vmem:[#allocation2 + $0x18] sm:$0xff] %vm1447, %v1410
        %1452 = vst.msk [vmem:[#allocation2 + $0x20] sm:$0xff] %vm1447, %v1411
        %1453 = vst.msk [vmem:[#allocation2 + $0x28] sm:$0xff] %vm1447, %v1412
        %1454 = vst.msk [vmem:[#allocation2 + $0x30] sm:$0xff] %vm1447, %v1413
        %1455 = vst.msk [vmem:[#allocation2 + $0x38] sm:$0xff] %vm1447, %v1414
        %1456 = vst.msk [vmem:[#allocation2 + $0x40] sm:$0xff] %vm1447, %v1415
        %1457 = vst.msk [vmem:[#allocation2 + $0x48] sm:$0xff] %vm1447, %v1416
        %1458 = vst.msk [vmem:[#allocation2 + $0x50] sm:$0xff] %vm1447, %v1417
        %1459 = vst.msk [vmem:[#allocation2 + $0x58] sm:$0xff] %vm1447, %v1418
        %1460 = vst.msk [vmem:[#allocation2 + $0x60] sm:$0xff] %vm1447, %v1419
        %1461 = vst.msk [vmem:[#allocation2 + $0x68] sm:$0xff] %vm1447, %v1420
        %1462 = vst.msk [vmem:[#allocation2 + $0x70] sm:$0xff] %vm1447, %v1421
        %1463 = vst.msk [vmem:[#allocation2 + $0x78] sm:$0xff] %vm1447, %v1422
        %1464 = vst.msk [vmem:[#allocation2 + $0x80] sm:$0xff] %vm1447, %v1423
        %1465 = vst.msk [vmem:[#allocation2 + $0x88] sm:$0xff] %vm1447, %v1424
        %1466 = vst.msk [vmem:[#allocation2 + $0x90] sm:$0xff] %vm1447, %v1425
        %1467 = vst.msk [vmem:[#allocation2 + $0x98] sm:$0xff] %vm1447, %v1426
        %1468 = vst.msk [vmem:[#allocation2 + $0xa0] sm:$0xff] %vm1447, %v1427
        %1469 = vst.msk [vmem:[#allocation2 + $0xa8] sm:$0xff] %vm1447, %v1428
        %1470 = vst.msk [vmem:[#allocation2 + $0xb0] sm:$0xff] %vm1447, %v1429
        %1471 = vst.msk [vmem:[#allocation2 + $0xb8] sm:$0xff] %vm1447, %v1430
        %1472 = vst.msk [vmem:[#allocation2 + $0xc0] sm:$0xff] %vm1447, %v1431
        %1473 = vst.msk [vmem:[#allocation2 + $0xc8] sm:$0xff] %vm1447, %v1432
        %1474 = vst.msk [vmem:[#allocation2 + $0xd0] sm:$0xff] %vm1447, %v1433
        %1475 = vst.msk [vmem:[#allocation2 + $0xd8] sm:$0xff] %vm1447, %v1434
        %1476 = vst.msk [vmem:[#allocation2 + $0xe0] sm:$0xff] %vm1447, %v1435
        %1477 = vst.msk [vmem:[#allocation2 + $0xe8] sm:$0xff] %vm1447, %v1436
        %1478 = vst.msk [vmem:[#allocation2 + $0xf0] sm:$0xff] %vm1447, %v1437
        %1479 = vst.msk [vmem:[#allocation2 + $0xf8] sm:$0xff] %vm1447, %v1438
        %1512 = vrot.lane.b32.xlu0 %v1407, 32
        %v1513 = vpop.permute.xlu0 %1512
        %1514 = vrot.lane.b32.xlu0 %v1408, 32
        %v1515 = vpop.permute.xlu0 %1514
        %1516 = vrot.lane.b32.xlu0 %v1409, 32
        %v1517 = vpop.permute.xlu0 %1516
        %1518 = vrot.lane.b32.xlu0 %v1410, 32
        %v1519 = vpop.permute.xlu0 %1518
        %1520 = vrot.lane.b32.xlu0 %v1411, 32
        %v1521 = vpop.permute.xlu0 %1520
        %1522 = vrot.lane.b32.xlu0 %v1412, 32
        %v1523 = vpop.permute.xlu0 %1522
        %1524 = vrot.lane.b32.xlu0 %v1413, 32
        %v1525 = vpop.permute.xlu0 %1524
        %1526 = vrot.lane.b32.xlu0 %v1414, 32
        %v1527 = vpop.permute.xlu0 %1526
        %1528 = vrot.lane.b32.xlu0 %v1415, 32
        %v1529 = vpop.permute.xlu0 %1528
        %1530 = vrot.lane.b32.xlu0 %v1416, 32
        %v1531 = vpop.permute.xlu0 %1530
        %1532 = vrot.lane.b32.xlu0 %v1417, 32
        %v1533 = vpop.permute.xlu0 %1532
        %1534 = vrot.lane.b32.xlu0 %v1418, 32
        %v1535 = vpop.permute.xlu0 %1534
        %1536 = vrot.lane.b32.xlu0 %v1419, 32
        %v1537 = vpop.permute.xlu0 %1536
        %1538 = vrot.lane.b32.xlu0 %v1420, 32
        %v1539 = vpop.permute.xlu0 %1538
        %1540 = vrot.lane.b32.xlu0 %v1421, 32
        %v1541 = vpop.permute.xlu0 %1540
        %1542 = vrot.lane.b32.xlu0 %v1422, 32
        %v1543 = vpop.permute.xlu0 %1542
        %1544 = vrot.lane.b32.xlu0 %v1423, 32
        %v1545 = vpop.permute.xlu0 %1544
        %1546 = vrot.lane.b32.xlu0 %v1424, 32
        %v1547 = vpop.permute.xlu0 %1546
        %1548 = vrot.lane.b32.xlu0 %v1425, 32
        %v1549 = vpop.permute.xlu0 %1548
        %1550 = vrot.lane.b32.xlu0 %v1426, 32
        %v1551 = vpop.permute.xlu0 %1550
        %1552 = vrot.lane.b32.xlu0 %v1427, 32
        %v1553 = vpop.permute.xlu0 %1552
        %1554 = vrot.lane.b32.xlu0 %v1428, 32
        %v1555 = vpop.permute.xlu0 %1554
        %1556 = vrot.lane.b32.xlu0 %v1429, 32
        %v1557 = vpop.permute.xlu0 %1556
        %1558 = vrot.lane.b32.xlu0 %v1430, 32
        %v1559 = vpop.permute.xlu0 %1558
        %1560 = vrot.lane.b32.xlu0 %v1431, 32
        %v1561 = vpop.permute.xlu0 %1560
        %1562 = vrot.lane.b32.xlu0 %v1432, 32
        %v1563 = vpop.permute.xlu0 %1562
        %1564 = vrot.lane.b32.xlu0 %v1433, 32
        %v1565 = vpop.permute.xlu0 %1564
        %1566 = vrot.lane.b32.xlu0 %v1434, 32
        %v1567 = vpop.permute.xlu0 %1566
        %1568 = vrot.lane.b32.xlu0 %v1435, 32
        %v1569 = vpop.permute.xlu0 %1568
        %1570 = vrot.lane.b32.xlu0 %v1436, 32
        %v1571 = vpop.permute.xlu0 %1570
        %1572 = vrot.lane.b32.xlu0 %v1437, 32
        %v1573 = vpop.permute.xlu0 %1572
        %1574 = vrot.lane.b32.xlu0 %v1438, 32
        %v1575 = vpop.permute.xlu0 %1574
        %vm1608 = vcmask 523521
        %1609 = vst.msk [vmem:[#allocation2 - $0x1] sm:$0xfe] %vm1608, %v1513
        %vm1610 = vcmask 523520
        %1611 = vst.msk [vmem:[#allocation2 + $0x7] sm:$0xff] %vm1610, %v1515
        %1612 = vst.msk [vmem:[#allocation2 + $0xf] sm:$0xff] %vm1610, %v1517
        %1613 = vst.msk [vmem:[#allocation2 + $0x17] sm:$0xff] %vm1610, %v1519
        %1614 = vst.msk [vmem:[#allocation2 + $0x1f] sm:$0xfe] %vm1608, %v1521
        %1615 = vst.msk [vmem:[#allocation2 + $0x27] sm:$0xff] %vm1610, %v1523
        %1616 = vst.msk [vmem:[#allocation2 + $0x2f] sm:$0xff] %vm1610, %v1525
        %1617 = vst.msk [vmem:[#allocation2 + $0x37] sm:$0xff] %vm1610, %v1527
        %1618 = vst.msk [vmem:[#allocation2 + $0x3f] sm:$0xfe] %vm1608, %v1529
        %1619 = vst.msk [vmem:[#allocation2 + $0x47] sm:$0xff] %vm1610, %v1531
        %1620 = vst.msk [vmem:[#allocation2 + $0x4f] sm:$0xff] %vm1610, %v1533
        %1621 = vst.msk [vmem:[#allocation2 + $0x57] sm:$0xff] %vm1610, %v1535
        %1622 = vst.msk [vmem:[#allocation2 + $0x5f] sm:$0xfe] %vm1608, %v1537
        %1623 = vst.msk [vmem:[#allocation2 + $0x67] sm:$0xff] %vm1610, %v1539
        %1624 = vst.msk [vmem:[#allocation2 + $0x6f] sm:$0xff] %vm1610, %v1541
        %1625 = vst.msk [vmem:[#allocation2 + $0x77] sm:$0xff] %vm1610, %v1543
        %1626 = vst.msk [vmem:[#allocation2 + $0x7f] sm:$0xfe] %vm1608, %v1545
        %1627 = vst.msk [vmem:[#allocation2 + $0x87] sm:$0xff] %vm1610, %v1547
        %1628 = vst.msk [vmem:[#allocation2 + $0x8f] sm:$0xff] %vm1610, %v1549
        %1629 = vst.msk [vmem:[#allocation2 + $0x97] sm:$0xff] %vm1610, %v1551
        %1630 = vst.msk [vmem:[#allocation2 + $0x9f] sm:$0xfe] %vm1608, %v1553
        %1631 = vst.msk [vmem:[#allocation2 + $0xa7] sm:$0xff] %vm1610, %v1555
        %1632 = vst.msk [vmem:[#allocation2 + $0xaf] sm:$0xff] %vm1610, %v1557
        %1633 = vst.msk [vmem:[#allocation2 + $0xb7] sm:$0xff] %vm1610, %v1559
        %1634 = vst.msk [vmem:[#allocation2 + $0xbf] sm:$0xfe] %vm1608, %v1561
        %1635 = vst.msk [vmem:[#allocation2 + $0xc7] sm:$0xff] %vm1610, %v1563
        %1636 = vst.msk [vmem:[#allocation2 + $0xcf] sm:$0xff] %vm1610, %v1565
        %1637 = vst.msk [vmem:[#allocation2 + $0xd7] sm:$0xff] %vm1610, %v1567
        %1638 = vst.msk [vmem:[#allocation2 + $0xdf] sm:$0xfe] %vm1608, %v1569
        %1639 = vst.msk [vmem:[#allocation2 + $0xe7] sm:$0xff] %vm1610, %v1571
        %1640 = vst.msk [vmem:[#allocation2 + $0xef] sm:$0xff] %vm1610, %v1573
        %1641 = vst.msk [vmem:[#allocation2 + $0xf7] sm:$0xff] %vm1610, %v1575
        %1642 = vrot.lane.b32.xlu0 %v1407, 64
        %v1643 = vpop.permute.xlu0 %1642
        %1644 = vrot.lane.b32.xlu0 %v1408, 64
        %v1645 = vpop.permute.xlu0 %1644
        %1646 = vrot.lane.b32.xlu0 %v1409, 64
        %v1647 = vpop.permute.xlu0 %1646
        %1648 = vrot.lane.b32.xlu0 %v1410, 64
        %v1649 = vpop.permute.xlu0 %1648
        %1650 = vrot.lane.b32.xlu0 %v1411, 64
        %v1651 = vpop.permute.xlu0 %1650
        %1652 = vrot.lane.b32.xlu0 %v1412, 64
        %v1653 = vpop.permute.xlu0 %1652
        %1654 = vrot.lane.b32.xlu0 %v1413, 64
        %v1655 = vpop.permute.xlu0 %1654
        %1656 = vrot.lane.b32.xlu0 %v1414, 64
        %v1657 = vpop.permute.xlu0 %1656
        %1658 = vrot.lane.b32.xlu0 %v1415, 64
        %v1659 = vpop.permute.xlu0 %1658
        %1660 = vrot.lane.b32.xlu0 %v1416, 64
        %v1661 = vpop.permute.xlu0 %1660
        %1662 = vrot.lane.b32.xlu0 %v1417, 64
        %v1663 = vpop.permute.xlu0 %1662
        %1664 = vrot.lane.b32.xlu0 %v1418, 64
        %v1665 = vpop.permute.xlu0 %1664
        %1666 = vrot.lane.b32.xlu0 %v1419, 64
        %v1667 = vpop.permute.xlu0 %1666
        %1668 = vrot.lane.b32.xlu0 %v1420, 64
        %v1669 = vpop.permute.xlu0 %1668
        %1670 = vrot.lane.b32.xlu0 %v1421, 64
        %v1671 = vpop.permute.xlu0 %1670
        %1672 = vrot.lane.b32.xlu0 %v1422, 64
        %v1673 = vpop.permute.xlu0 %1672
        %1674 = vrot.lane.b32.xlu0 %v1423, 64
        %v1675 = vpop.permute.xlu0 %1674
        %1676 = vrot.lane.b32.xlu0 %v1424, 64
        %v1677 = vpop.permute.xlu0 %1676
        %1678 = vrot.lane.b32.xlu0 %v1425, 64
        %v1679 = vpop.permute.xlu0 %1678
        %1680 = vrot.lane.b32.xlu0 %v1426, 64
        %v1681 = vpop.permute.xlu0 %1680
        %1682 = vrot.lane.b32.xlu0 %v1427, 64
        %v1683 = vpop.permute.xlu0 %1682
        %1684 = vrot.lane.b32.xlu0 %v1428, 64
        %v1685 = vpop.permute.xlu0 %1684
        %1686 = vrot.lane.b32.xlu0 %v1429, 64
        %v1687 = vpop.permute.xlu0 %1686
        %1688 = vrot.lane.b32.xlu0 %v1430, 64
        %v1689 = vpop.permute.xlu0 %1688
        %1690 = vrot.lane.b32.xlu0 %v1431, 64
        %v1691 = vpop.permute.xlu0 %1690
        %1692 = vrot.lane.b32.xlu0 %v1432, 64
        %v1693 = vpop.permute.xlu0 %1692
        %1694 = vrot.lane.b32.xlu0 %v1433, 64
        %v1695 = vpop.permute.xlu0 %1694
        %1696 = vrot.lane.b32.xlu0 %v1434, 64
        %v1697 = vpop.permute.xlu0 %1696
        %1698 = vrot.lane.b32.xlu0 %v1435, 64
        %v1699 = vpop.permute.xlu0 %1698
        %1700 = vrot.lane.b32.xlu0 %v1436, 64
        %v1701 = vpop.permute.xlu0 %1700
        %1702 = vrot.lane.b32.xlu0 %v1437, 64
        %v1703 = vpop.permute.xlu0 %1702
        %1704 = vrot.lane.b32.xlu0 %v1438, 64
        %v1705 = vpop.permute.xlu0 %1704
        %vm1738 = vcmask 785922
        %1739 = vst.msk [vmem:[#allocation2 - $0x2] sm:$0xfc] %vm1738, %v1643
        %vm1740 = vcmask 785920
        %1741 = vst.msk [vmem:[#allocation2 + $0x6] sm:$0xff] %vm1740, %v1645
        %1742 = vst.msk [vmem:[#allocation2 + $0xe] sm:$0xff] %vm1740, %v1647
        %1743 = vst.msk [vmem:[#allocation2 + $0x16] sm:$0xff] %vm1740, %v1649
        %1744 = vst.msk [vmem:[#allocation2 + $0x1e] sm:$0xfc] %vm1738, %v1651
        %1745 = vst.msk [vmem:[#allocation2 + $0x26] sm:$0xff] %vm1740, %v1653
        %1746 = vst.msk [vmem:[#allocation2 + $0x2e] sm:$0xff] %vm1740, %v1655
        %1747 = vst.msk [vmem:[#allocation2 + $0x36] sm:$0xff] %vm1740, %v1657
        %1748 = vst.msk [vmem:[#allocation2 + $0x3e] sm:$0xfc] %vm1738, %v1659
        %1749 = vst.msk [vmem:[#allocation2 + $0x46] sm:$0xff] %vm1740, %v1661
        %1750 = vst.msk [vmem:[#allocation2 + $0x4e] sm:$0xff] %vm1740, %v1663
        %1751 = vst.msk [vmem:[#allocation2 + $0x56] sm:$0xff] %vm1740, %v1665
        %1752 = vst.msk [vmem:[#allocation2 + $0x5e] sm:$0xfc] %vm1738, %v1667
        %1753 = vst.msk [vmem:[#allocation2 + $0x66] sm:$0xff] %vm1740, %v1669
        %1754 = vst.msk [vmem:[#allocation2 + $0x6e] sm:$0xff] %vm1740, %v1671
        %1755 = vst.msk [vmem:[#allocation2 + $0x76] sm:$0xff] %vm1740, %v1673
        %1756 = vst.msk [vmem:[#allocation2 + $0x7e] sm:$0xfc] %vm1738, %v1675
        %1757 = vst.msk [vmem:[#allocation2 + $0x86] sm:$0xff] %vm1740, %v1677
        %1758 = vst.msk [vmem:[#allocation2 + $0x8e] sm:$0xff] %vm1740, %v1679
        %1759 = vst.msk [vmem:[#allocation2 + $0x96] sm:$0xff] %vm1740, %v1681
        %1760 = vst.msk [vmem:[#allocation2 + $0x9e] sm:$0xfc] %vm1738, %v1683
        %1761 = vst.msk [vmem:[#allocation2 + $0xa6] sm:$0xff] %vm1740, %v1685
        %1762 = vst.msk [vmem:[#allocation2 + $0xae] sm:$0xff] %vm1740, %v1687
        %1763 = vst.msk [vmem:[#allocation2 + $0xb6] sm:$0xff] %vm1740, %v1689
        %1764 = vst.msk [vmem:[#allocation2 + $0xbe] sm:$0xfc] %vm1738, %v1691
        %1765 = vst.msk [vmem:[#allocation2 + $0xc6] sm:$0xff] %vm1740, %v1693
        %1766 = vst.msk [vmem:[#allocation2 + $0xce] sm:$0xff] %vm1740, %v1695
        %1767 = vst.msk [vmem:[#allocation2 + $0xd6] sm:$0xff] %vm1740, %v1697
        %1768 = vst.msk [vmem:[#allocation2 + $0xde] sm:$0xfc] %vm1738, %v1699
        %1769 = vst.msk [vmem:[#allocation2 + $0xe6] sm:$0xff] %vm1740, %v1701
        %1770 = vst.msk [vmem:[#allocation2 + $0xee] sm:$0xff] %vm1740, %v1703
        %1771 = vst.msk [vmem:[#allocation2 + $0xf6] sm:$0xff] %vm1740, %v1705
        %1772 = vrot.lane.b32.xlu0 %v1407, 96
        %v1773 = vpop.permute.xlu0 %1772
        %1774 = vrot.lane.b32.xlu0 %v1408, 96
        %v1775 = vpop.permute.xlu0 %1774
        %1776 = vrot.lane.b32.xlu0 %v1409, 96
        %v1777 = vpop.permute.xlu0 %1776
        %1778 = vrot.lane.b32.xlu0 %v1410, 96
        %v1779 = vpop.permute.xlu0 %1778
        %1780 = vrot.lane.b32.xlu0 %v1411, 96
        %v1781 = vpop.permute.xlu0 %1780
        %1782 = vrot.lane.b32.xlu0 %v1412, 96
        %v1783 = vpop.permute.xlu0 %1782
        %1784 = vrot.lane.b32.xlu0 %v1413, 96
        %v1785 = vpop.permute.xlu0 %1784
        %1786 = vrot.lane.b32.xlu0 %v1414, 96
        %v1787 = vpop.permute.xlu0 %1786
        %1788 = vrot.lane.b32.xlu0 %v1415, 96
        %v1789 = vpop.permute.xlu0 %1788
        %1790 = vrot.lane.b32.xlu0 %v1416, 96
        %v1791 = vpop.permute.xlu0 %1790
        %1792 = vrot.lane.b32.xlu0 %v1417, 96
        %v1793 = vpop.permute.xlu0 %1792
        %1794 = vrot.lane.b32.xlu0 %v1418, 96
        %v1795 = vpop.permute.xlu0 %1794
        %1796 = vrot.lane.b32.xlu0 %v1419, 96
        %v1797 = vpop.permute.xlu0 %1796
        %1798 = vrot.lane.b32.xlu0 %v1420, 96
        %v1799 = vpop.permute.xlu0 %1798
        %1800 = vrot.lane.b32.xlu0 %v1421, 96
        %v1801 = vpop.permute.xlu0 %1800
        %1802 = vrot.lane.b32.xlu0 %v1422, 96
        %v1803 = vpop.permute.xlu0 %1802
        %1804 = vrot.lane.b32.xlu0 %v1423, 96
        %v1805 = vpop.permute.xlu0 %1804
        %1806 = vrot.lane.b32.xlu0 %v1424, 96
        %v1807 = vpop.permute.xlu0 %1806
        %1808 = vrot.lane.b32.xlu0 %v1425, 96
        %v1809 = vpop.permute.xlu0 %1808
        %1810 = vrot.lane.b32.xlu0 %v1426, 96
        %v1811 = vpop.permute.xlu0 %1810
        %1812 = vrot.lane.b32.xlu0 %v1427, 96
        %v1813 = vpop.permute.xlu0 %1812
        %1814 = vrot.lane.b32.xlu0 %v1428, 96
        %v1815 = vpop.permute.xlu0 %1814
        %1816 = vrot.lane.b32.xlu0 %v1429, 96
        %v1817 = vpop.permute.xlu0 %1816
        %1818 = vrot.lane.b32.xlu0 %v1430, 96
        %v1819 = vpop.permute.xlu0 %1818
        %1820 = vrot.lane.b32.xlu0 %v1431, 96
        %v1821 = vpop.permute.xlu0 %1820
        %1822 = vrot.lane.b32.xlu0 %v1432, 96
        %v1823 = vpop.permute.xlu0 %1822
        %1824 = vrot.lane.b32.xlu0 %v1433, 96
        %v1825 = vpop.permute.xlu0 %1824
        %1826 = vrot.lane.b32.xlu0 %v1434, 96
        %v1827 = vpop.permute.xlu0 %1826
        %1828 = vrot.lane.b32.xlu0 %v1435, 96
        %v1829 = vpop.permute.xlu0 %1828
        %1830 = vrot.lane.b32.xlu0 %v1436, 96
        %v1831 = vpop.permute.xlu0 %1830
        %1832 = vrot.lane.b32.xlu0 %v1437, 96
        %v1833 = vpop.permute.xlu0 %1832
        %1834 = vrot.lane.b32.xlu0 %v1438, 96
        %v1835 = vpop.permute.xlu0 %1834
        %vm1868 = vcmask 1048323
        %1869 = vst.msk [vmem:[#allocation2 - $0x3] sm:$0xf8] %vm1868, %v1773
        %vm1870 = vcmask 1048320
        %1871 = vst.msk [vmem:[#allocation2 + $0x5] sm:$0xff] %vm1870, %v1775
        %1872 = vst.msk [vmem:[#allocation2 + $0xd] sm:$0xff] %vm1870, %v1777
        %1873 = vst.msk [vmem:[#allocation2 + $0x15] sm:$0xff] %vm1870, %v1779
        %1874 = vst.msk [vmem:[#allocation2 + $0x1d] sm:$0xf8] %vm1868, %v1781
        %1875 = vst.msk [vmem:[#allocation2 + $0x25] sm:$0xff] %vm1870, %v1783
        %1876 = vst.msk [vmem:[#allocation2 + $0x2d] sm:$0xff] %vm1870, %v1785
        %1877 = vst.msk [vmem:[#allocation2 + $0x35] sm:$0xff] %vm1870, %v1787
        %1878 = vst.msk [vmem:[#allocation2 + $0x3d] sm:$0xf8] %vm1868, %v1789
        %1879 = vst.msk [vmem:[#allocation2 + $0x45] sm:$0xff] %vm1870, %v1791
        %1880 = vst.msk [vmem:[#allocation2 + $0x4d] sm:$0xff] %vm1870, %v1793
        %1881 = vst.msk [vmem:[#allocation2 + $0x55] sm:$0xff] %vm1870, %v1795
        %1882 = vst.msk [vmem:[#allocation2 + $0x5d] sm:$0xf8] %vm1868, %v1797
        %1883 = vst.msk [vmem:[#allocation2 + $0x65] sm:$0xff] %vm1870, %v1799
        %1884 = vst.msk [vmem:[#allocation2 + $0x6d] sm:$0xff] %vm1870, %v1801
        %1885 = vst.msk [vmem:[#allocation2 + $0x75] sm:$0xff] %vm1870, %v1803
        %1886 = vst.msk [vmem:[#allocation2 + $0x7d] sm:$0xf8] %vm1868, %v1805
        %1887 = vst.msk [vmem:[#allocation2 + $0x85] sm:$0xff] %vm1870, %v1807
        %1888 = vst.msk [vmem:[#allocation2 + $0x8d] sm:$0xff] %vm1870, %v1809
        %1889 = vst.msk [vmem:[#allocation2 + $0x95] sm:$0xff] %vm1870, %v1811
        %1890 = vst.msk [vmem:[#allocation2 + $0x9d] sm:$0xf8] %vm1868, %v1813
        %1891 = vst.msk [vmem:[#allocation2 + $0xa5] sm:$0xff] %vm1870, %v1815
        %1892 = vst.msk [vmem:[#allocation2 + $0xad] sm:$0xff] %vm1870, %v1817
        %1893 = vst.msk [vmem:[#allocation2 + $0xb5] sm:$0xff] %vm1870, %v1819
        %1894 = vst.msk [vmem:[#allocation2 + $0xbd] sm:$0xf8] %vm1868, %v1821
        %1895 = vst.msk [vmem:[#allocation2 + $0xc5] sm:$0xff] %vm1870, %v1823
        %1896 = vst.msk [vmem:[#allocation2 + $0xcd] sm:$0xff] %vm1870, %v1825
        %1897 = vst.msk [vmem:[#allocation2 + $0xd5] sm:$0xff] %vm1870, %v1827
        %1898 = vst.msk [vmem:[#allocation2 + $0xdd] sm:$0xf8] %vm1868, %v1829
        %1899 = vst.msk [vmem:[#allocation2 + $0xe5] sm:$0xff] %vm1870, %v1831
        %1900 = vst.msk [vmem:[#allocation2 + $0xed] sm:$0xff] %vm1870, %v1833
        %1901 = vst.msk [vmem:[#allocation2 + $0xf5] sm:$0xff] %vm1870, %v1835
        %v1902 = vld [vmem:[#allocation2] sm:$0xff]
        %v1903 = vld [vmem:[#allocation2 + $0x8] sm:$0xff]
        %v1904 = vld [vmem:[#allocation2 + $0x10] sm:$0xff]
        %v1905 = vld [vmem:[#allocation2 + $0x18] sm:$0xff]
        %v1906 = vld [vmem:[#allocation2 + $0x20] sm:$0xff]
        %v1907 = vld [vmem:[#allocation2 + $0x28] sm:$0xff]
        %v1908 = vld [vmem:[#allocation2 + $0x30] sm:$0xff]
        %v1909 = vld [vmem:[#allocation2 + $0x38] sm:$0xff]
        %v1910 = vld [vmem:[#allocation2 + $0x40] sm:$0xff]
        %v1911 = vld [vmem:[#allocation2 + $0x48] sm:$0xff]
        %v1912 = vld [vmem:[#allocation2 + $0x50] sm:$0xff]
        %v1913 = vld [vmem:[#allocation2 + $0x58] sm:$0xff]
        %v1914 = vld [vmem:[#allocation2 + $0x60] sm:$0xff]
        %v1915 = vld [vmem:[#allocation2 + $0x68] sm:$0xff]
        %v1916 = vld [vmem:[#allocation2 + $0x70] sm:$0xff]
        %v1917 = vld [vmem:[#allocation2 + $0x78] sm:$0xff]
        %v1918 = vld [vmem:[#allocation2 + $0x80] sm:$0xff]
        %v1919 = vld [vmem:[#allocation2 + $0x88] sm:$0xff]
        %v1920 = vld [vmem:[#allocation2 + $0x90] sm:$0xff]
        %v1921 = vld [vmem:[#allocation2 + $0x98] sm:$0xff]
        %v1922 = vld [vmem:[#allocation2 + $0xa0] sm:$0xff]
        %v1923 = vld [vmem:[#allocation2 + $0xa8] sm:$0xff]
        %v1924 = vld [vmem:[#allocation2 + $0xb0] sm:$0xff]
        %v1925 = vld [vmem:[#allocation2 + $0xb8] sm:$0xff]
        %v1926 = vld [vmem:[#allocation2 + $0xc0] sm:$0xff]
        %v1927 = vld [vmem:[#allocation2 + $0xc8] sm:$0xff]
        %v1928 = vld [vmem:[#allocation2 + $0xd0] sm:$0xff]
        %v1929 = vld [vmem:[#allocation2 + $0xd8] sm:$0xff]
        %v1930 = vld [vmem:[#allocation2 + $0xe0] sm:$0xff]
        %v1931 = vld [vmem:[#allocation2 + $0xe8] sm:$0xff]
        %v1932 = vld [vmem:[#allocation2 + $0xf0] sm:$0xff]
        %v1933 = vld [vmem:[#allocation2 + $0xf8] sm:$0xff]
        %v1934 = vpack.c.bf16 %v1903, %v1902
        %v1935 = vpack.c.bf16 %v1905, %v1904
        %v1936 = vpack.c.bf16 %v1907, %v1906
        %v1937 = vpack.c.bf16 %v1909, %v1908
        %v1938 = vpack.c.bf16 %v1911, %v1910
        %v1939 = vpack.c.bf16 %v1913, %v1912
        %v1940 = vpack.c.bf16 %v1915, %v1914
        %v1941 = vpack.c.bf16 %v1917, %v1916
        %v1942 = vpack.c.bf16 %v1919, %v1918
        %v1943 = vpack.c.bf16 %v1921, %v1920
        %v1944 = vpack.c.bf16 %v1923, %v1922
        %v1945 = vpack.c.bf16 %v1925, %v1924
        %v1946 = vpack.c.bf16 %v1927, %v1926
        %v1947 = vpack.c.bf16 %v1929, %v1928
        %v1948 = vpack.c.bf16 %v1931, %v1930
        %v1949 = vpack.c.bf16 %v1933, %v1932
        %v1951 = vlaneseq
        %v1952 = vshrl.u32 %v1951, 7
        %v1953 = vsub.s32 0, %v1952
        %v1954 = vrot.slane %v452, %v1953
        %v1972 = vunpack.c.l.b16 %v436
        %v1973 = vunpack.c.l.b16 %v437
        %v1974 = vunpack.c.l.b16 %v438
        %v1975 = vunpack.c.l.b16 %v439
        %v1976 = vunpack.c.l.b16 %v440
        %v1977 = vunpack.c.l.b16 %v441
        %v1978 = vunpack.c.l.b16 %v442
        %v1979 = vunpack.c.l.b16 %v443
        %v1980 = vunpack.c.l.b16 %v444
        %v1981 = vunpack.c.l.b16 %v445
        %v1982 = vunpack.c.l.b16 %v446
        %v1983 = vunpack.c.l.b16 %v447
        %v1984 = vunpack.c.l.b16 %v448
        %v1985 = vunpack.c.l.b16 %v449
        %v1986 = vunpack.c.l.b16 %v450
        %v1987 = vunpack.c.l.b16 %v451
        %v1988 = vpack.c.b16 %v1973, %v1972
        %v1989 = vpack.c.b16 %v1975, %v1974
        %v1990 = vpack.c.b16 %v1977, %v1976
        %v1991 = vpack.c.b16 %v1979, %v1978
        %v1992 = vpack.c.b16 %v1981, %v1980
        %v1993 = vpack.c.b16 %v1983, %v1982
        %v1994 = vpack.c.b16 %v1985, %v1984
        %v1995 = vpack.c.b16 %v1987, %v1986
        %2004 = vmatprep.subr.bf16.mxu0 0
        %2005 = vmatpush1.bf16.msra.mxu0 %v1988
        %2006 = vmatprep.subr.bf16.mxu0 0
        %2007 = vmatpush1.bf16.msra.mxu0 %v1989
        %2008 = vmatprep.subr.bf16.mxu0 0
        %2009 = vmatpush1.bf16.msra.mxu0 %v1990
        %2010 = vmatprep.subr.bf16.mxu0 0
        %2011 = vmatpush1.bf16.msra.mxu0 %v1991
        %2012 = vmatprep.subr.bf16.mxu0 0
        %2013 = vmatpush1.bf16.msra.mxu0 %v1992
        %2014 = vmatprep.subr.bf16.mxu0 0
        %2015 = vmatpush1.bf16.msra.mxu0 %v1993
        %2016 = vmatprep.subr.bf16.mxu0 0
        %2017 = vmatpush1.bf16.msra.mxu0 %v1994
        %2018 = vmatprep.subr.bf16.mxu0 0
        %2019 = vmatpush1.bf16.msra.mxu0 %v1995
        %2020 = vmatprep.subr.bf16.mxu0 0
        %2021 = vmatpush1.bf16.msra.mxu0 0
        %2022 = vmatprep.subr.bf16.mxu0 0
        %2023 = vmatpush1.bf16.msra.mxu0 0
        %2024 = vmatprep.subr.bf16.mxu0 0
        %2025 = vmatpush1.bf16.msra.mxu0 0
        %2026 = vmatprep.subr.bf16.mxu0 0
        %2027 = vmatpush1.bf16.msra.mxu0 0
        %2028 = vmatprep.subr.bf16.mxu0 0
        %2029 = vmatpush1.bf16.msra.mxu0 0
        %2030 = vmatprep.subr.bf16.mxu0 0
        %2031 = vmatpush1.bf16.msra.mxu0 0
        %2032 = vmatprep.subr.bf16.mxu0 0
        %2033 = vmatpush1.bf16.msra.mxu0 0
        %2034 = vmatprep.subr.bf16.mxu0 0
        %2035 = vmatpush1.bf16.msra.mxu0 0
        %2036 = vmatprep.mubr.bf16.mxu0 0
        %2037 = vmatmul.mubr.bf16.gmra.mrb[0].mxu0 %v1934
        %v2038 = vpop.f32.mrb[0].mxu0
        %v2039 = vadd.f32 %v1954, %v2038
        %v2040 = vpop.f32.mrb[0].mxu0
        %v2041 = vpop.f32.mrb[0].mxu0
        %v2042 = vadd.f32 %v1954, %v2041
        %v2043 = vpop.f32.mrb[0].mxu0
        %2044 = vmatprep.mubr.bf16.mxu0 0
        %2045 = vmatmul.mubr.bf16.gmra.mrb[0].mxu0 %v1935
        %v2046 = vpop.f32.mrb[0].mxu0
        %v2047 = vadd.f32 %v1954, %v2046
        %v2048 = vpop.f32.mrb[0].mxu0
        %v2049 = vpop.f32.mrb[0].mxu0
        %v2050 = vadd.f32 %v1954, %v2049
        %v2051 = vpop.f32.mrb[0].mxu0
        %2052 = vmatprep.mubr.bf16.mxu0 0
        %2053 = vmatmul.mubr.bf16.gmra.mrb[0].mxu0 %v1936
        %v2054 = vpop.f32.mrb[0].mxu0
        %v2055 = vadd.f32 %v1954, %v2054
        %v2056 = vpop.f32.mrb[0].mxu0
        %v2057 = vpop.f32.mrb[0].mxu0
        %v2058 = vadd.f32 %v1954, %v2057
        %v2059 = vpop.f32.mrb[0].mxu0
        %2060 = vmatprep.mubr.bf16.mxu0 0
        %2061 = vmatmul.mubr.bf16.gmra.mrb[0].mxu0 %v1937
        %v2062 = vpop.f32.mrb[0].mxu0
        %v2063 = vadd.f32 %v1954, %v2062
        %v2064 = vpop.f32.mrb[0].mxu0
        %v2065 = vpop.f32.mrb[0].mxu0
        %v2066 = vadd.f32 %v1954, %v2065
        %v2067 = vpop.f32.mrb[0].mxu0
        %2068 = vmatprep.mubr.bf16.mxu0 0
        %2069 = vmatmul.mubr.bf16.gmra.mrb[0].mxu0 %v1938
        %v2070 = vpop.f32.mrb[0].mxu0
        %v2071 = vadd.f32 %v1954, %v2070
        %v2072 = vpop.f32.mrb[0].mxu0
        %v2073 = vpop.f32.mrb[0].mxu0
        %v2074 = vadd.f32 %v1954, %v2073
        %v2075 = vpop.f32.mrb[0].mxu0
        %2076 = vmatprep.mubr.bf16.mxu0 0
        %2077 = vmatmul.mubr.bf16.gmra.mrb[0].mxu0 %v1939
        %v2078 = vpop.f32.mrb[0].mxu0
        %v2079 = vadd.f32 %v1954, %v2078
        %v2080 = vpop.f32.mrb[0].mxu0
        %v2081 = vpop.f32.mrb[0].mxu0
        %v2082 = vadd.f32 %v1954, %v2081
        %v2083 = vpop.f32.mrb[0].mxu0
        %2084 = vmatprep.mubr.bf16.mxu0 0
        %2085 = vmatmul.mubr.bf16.gmra.mrb[0].mxu0 %v1940
        %v2086 = vpop.f32.mrb[0].mxu0
        %v2087 = vadd.f32 %v1954, %v2086
        %v2088 = vpop.f32.mrb[0].mxu0
        %v2089 = vpop.f32.mrb[0].mxu0
        %v2090 = vadd.f32 %v1954, %v2089
        %v2091 = vpop.f32.mrb[0].mxu0
        %2092 = vmatprep.mubr.bf16.mxu0 0
        %2093 = vmatmul.mubr.bf16.gmra.mrb[0].mxu0 %v1941
        %v2094 = vpop.f32.mrb[0].mxu0
        %v2095 = vadd.f32 %v1954, %v2094
        %v2096 = vpop.f32.mrb[0].mxu0
        %v2097 = vpop.f32.mrb[0].mxu0
        %v2098 = vadd.f32 %v1954, %v2097
        %v2099 = vpop.f32.mrb[0].mxu0
        %2100 = vmatprep.mubr.bf16.mxu0 0
        %2101 = vmatmul.mubr.bf16.gmra.mrb[0].mxu0 %v1942
        %v2102 = vpop.f32.mrb[0].mxu0
        %v2103 = vadd.f32 %v1954, %v2102
        %v2104 = vpop.f32.mrb[0].mxu0
        %v2105 = vpop.f32.mrb[0].mxu0
        %v2106 = vadd.f32 %v1954, %v2105
        %v2107 = vpop.f32.mrb[0].mxu0
        %2108 = vmatprep.mubr.bf16.mxu0 0
        %2109 = vmatmul.mubr.bf16.gmra.mrb[0].mxu0 %v1943
        %v2110 = vpop.f32.mrb[0].mxu0
        %v2111 = vadd.f32 %v1954, %v2110
        %v2112 = vpop.f32.mrb[0].mxu0
        %v2113 = vpop.f32.mrb[0].mxu0
        %v2114 = vadd.f32 %v1954, %v2113
        %v2115 = vpop.f32.mrb[0].mxu0
        %2116 = vmatprep.mubr.bf16.mxu0 0
        %2117 = vmatmul.mubr.bf16.gmra.mrb[0].mxu0 %v1944
        %v2118 = vpop.f32.mrb[0].mxu0
        %v2119 = vadd.f32 %v1954, %v2118
        %v2120 = vpop.f32.mrb[0].mxu0
        %v2121 = vpop.f32.mrb[0].mxu0
        %v2122 = vadd.f32 %v1954, %v2121
        %v2123 = vpop.f32.mrb[0].mxu0
        %2124 = vmatprep.mubr.bf16.mxu0 0
        %2125 = vmatmul.mubr.bf16.gmra.mrb[0].mxu0 %v1945
        %v2126 = vpop.f32.mrb[0].mxu0
        %v2127 = vadd.f32 %v1954, %v2126
        %v2128 = vpop.f32.mrb[0].mxu0
        %v2129 = vpop.f32.mrb[0].mxu0
        %v2130 = vadd.f32 %v1954, %v2129
        %v2131 = vpop.f32.mrb[0].mxu0
        %2132 = vmatprep.mubr.bf16.mxu0 0
        %2133 = vmatmul.mubr.bf16.gmra.mrb[0].mxu0 %v1946
        %v2134 = vpop.f32.mrb[0].mxu0
        %v2135 = vadd.f32 %v1954, %v2134
        %v2136 = vpop.f32.mrb[0].mxu0
        %v2137 = vpop.f32.mrb[0].mxu0
        %v2138 = vadd.f32 %v1954, %v2137
        %v2139 = vpop.f32.mrb[0].mxu0
        %2140 = vmatprep.mubr.bf16.mxu0 0
        %2141 = vmatmul.mubr.bf16.gmra.mrb[0].mxu0 %v1947
        %v2142 = vpop.f32.mrb[0].mxu0
        %v2143 = vadd.f32 %v1954, %v2142
        %v2144 = vpop.f32.mrb[0].mxu0
        %v2145 = vpop.f32.mrb[0].mxu0
        %v2146 = vadd.f32 %v1954, %v2145
        %v2147 = vpop.f32.mrb[0].mxu0
        %2148 = vmatprep.mubr.bf16.mxu0 0
        %2149 = vmatmul.mubr.bf16.gmra.mrb[0].mxu0 %v1948
        %v2150 = vpop.f32.mrb[0].mxu0
        %v2151 = vadd.f32 %v1954, %v2150
        %v2152 = vpop.f32.mrb[0].mxu0
        %v2153 = vpop.f32.mrb[0].mxu0
        %v2154 = vadd.f32 %v1954, %v2153
        %v2155 = vpop.f32.mrb[0].mxu0
        %2156 = vmatprep.mubr.bf16.mxu0 0
        %2157 = vmatmul.mubr.bf16.gmra.mrb[0].mxu0 %v1949
        %v2158 = vpop.f32.mrb[0].mxu0
        %v2159 = vadd.f32 %v1954, %v2158
        %v2160 = vpop.f32.mrb[0].mxu0
        %v2161 = vpop.f32.mrb[0].mxu0
        %v2162 = vadd.f32 %v1954, %v2161
        %v2163 = vpop.f32.mrb[0].mxu0
        %2164 = vdwg.mxu0
        %v2165 = vmax.f32 %v2039, 0.0
        %v2166 = vmax.f32 %v2042, 0.0
        %v2167 = vmax.f32 %v2047, 0.0
        %v2168 = vmax.f32 %v2050, 0.0
        %v2169 = vmax.f32 %v2055, 0.0
        %v2170 = vmax.f32 %v2058, 0.0
        %v2171 = vmax.f32 %v2063, 0.0
        %v2172 = vmax.f32 %v2066, 0.0
        %v2173 = vmax.f32 %v2071, 0.0
        %v2174 = vmax.f32 %v2074, 0.0
        %v2175 = vmax.f32 %v2079, 0.0
        %v2176 = vmax.f32 %v2082, 0.0
        %v2177 = vmax.f32 %v2087, 0.0
        %v2178 = vmax.f32 %v2090, 0.0
        %v2179 = vmax.f32 %v2095, 0.0
        %v2180 = vmax.f32 %v2098, 0.0
        %v2181 = vmax.f32 %v2103, 0.0
        %v2182 = vmax.f32 %v2106, 0.0
        %v2183 = vmax.f32 %v2111, 0.0
        %v2184 = vmax.f32 %v2114, 0.0
        %v2185 = vmax.f32 %v2119, 0.0
        %v2186 = vmax.f32 %v2122, 0.0
        %v2187 = vmax.f32 %v2127, 0.0
        %v2188 = vmax.f32 %v2130, 0.0
        %v2189 = vmax.f32 %v2135, 0.0
        %v2190 = vmax.f32 %v2138, 0.0
        %v2191 = vmax.f32 %v2143, 0.0
        %v2192 = vmax.f32 %v2146, 0.0
        %v2193 = vmax.f32 %v2151, 0.0
        %v2194 = vmax.f32 %v2154, 0.0
        %v2195 = vmax.f32 %v2159, 0.0
        %v2196 = vmax.f32 %v2162, 0.0
        %2197 = vst [vmem:[#allocation3 + $0x30] sm:$0xff] 0.0
        %2198 = vst [vmem:[#allocation3 + $0x38] sm:$0xff] 0.0
        %2199 = vst [vmem:[#allocation3 + $0x70] sm:$0xff] 0.0
        %2200 = vst [vmem:[#allocation3 + $0x78] sm:$0xff] 0.0
        %2201 = vst [vmem:[#allocation3 + $0xb0] sm:$0xff] 0.0
        %2202 = vst [vmem:[#allocation3 + $0xb8] sm:$0xff] 0.0
        %2203 = vst [vmem:[#allocation3 + $0xf0] sm:$0xff] 0.0
        %2204 = vst [vmem:[#allocation3 + $0xf8] sm:$0xff] 0.0
        %2205 = vst [vmem:[#allocation3 + $0x130] sm:$0xff] 0.0
        %2206 = vst [vmem:[#allocation3 + $0x138] sm:$0xff] 0.0
        %2207 = vst [vmem:[#allocation3 + $0x170] sm:$0xff] 0.0
        %2208 = vst [vmem:[#allocation3 + $0x178] sm:$0xff] 0.0
        %2209 = vst [vmem:[#allocation3 + $0x1b0] sm:$0xff] 0.0
        %2210 = vst [vmem:[#allocation3 + $0x1b8] sm:$0xff] 0.0
        %2211 = vst [vmem:[#allocation3 + $0x1f0] sm:$0xff] 0.0
        %2212 = vst [vmem:[#allocation3 + $0x1f8] sm:$0xff] 0.0
        %vm2213 = vcmask 523264
        %2214 = vst.msk [vmem:[#allocation3] sm:$0xff] %vm2213, %v2165
        %2215 = vst.msk [vmem:[#allocation3 + $0x10] sm:$0xff] %vm2213, %v2166
        %2216 = vst.msk [vmem:[#allocation3 + $0x20] sm:$0xff] %vm2213, %v2167
        %2217 = vst.msk [vmem:[#allocation3 + $0x30] sm:$0xff] %vm2213, %v2168
        %2218 = vst.msk [vmem:[#allocation3 + $0x40] sm:$0xff] %vm2213, %v2169
        %2219 = vst.msk [vmem:[#allocation3 + $0x50] sm:$0xff] %vm2213, %v2170
        %2220 = vst.msk [vmem:[#allocation3 + $0x60] sm:$0xff] %vm2213, %v2171
        %2221 = vst.msk [vmem:[#allocation3 + $0x70] sm:$0xff] %vm2213, %v2172
        %2222 = vst.msk [vmem:[#allocation3 + $0x80] sm:$0xff] %vm2213, %v2173
        %2223 = vst.msk [vmem:[#allocation3 + $0x90] sm:$0xff] %vm2213, %v2174
        %2224 = vst.msk [vmem:[#allocation3 + $0xa0] sm:$0xff] %vm2213, %v2175
        %2225 = vst.msk [vmem:[#allocation3 + $0xb0] sm:$0xff] %vm2213, %v2176
        %2226 = vst.msk [vmem:[#allocation3 + $0xc0] sm:$0xff] %vm2213, %v2177
        %2227 = vst.msk [vmem:[#allocation3 + $0xd0] sm:$0xff] %vm2213, %v2178
        %2228 = vst.msk [vmem:[#allocation3 + $0xe0] sm:$0xff] %vm2213, %v2179
        %2229 = vst.msk [vmem:[#allocation3 + $0xf0] sm:$0xff] %vm2213, %v2180
        %2230 = vst.msk [vmem:[#allocation3 + $0x100] sm:$0xff] %vm2213, %v2181
        %2231 = vst.msk [vmem:[#allocation3 + $0x110] sm:$0xff] %vm2213, %v2182
        %2232 = vst.msk [vmem:[#allocation3 + $0x120] sm:$0xff] %vm2213, %v2183
        %2233 = vst.msk [vmem:[#allocation3 + $0x130] sm:$0xff] %vm2213, %v2184
        %2234 = vst.msk [vmem:[#allocation3 + $0x140] sm:$0xff] %vm2213, %v2185
        %2235 = vst.msk [vmem:[#allocation3 + $0x150] sm:$0xff] %vm2213, %v2186
        %2236 = vst.msk [vmem:[#allocation3 + $0x160] sm:$0xff] %vm2213, %v2187
        %2237 = vst.msk [vmem:[#allocation3 + $0x170] sm:$0xff] %vm2213, %v2188
        %2238 = vst.msk [vmem:[#allocation3 + $0x180] sm:$0xff] %vm2213, %v2189
        %2239 = vst.msk [vmem:[#allocation3 + $0x190] sm:$0xff] %vm2213, %v2190
        %2240 = vst.msk [vmem:[#allocation3 + $0x1a0] sm:$0xff] %vm2213, %v2191
        %2241 = vst.msk [vmem:[#allocation3 + $0x1b0] sm:$0xff] %vm2213, %v2192
        %2242 = vst.msk [vmem:[#allocation3 + $0x1c0] sm:$0xff] %vm2213, %v2193
        %2243 = vst.msk [vmem:[#allocation3 + $0x1d0] sm:$0xff] %vm2213, %v2194
        %2244 = vst.msk [vmem:[#allocation3 + $0x1e0] sm:$0xff] %vm2213, %v2195
        %2245 = vst.msk [vmem:[#allocation3 + $0x1f0] sm:$0xff] %vm2213, %v2196
        %v2278 = vrot.slane %v2165, 1
        %v2279 = vrot.slane %v2166, 1
        %v2280 = vsel %vm790, %v2278, %v2279
        %v2281 = vrot.slane %v2167, 1
        %v2282 = vsel %vm790, %v2279, %v2281
        %v2283 = vrot.slane %v2168, 1
        %v2284 = vsel %vm790, %v2281, %v2283
        %v2285 = vrot.slane %v2169, 1
        %v2286 = vrot.slane %v2170, 1
        %v2287 = vsel %vm790, %v2285, %v2286
        %v2288 = vrot.slane %v2171, 1
        %v2289 = vsel %vm790, %v2286, %v2288
        %v2290 = vrot.slane %v2172, 1
        %v2291 = vsel %vm790, %v2288, %v2290
        %v2292 = vrot.slane %v2173, 1
        %v2293 = vrot.slane %v2174, 1
        %v2294 = vsel %vm790, %v2292, %v2293
        %v2295 = vrot.slane %v2175, 1
        %v2296 = vsel %vm790, %v2293, %v2295
        %v2297 = vrot.slane %v2176, 1
        %v2298 = vsel %vm790, %v2295, %v2297
        %v2299 = vrot.slane %v2177, 1
        %v2300 = vrot.slane %v2178, 1
        %v2301 = vsel %vm790, %v2299, %v2300
        %v2302 = vrot.slane %v2179, 1
        %v2303 = vsel %vm790, %v2300, %v2302
        %v2304 = vrot.slane %v2180, 1
        %v2305 = vsel %vm790, %v2302, %v2304
        %v2306 = vrot.slane %v2181, 1
        %v2307 = vrot.slane %v2182, 1
        %v2308 = vsel %vm790, %v2306, %v2307
        %v2309 = vrot.slane %v2183, 1
        %v2310 = vsel %vm790, %v2307, %v2309
        %v2311 = vrot.slane %v2184, 1
        %v2312 = vsel %vm790, %v2309, %v2311
        %v2313 = vrot.slane %v2185, 1
        %v2314 = vrot.slane %v2186, 1
        %v2315 = vsel %vm790, %v2313, %v2314
        %v2316 = vrot.slane %v2187, 1
        %v2317 = vsel %vm790, %v2314, %v2316
        %v2318 = vrot.slane %v2188, 1
        %v2319 = vsel %vm790, %v2316, %v2318
        %v2320 = vrot.slane %v2189, 1
        %v2321 = vrot.slane %v2190, 1
        %v2322 = vsel %vm790, %v2320, %v2321
        %v2323 = vrot.slane %v2191, 1
        %v2324 = vsel %vm790, %v2321, %v2323
        %v2325 = vrot.slane %v2192, 1
        %v2326 = vsel %vm790, %v2323, %v2325
        %v2327 = vrot.slane %v2193, 1
        %v2328 = vrot.slane %v2194, 1
        %v2329 = vsel %vm790, %v2327, %v2328
        %v2330 = vrot.slane %v2195, 1
        %v2331 = vsel %vm790, %v2328, %v2330
        %v2332 = vrot.slane %v2196, 1
        %v2333 = vsel %vm790, %v2330, %v2332
        %2334 = vrot.lane.b32.xlu0 %v2280, 64
        %v2335 = vpop.permute.xlu0 %2334
        %2336 = vrot.lane.b32.xlu0 %v2282, 64
        %v2337 = vpop.permute.xlu0 %2336
        %2338 = vrot.lane.b32.xlu0 %v2284, 64
        %v2339 = vpop.permute.xlu0 %2338
        %2340 = vrot.lane.b32.xlu0 %v2283, 64
        %v2341 = vpop.permute.xlu0 %2340
        %2342 = vrot.lane.b32.xlu0 %v2287, 64
        %v2343 = vpop.permute.xlu0 %2342
        %2344 = vrot.lane.b32.xlu0 %v2289, 64
        %v2345 = vpop.permute.xlu0 %2344
        %2346 = vrot.lane.b32.xlu0 %v2291, 64
        %v2347 = vpop.permute.xlu0 %2346
        %2348 = vrot.lane.b32.xlu0 %v2290, 64
        %v2349 = vpop.permute.xlu0 %2348
        %2350 = vrot.lane.b32.xlu0 %v2294, 64
        %v2351 = vpop.permute.xlu0 %2350
        %2352 = vrot.lane.b32.xlu0 %v2296, 64
        %v2353 = vpop.permute.xlu0 %2352
        %2354 = vrot.lane.b32.xlu0 %v2298, 64
        %v2355 = vpop.permute.xlu0 %2354
        %2356 = vrot.lane.b32.xlu0 %v2297, 64
        %v2357 = vpop.permute.xlu0 %2356
        %2358 = vrot.lane.b32.xlu0 %v2301, 64
        %v2359 = vpop.permute.xlu0 %2358
        %2360 = vrot.lane.b32.xlu0 %v2303, 64
        %v2361 = vpop.permute.xlu0 %2360
        %2362 = vrot.lane.b32.xlu0 %v2305, 64
        %v2363 = vpop.permute.xlu0 %2362
        %2364 = vrot.lane.b32.xlu0 %v2304, 64
        %v2365 = vpop.permute.xlu0 %2364
        %2366 = vrot.lane.b32.xlu0 %v2308, 64
        %v2367 = vpop.permute.xlu0 %2366
        %2368 = vrot.lane.b32.xlu0 %v2310, 64
        %v2369 = vpop.permute.xlu0 %2368
        %2370 = vrot.lane.b32.xlu0 %v2312, 64
        %v2371 = vpop.permute.xlu0 %2370
        %2372 = vrot.lane.b32.xlu0 %v2311, 64
        %v2373 = vpop.permute.xlu0 %2372
        %2374 = vrot.lane.b32.xlu0 %v2315, 64
        %v2375 = vpop.permute.xlu0 %2374
        %2376 = vrot.lane.b32.xlu0 %v2317, 64
        %v2377 = vpop.permute.xlu0 %2376
        %2378 = vrot.lane.b32.xlu0 %v2319, 64
        %v2379 = vpop.permute.xlu0 %2378
        %2380 = vrot.lane.b32.xlu0 %v2318, 64
        %v2381 = vpop.permute.xlu0 %2380
        %2382 = vrot.lane.b32.xlu0 %v2322, 64
        %v2383 = vpop.permute.xlu0 %2382
        %2384 = vrot.lane.b32.xlu0 %v2324, 64
        %v2385 = vpop.permute.xlu0 %2384
        %2386 = vrot.lane.b32.xlu0 %v2326, 64
        %v2387 = vpop.permute.xlu0 %2386
        %2388 = vrot.lane.b32.xlu0 %v2325, 64
        %v2389 = vpop.permute.xlu0 %2388
        %2390 = vrot.lane.b32.xlu0 %v2329, 64
        %v2391 = vpop.permute.xlu0 %2390
        %2392 = vrot.lane.b32.xlu0 %v2331, 64
        %v2393 = vpop.permute.xlu0 %2392
        %2394 = vrot.lane.b32.xlu0 %v2333, 64
        %v2395 = vpop.permute.xlu0 %2394
        %2396 = vrot.lane.b32.xlu0 %v2332, 64
        %v2397 = vpop.permute.xlu0 %2396
        %vm2430 = vcmask 1048064
        %2431 = vst.msk [vmem:[#allocation3] sm:$0xff] %vm2430, %v2335
        %2432 = vst.msk [vmem:[#allocation3 + $0x10] sm:$0xff] %vm2430, %v2337
        %2433 = vst.msk [vmem:[#allocation3 + $0x20] sm:$0xff] %vm2430, %v2339
        %vm2434 = vcmask 1047040
        %2435 = vst.msk [vmem:[#allocation3 + $0x30] sm:$0x7f] %vm2434, %v2341
        %2436 = vst.msk [vmem:[#allocation3 + $0x40] sm:$0xff] %vm2430, %v2343
        %2437 = vst.msk [vmem:[#allocation3 + $0x50] sm:$0xff] %vm2430, %v2345
        %2438 = vst.msk [vmem:[#allocation3 + $0x60] sm:$0xff] %vm2430, %v2347
        %2439 = vst.msk [vmem:[#allocation3 + $0x70] sm:$0x7f] %vm2434, %v2349
        %2440 = vst.msk [vmem:[#allocation3 + $0x80] sm:$0xff] %vm2430, %v2351
        %2441 = vst.msk [vmem:[#allocation3 + $0x90] sm:$0xff] %vm2430, %v2353
        %2442 = vst.msk [vmem:[#allocation3 + $0xa0] sm:$0xff] %vm2430, %v2355
        %2443 = vst.msk [vmem:[#allocation3 + $0xb0] sm:$0x7f] %vm2434, %v2357
        %2444 = vst.msk [vmem:[#allocation3 + $0xc0] sm:$0xff] %vm2430, %v2359
        %2445 = vst.msk [vmem:[#allocation3 + $0xd0] sm:$0xff] %vm2430, %v2361
        %2446 = vst.msk [vmem:[#allocation3 + $0xe0] sm:$0xff] %vm2430, %v2363
        %2447 = vst.msk [vmem:[#allocation3 + $0xf0] sm:$0x7f] %vm2434, %v2365
        %2448 = vst.msk [vmem:[#allocation3 + $0x100] sm:$0xff] %vm2430, %v2367
        %2449 = vst.msk [vmem:[#allocation3 + $0x110] sm:$0xff] %vm2430, %v2369
        %2450 = vst.msk [vmem:[#allocation3 + $0x120] sm:$0xff] %vm2430, %v2371
        %2451 = vst.msk [vmem:[#allocation3 + $0x130] sm:$0x7f] %vm2434, %v2373
        %2452 = vst.msk [vmem:[#allocation3 + $0x140] sm:$0xff] %vm2430, %v2375
        %2453 = vst.msk [vmem:[#allocation3 + $0x150] sm:$0xff] %vm2430, %v2377
        %2454 = vst.msk [vmem:[#allocation3 + $0x160] sm:$0xff] %vm2430, %v2379
        %2455 = vst.msk [vmem:[#allocation3 + $0x170] sm:$0x7f] %vm2434, %v2381
        %2456 = vst.msk [vmem:[#allocation3 + $0x180] sm:$0xff] %vm2430, %v2383
        %2457 = vst.msk [vmem:[#allocation3 + $0x190] sm:$0xff] %vm2430, %v2385
        %2458 = vst.msk [vmem:[#allocation3 + $0x1a0] sm:$0xff] %vm2430, %v2387
        %2459 = vst.msk [vmem:[#allocation3 + $0x1b0] sm:$0x7f] %vm2434, %v2389
        %2460 = vst.msk [vmem:[#allocation3 + $0x1c0] sm:$0xff] %vm2430, %v2391
        %2461 = vst.msk [vmem:[#allocation3 + $0x1d0] sm:$0xff] %vm2430, %v2393
        %2462 = vst.msk [vmem:[#allocation3 + $0x1e0] sm:$0xff] %vm2430, %v2395
        %2463 = vst.msk [vmem:[#allocation3 + $0x1f0] sm:$0x7f] %vm2434, %v2397
        %v2464 = vrot.slane %v2165, 2
        %v2465 = vrot.slane %v2166, 2
        %v2466 = vsel %vm1011, %v2464, %v2465
        %v2467 = vrot.slane %v2167, 2
        %v2468 = vsel %vm1011, %v2465, %v2467
        %v2469 = vrot.slane %v2168, 2
        %v2470 = vsel %vm1011, %v2467, %v2469
        %v2471 = vrot.slane %v2169, 2
        %v2472 = vrot.slane %v2170, 2
        %v2473 = vsel %vm1011, %v2471, %v2472
        %v2474 = vrot.slane %v2171, 2
        %v2475 = vsel %vm1011, %v2472, %v2474
        %v2476 = vrot.slane %v2172, 2
        %v2477 = vsel %vm1011, %v2474, %v2476
        %v2478 = vrot.slane %v2173, 2
        %v2479 = vrot.slane %v2174, 2
        %v2480 = vsel %vm1011, %v2478, %v2479
        %v2481 = vrot.slane %v2175, 2
        %v2482 = vsel %vm1011, %v2479, %v2481
        %v2483 = vrot.slane %v2176, 2
        %v2484 = vsel %vm1011, %v2481, %v2483
        %v2485 = vrot.slane %v2177, 2
        %v2486 = vrot.slane %v2178, 2
        %v2487 = vsel %vm1011, %v2485, %v2486
        %v2488 = vrot.slane %v2179, 2
        %v2489 = vsel %vm1011, %v2486, %v2488
        %v2490 = vrot.slane %v2180, 2
        %v2491 = vsel %vm1011, %v2488, %v2490
        %v2492 = vrot.slane %v2181, 2
        %v2493 = vrot.slane %v2182, 2
        %v2494 = vsel %vm1011, %v2492, %v2493
        %v2495 = vrot.slane %v2183, 2
        %v2496 = vsel %vm1011, %v2493, %v2495
        %v2497 = vrot.slane %v2184, 2
        %v2498 = vsel %vm1011, %v2495, %v2497
        %v2499 = vrot.slane %v2185, 2
        %v2500 = vrot.slane %v2186, 2
        %v2501 = vsel %vm1011, %v2499, %v2500
        %v2502 = vrot.slane %v2187, 2
        %v2503 = vsel %vm1011, %v2500, %v2502
        %v2504 = vrot.slane %v2188, 2
        %v2505 = vsel %vm1011, %v2502, %v2504
        %v2506 = vrot.slane %v2189, 2
        %v2507 = vrot.slane %v2190, 2
        %v2508 = vsel %vm1011, %v2506, %v2507
        %v2509 = vrot.slane %v2191, 2
        %v2510 = vsel %vm1011, %v2507, %v2509
        %v2511 = vrot.slane %v2192, 2
        %v2512 = vsel %vm1011, %v2509, %v2511
        %v2513 = vrot.slane %v2193, 2
        %v2514 = vrot.slane %v2194, 2
        %v2515 = vsel %vm1011, %v2513, %v2514
        %v2516 = vrot.slane %v2195, 2
        %v2517 = vsel %vm1011, %v2514, %v2516
        %v2518 = vrot.slane %v2196, 2
        %v2519 = vsel %vm1011, %v2516, %v2518
        %2552 = vst.msk [vmem:[#allocation3 + $0x8] sm:$0xff] %vm2213, %v2466
        %2553 = vst.msk [vmem:[#allocation3 + $0x18] sm:$0xff] %vm2213, %v2468
        %2554 = vst.msk [vmem:[#allocation3 + $0x28] sm:$0xff] %vm2213, %v2470
        %vm2555 = vcmask 521216
        %2556 = vst.msk [vmem:[#allocation3 + $0x38] sm:$0x3f] %vm2555, %v2469
        %2557 = vst.msk [vmem:[#allocation3 + $0x48] sm:$0xff] %vm2213, %v2473
        %2558 = vst.msk [vmem:[#allocation3 + $0x58] sm:$0xff] %vm2213, %v2475
        %2559 = vst.msk [vmem:[#allocation3 + $0x68] sm:$0xff] %vm2213, %v2477
        %2560 = vst.msk [vmem:[#allocation3 + $0x78] sm:$0x3f] %vm2555, %v2476
        %2561 = vst.msk [vmem:[#allocation3 + $0x88] sm:$0xff] %vm2213, %v2480
        %2562 = vst.msk [vmem:[#allocation3 + $0x98] sm:$0xff] %vm2213, %v2482
        %2563 = vst.msk [vmem:[#allocation3 + $0xa8] sm:$0xff] %vm2213, %v2484
        %2564 = vst.msk [vmem:[#allocation3 + $0xb8] sm:$0x3f] %vm2555, %v2483
        %2565 = vst.msk [vmem:[#allocation3 + $0xc8] sm:$0xff] %vm2213, %v2487
        %2566 = vst.msk [vmem:[#allocation3 + $0xd8] sm:$0xff] %vm2213, %v2489
        %2567 = vst.msk [vmem:[#allocation3 + $0xe8] sm:$0xff] %vm2213, %v2491
        %2568 = vst.msk [vmem:[#allocation3 + $0xf8] sm:$0x3f] %vm2555, %v2490
        %2569 = vst.msk [vmem:[#allocation3 + $0x108] sm:$0xff] %vm2213, %v2494
        %2570 = vst.msk [vmem:[#allocation3 + $0x118] sm:$0xff] %vm2213, %v2496
        %2571 = vst.msk [vmem:[#allocation3 + $0x128] sm:$0xff] %vm2213, %v2498
        %2572 = vst.msk [vmem:[#allocation3 + $0x138] sm:$0x3f] %vm2555, %v2497
        %2573 = vst.msk [vmem:[#allocation3 + $0x148] sm:$0xff] %vm2213, %v2501
        %2574 = vst.msk [vmem:[#allocation3 + $0x158] sm:$0xff] %vm2213, %v2503
        %2575 = vst.msk [vmem:[#allocation3 + $0x168] sm:$0xff] %vm2213, %v2505
        %2576 = vst.msk [vmem:[#allocation3 + $0x178] sm:$0x3f] %vm2555, %v2504
        %2577 = vst.msk [vmem:[#allocation3 + $0x188] sm:$0xff] %vm2213, %v2508
        %2578 = vst.msk [vmem:[#allocation3 + $0x198] sm:$0xff] %vm2213, %v2510
        %2579 = vst.msk [vmem:[#allocation3 + $0x1a8] sm:$0xff] %vm2213, %v2512
        %2580 = vst.msk [vmem:[#allocation3 + $0x1b8] sm:$0x3f] %vm2555, %v2511
        %2581 = vst.msk [vmem:[#allocation3 + $0x1c8] sm:$0xff] %vm2213, %v2515
        %2582 = vst.msk [vmem:[#allocation3 + $0x1d8] sm:$0xff] %vm2213, %v2517
        %2583 = vst.msk [vmem:[#allocation3 + $0x1e8] sm:$0xff] %vm2213, %v2519
        %2584 = vst.msk [vmem:[#allocation3 + $0x1f8] sm:$0x3f] %vm2555, %v2518
        %v2585 = vrot.slane %v2165, 3
        %v2586 = vrot.slane %v2166, 3
        %v2587 = vsel %vm1232, %v2585, %v2586
        %v2588 = vrot.slane %v2167, 3
        %v2589 = vsel %vm1232, %v2586, %v2588
        %v2590 = vrot.slane %v2168, 3
        %v2591 = vsel %vm1232, %v2588, %v2590
        %v2592 = vrot.slane %v2169, 3
        %v2593 = vrot.slane %v2170, 3
        %v2594 = vsel %vm1232, %v2592, %v2593
        %v2595 = vrot.slane %v2171, 3
        %v2596 = vsel %vm1232, %v2593, %v2595
        %v2597 = vrot.slane %v2172, 3
        %v2598 = vsel %vm1232, %v2595, %v2597
        %v2599 = vrot.slane %v2173, 3
        %v2600 = vrot.slane %v2174, 3
        %v2601 = vsel %vm1232, %v2599, %v2600
        %v2602 = vrot.slane %v2175, 3
        %v2603 = vsel %vm1232, %v2600, %v2602
        %v2604 = vrot.slane %v2176, 3
        %v2605 = vsel %vm1232, %v2602, %v2604
        %v2606 = vrot.slane %v2177, 3
        %v2607 = vrot.slane %v2178, 3
        %v2608 = vsel %vm1232, %v2606, %v2607
        %v2609 = vrot.slane %v2179, 3
        %v2610 = vsel %vm1232, %v2607, %v2609
        %v2611 = vrot.slane %v2180, 3
        %v2612 = vsel %vm1232, %v2609, %v2611
        %v2613 = vrot.slane %v2181, 3
        %v2614 = vrot.slane %v2182, 3
        %v2615 = vsel %vm1232, %v2613, %v2614
        %v2616 = vrot.slane %v2183, 3
        %v2617 = vsel %vm1232, %v2614, %v2616
        %v2618 = vrot.slane %v2184, 3
        %v2619 = vsel %vm1232, %v2616, %v2618
        %v2620 = vrot.slane %v2185, 3
        %v2621 = vrot.slane %v2186, 3
        %v2622 = vsel %vm1232, %v2620, %v2621
        %v2623 = vrot.slane %v2187, 3
        %v2624 = vsel %vm1232, %v2621, %v2623
        %v2625 = vrot.slane %v2188, 3
        %v2626 = vsel %vm1232, %v2623, %v2625
        %v2627 = vrot.slane %v2189, 3
        %v2628 = vrot.slane %v2190, 3
        %v2629 = vsel %vm1232, %v2627, %v2628
        %v2630 = vrot.slane %v2191, 3
        %v2631 = vsel %vm1232, %v2628, %v2630
        %v2632 = vrot.slane %v2192, 3
        %v2633 = vsel %vm1232, %v2630, %v2632
        %v2634 = vrot.slane %v2193, 3
        %v2635 = vrot.slane %v2194, 3
        %v2636 = vsel %vm1232, %v2634, %v2635
        %v2637 = vrot.slane %v2195, 3
        %v2638 = vsel %vm1232, %v2635, %v2637
        %v2639 = vrot.slane %v2196, 3
        %v2640 = vsel %vm1232, %v2637, %v2639
        %2641 = vrot.lane.b32.xlu0 %v2587, 64
        %v2642 = vpop.permute.xlu0 %2641
        %2643 = vrot.lane.b32.xlu0 %v2589, 64
        %v2644 = vpop.permute.xlu0 %2643
        %2645 = vrot.lane.b32.xlu0 %v2591, 64
        %v2646 = vpop.permute.xlu0 %2645
        %2647 = vrot.lane.b32.xlu0 %v2590, 64
        %v2648 = vpop.permute.xlu0 %2647
        %2649 = vrot.lane.b32.xlu0 %v2594, 64
        %v2650 = vpop.permute.xlu0 %2649
        %2651 = vrot.lane.b32.xlu0 %v2596, 64
        %v2652 = vpop.permute.xlu0 %2651
        %2653 = vrot.lane.b32.xlu0 %v2598, 64
        %v2654 = vpop.permute.xlu0 %2653
        %2655 = vrot.lane.b32.xlu0 %v2597, 64
        %v2656 = vpop.permute.xlu0 %2655
        %2657 = vrot.lane.b32.xlu0 %v2601, 64
        %v2658 = vpop.permute.xlu0 %2657
        %2659 = vrot.lane.b32.xlu0 %v2603, 64
        %v2660 = vpop.permute.xlu0 %2659
        %2661 = vrot.lane.b32.xlu0 %v2605, 64
        %v2662 = vpop.permute.xlu0 %2661
        %2663 = vrot.lane.b32.xlu0 %v2604, 64
        %v2664 = vpop.permute.xlu0 %2663
        %2665 = vrot.lane.b32.xlu0 %v2608, 64
        %v2666 = vpop.permute.xlu0 %2665
        %2667 = vrot.lane.b32.xlu0 %v2610, 64
        %v2668 = vpop.permute.xlu0 %2667
        %2669 = vrot.lane.b32.xlu0 %v2612, 64
        %v2670 = vpop.permute.xlu0 %2669
        %2671 = vrot.lane.b32.xlu0 %v2611, 64
        %v2672 = vpop.permute.xlu0 %2671
        %2673 = vrot.lane.b32.xlu0 %v2615, 64
        %v2674 = vpop.permute.xlu0 %2673
        %2675 = vrot.lane.b32.xlu0 %v2617, 64
        %v2676 = vpop.permute.xlu0 %2675
        %2677 = vrot.lane.b32.xlu0 %v2619, 64
        %v2678 = vpop.permute.xlu0 %2677
        %2679 = vrot.lane.b32.xlu0 %v2618, 64
        %v2680 = vpop.permute.xlu0 %2679
        %2681 = vrot.lane.b32.xlu0 %v2622, 64
        %v2682 = vpop.permute.xlu0 %2681
        %2683 = vrot.lane.b32.xlu0 %v2624, 64
        %v2684 = vpop.permute.xlu0 %2683
        %2685 = vrot.lane.b32.xlu0 %v2626, 64
        %v2686 = vpop.permute.xlu0 %2685
        %2687 = vrot.lane.b32.xlu0 %v2625, 64
        %v2688 = vpop.permute.xlu0 %2687
        %2689 = vrot.lane.b32.xlu0 %v2629, 64
        %v2690 = vpop.permute.xlu0 %2689
        %2691 = vrot.lane.b32.xlu0 %v2631, 64
        %v2692 = vpop.permute.xlu0 %2691
        %2693 = vrot.lane.b32.xlu0 %v2633, 64
        %v2694 = vpop.permute.xlu0 %2693
        %2695 = vrot.lane.b32.xlu0 %v2632, 64
        %v2696 = vpop.permute.xlu0 %2695
        %2697 = vrot.lane.b32.xlu0 %v2636, 64
        %v2698 = vpop.permute.xlu0 %2697
        %2699 = vrot.lane.b32.xlu0 %v2638, 64
        %v2700 = vpop.permute.xlu0 %2699
        %2701 = vrot.lane.b32.xlu0 %v2640, 64
        %v2702 = vpop.permute.xlu0 %2701
        %2703 = vrot.lane.b32.xlu0 %v2639, 64
        %v2704 = vpop.permute.xlu0 %2703
        %2737 = vst.msk [vmem:[#allocation3 + $0x8] sm:$0xff] %vm2430, %v2642
        %2738 = vst.msk [vmem:[#allocation3 + $0x18] sm:$0xff] %vm2430, %v2644
        %2739 = vst.msk [vmem:[#allocation3 + $0x28] sm:$0xff] %vm2430, %v2646
        %vm2740 = vcmask 1044992
        %2741 = vst.msk [vmem:[#allocation3 + $0x38] sm:$0x1f] %vm2740, %v2648
        %2742 = vst.msk [vmem:[#allocation3 + $0x48] sm:$0xff] %vm2430, %v2650
        %2743 = vst.msk [vmem:[#allocation3 + $0x58] sm:$0xff] %vm2430, %v2652
        %2744 = vst.msk [vmem:[#allocation3 + $0x68] sm:$0xff] %vm2430, %v2654
        %2745 = vst.msk [vmem:[#allocation3 + $0x78] sm:$0x1f] %vm2740, %v2656
        %2746 = vst.msk [vmem:[#allocation3 + $0x88] sm:$0xff] %vm2430, %v2658
        %2747 = vst.msk [vmem:[#allocation3 + $0x98] sm:$0xff] %vm2430, %v2660
        %2748 = vst.msk [vmem:[#allocation3 + $0xa8] sm:$0xff] %vm2430, %v2662
        %2749 = vst.msk [vmem:[#allocation3 + $0xb8] sm:$0x1f] %vm2740, %v2664
        %2750 = vst.msk [vmem:[#allocation3 + $0xc8] sm:$0xff] %vm2430, %v2666
        %2751 = vst.msk [vmem:[#allocation3 + $0xd8] sm:$0xff] %vm2430, %v2668
        %2752 = vst.msk [vmem:[#allocation3 + $0xe8] sm:$0xff] %vm2430, %v2670
        %2753 = vst.msk [vmem:[#allocation3 + $0xf8] sm:$0x1f] %vm2740, %v2672
        %2754 = vst.msk [vmem:[#allocation3 + $0x108] sm:$0xff] %vm2430, %v2674
        %2755 = vst.msk [vmem:[#allocation3 + $0x118] sm:$0xff] %vm2430, %v2676
        %2756 = vst.msk [vmem:[#allocation3 + $0x128] sm:$0xff] %vm2430, %v2678
        %2757 = vst.msk [vmem:[#allocation3 + $0x138] sm:$0x1f] %vm2740, %v2680
        %2758 = vst.msk [vmem:[#allocation3 + $0x148] sm:$0xff] %vm2430, %v2682
        %2759 = vst.msk [vmem:[#allocation3 + $0x158] sm:$0xff] %vm2430, %v2684
        %2760 = vst.msk [vmem:[#allocation3 + $0x168] sm:$0xff] %vm2430, %v2686
        %2761 = vst.msk [vmem:[#allocation3 + $0x178] sm:$0x1f] %vm2740, %v2688
        %2762 = vst.msk [vmem:[#allocation3 + $0x188] sm:$0xff] %vm2430, %v2690
        %2763 = vst.msk [vmem:[#allocation3 + $0x198] sm:$0xff] %vm2430, %v2692
        %2764 = vst.msk [vmem:[#allocation3 + $0x1a8] sm:$0xff] %vm2430, %v2694
        %2765 = vst.msk [vmem:[#allocation3 + $0x1b8] sm:$0x1f] %vm2740, %v2696
        %2766 = vst.msk [vmem:[#allocation3 + $0x1c8] sm:$0xff] %vm2430, %v2698
        %2767 = vst.msk [vmem:[#allocation3 + $0x1d8] sm:$0xff] %vm2430, %v2700
        %2768 = vst.msk [vmem:[#allocation3 + $0x1e8] sm:$0xff] %vm2430, %v2702
        %2769 = vst.msk [vmem:[#allocation3 + $0x1f8] sm:$0x1f] %vm2740, %v2704
        %v2770 = vld [vmem:[#allocation3] sm:$0xff]
        %v2771 = vld [vmem:[#allocation3 + $0x8] sm:$0xff]
        %v2772 = vld [vmem:[#allocation3 + $0x10] sm:$0xff]
        %v2773 = vld [vmem:[#allocation3 + $0x18] sm:$0xff]
        %v2774 = vld [vmem:[#allocation3 + $0x20] sm:$0xff]
        %v2775 = vld [vmem:[#allocation3 + $0x28] sm:$0xff]
        %v2776 = vld [vmem:[#allocation3 + $0x30] sm:$0xff]
        %v2777 = vld [vmem:[#allocation3 + $0x38] sm:$0xff]
        %v2778 = vld [vmem:[#allocation3 + $0x40] sm:$0xff]
        %v2779 = vld [vmem:[#allocation3 + $0x48] sm:$0xff]
        %v2780 = vld [vmem:[#allocation3 + $0x50] sm:$0xff]
        %v2781 = vld [vmem:[#allocation3 + $0x58] sm:$0xff]
        %v2782 = vld [vmem:[#allocation3 + $0x60] sm:$0xff]
        %v2783 = vld [vmem:[#allocation3 + $0x68] sm:$0xff]
        %v2784 = vld [vmem:[#allocation3 + $0x70] sm:$0xff]
        %v2785 = vld [vmem:[#allocation3 + $0x78] sm:$0xff]
        %v2786 = vld [vmem:[#allocation3 + $0x80] sm:$0xff]
        %v2787 = vld [vmem:[#allocation3 + $0x88] sm:$0xff]
        %v2788 = vld [vmem:[#allocation3 + $0x90] sm:$0xff]
        %v2789 = vld [vmem:[#allocation3 + $0x98] sm:$0xff]
        %v2790 = vld [vmem:[#allocation3 + $0xa0] sm:$0xff]
        %v2791 = vld [vmem:[#allocation3 + $0xa8] sm:$0xff]
        %v2792 = vld [vmem:[#allocation3 + $0xb0] sm:$0xff]
        %v2793 = vld [vmem:[#allocation3 + $0xb8] sm:$0xff]
        %v2794 = vld [vmem:[#allocation3 + $0xc0] sm:$0xff]
        %v2795 = vld [vmem:[#allocation3 + $0xc8] sm:$0xff]
        %v2796 = vld [vmem:[#allocation3 + $0xd0] sm:$0xff]
        %v2797 = vld [vmem:[#allocation3 + $0xd8] sm:$0xff]
        %v2798 = vld [vmem:[#allocation3 + $0xe0] sm:$0xff]
        %v2799 = vld [vmem:[#allocation3 + $0xe8] sm:$0xff]
        %v2800 = vld [vmem:[#allocation3 + $0xf0] sm:$0xff]
        %v2801 = vld [vmem:[#allocation3 + $0xf8] sm:$0xff]
        %v2802 = vld [vmem:[#allocation3 + $0x100] sm:$0xff]
        %v2803 = vld [vmem:[#allocation3 + $0x108] sm:$0xff]
        %v2804 = vld [vmem:[#allocation3 + $0x110] sm:$0xff]
        %v2805 = vld [vmem:[#allocation3 + $0x118] sm:$0xff]
        %v2806 = vld [vmem:[#allocation3 + $0x120] sm:$0xff]
        %v2807 = vld [vmem:[#allocation3 + $0x128] sm:$0xff]
        %v2808 = vld [vmem:[#allocation3 + $0x130] sm:$0xff]
        %v2809 = vld [vmem:[#allocation3 + $0x138] sm:$0xff]
        %v2810 = vld [vmem:[#allocation3 + $0x140] sm:$0xff]
        %v2811 = vld [vmem:[#allocation3 + $0x148] sm:$0xff]
        %v2812 = vld [vmem:[#allocation3 + $0x150] sm:$0xff]
        %v2813 = vld [vmem:[#allocation3 + $0x158] sm:$0xff]
        %v2814 = vld [vmem:[#allocation3 + $0x160] sm:$0xff]
        %v2815 = vld [vmem:[#allocation3 + $0x168] sm:$0xff]
        %v2816 = vld [vmem:[#allocation3 + $0x170] sm:$0xff]
        %v2817 = vld [vmem:[#allocation3 + $0x178] sm:$0xff]
        %v2818 = vld [vmem:[#allocation3 + $0x180] sm:$0xff]
        %v2819 = vld [vmem:[#allocation3 + $0x188] sm:$0xff]
        %v2820 = vld [vmem:[#allocation3 + $0x190] sm:$0xff]
        %v2821 = vld [vmem:[#allocation3 + $0x198] sm:$0xff]
        %v2822 = vld [vmem:[#allocation3 + $0x1a0] sm:$0xff]
        %v2823 = vld [vmem:[#allocation3 + $0x1a8] sm:$0xff]
        %v2824 = vld [vmem:[#allocation3 + $0x1b0] sm:$0xff]
        %v2825 = vld [vmem:[#allocation3 + $0x1b8] sm:$0xff]
        %v2826 = vld [vmem:[#allocation3 + $0x1c0] sm:$0xff]
        %v2827 = vld [vmem:[#allocation3 + $0x1c8] sm:$0xff]
        %v2828 = vld [vmem:[#allocation3 + $0x1d0] sm:$0xff]
        %v2829 = vld [vmem:[#allocation3 + $0x1d8] sm:$0xff]
        %v2830 = vld [vmem:[#allocation3 + $0x1e0] sm:$0xff]
        %v2831 = vld [vmem:[#allocation3 + $0x1e8] sm:$0xff]
        %v2832 = vld [vmem:[#allocation3 + $0x1f0] sm:$0xff]
        %v2833 = vld [vmem:[#allocation3 + $0x1f8] sm:$0xff]
        %v2834 = vpack.c.bf16 %v2772, %v2770
        %v2835 = vpack.c.bf16 %v2773, %v2771
        %v2836 = vpack.c.bf16 %v2776, %v2774
        %v2837 = vpack.c.bf16 %v2777, %v2775
        %v2838 = vpack.c.bf16 %v2780, %v2778
        %v2839 = vpack.c.bf16 %v2781, %v2779
        %v2840 = vpack.c.bf16 %v2784, %v2782
        %v2841 = vpack.c.bf16 %v2785, %v2783
        %v2842 = vpack.c.bf16 %v2788, %v2786
        %v2843 = vpack.c.bf16 %v2789, %v2787
        %v2844 = vpack.c.bf16 %v2792, %v2790
        %v2845 = vpack.c.bf16 %v2793, %v2791
        %v2846 = vpack.c.bf16 %v2796, %v2794
        %v2847 = vpack.c.bf16 %v2797, %v2795
        %v2848 = vpack.c.bf16 %v2800, %v2798
        %v2849 = vpack.c.bf16 %v2801, %v2799
        %v2850 = vpack.c.bf16 %v2804, %v2802
        %v2851 = vpack.c.bf16 %v2805, %v2803
        %v2852 = vpack.c.bf16 %v2808, %v2806
        %v2853 = vpack.c.bf16 %v2809, %v2807
        %v2854 = vpack.c.bf16 %v2812, %v2810
        %v2855 = vpack.c.bf16 %v2813, %v2811
        %v2856 = vpack.c.bf16 %v2816, %v2814
        %v2857 = vpack.c.bf16 %v2817, %v2815
        %v2858 = vpack.c.bf16 %v2820, %v2818
        %v2859 = vpack.c.bf16 %v2821, %v2819
        %v2860 = vpack.c.bf16 %v2824, %v2822
        %v2861 = vpack.c.bf16 %v2825, %v2823
        %v2862 = vpack.c.bf16 %v2828, %v2826
        %v2863 = vpack.c.bf16 %v2829, %v2827
        %v2864 = vpack.c.bf16 %v2832, %v2830
        %v2865 = vpack.c.bf16 %v2833, %v2831
        %v2867 = vlaneseq
        %v2868 = vshrl.u32 %v2867, 7
        %v2869 = vsub.s32 0, %v2868
        %v2870 = vrot.slane %v485, %v2869
        %v2904 = vunpack.c.l.b16 %v453
        %v2905 = vunpack.c.l.b16 %v454
        %v2906 = vunpack.c.l.b16 %v455
        %v2907 = vunpack.c.l.b16 %v456
        %v2908 = vunpack.c.l.b16 %v457
        %v2909 = vunpack.c.l.b16 %v458
        %v2910 = vunpack.c.l.b16 %v459
        %v2911 = vunpack.c.l.b16 %v460
        %v2912 = vunpack.c.l.b16 %v461
        %v2913 = vunpack.c.l.b16 %v462
        %v2914 = vunpack.c.l.b16 %v463
        %v2915 = vunpack.c.l.b16 %v464
        %v2916 = vunpack.c.l.b16 %v465
        %v2917 = vunpack.c.l.b16 %v466
        %v2918 = vunpack.c.l.b16 %v467
        %v2919 = vunpack.c.l.b16 %v468
        %v2920 = vunpack.c.l.b16 %v469
        %v2921 = vunpack.c.l.b16 %v470
        %v2922 = vunpack.c.l.b16 %v471
        %v2923 = vunpack.c.l.b16 %v472
        %v2924 = vunpack.c.l.b16 %v473
        %v2925 = vunpack.c.l.b16 %v474
        %v2926 = vunpack.c.l.b16 %v475
        %v2927 = vunpack.c.l.b16 %v476
        %v2928 = vunpack.c.l.b16 %v477
        %v2929 = vunpack.c.l.b16 %v478
        %v2930 = vunpack.c.l.b16 %v479
        %v2931 = vunpack.c.l.b16 %v480
        %v2932 = vunpack.c.l.b16 %v481
        %v2933 = vunpack.c.l.b16 %v482
        %v2934 = vunpack.c.l.b16 %v483
        %v2935 = vunpack.c.l.b16 %v484
        %v2936 = vpack.c.b16 %v2905, %v2904
        %v2937 = vpack.c.b16 %v2907, %v2906
        %v2938 = vpack.c.b16 %v2909, %v2908
        %v2939 = vpack.c.b16 %v2911, %v2910
        %v2940 = vpack.c.b16 %v2913, %v2912
        %v2941 = vpack.c.b16 %v2915, %v2914
        %v2942 = vpack.c.b16 %v2917, %v2916
        %v2943 = vpack.c.b16 %v2919, %v2918
        %v2944 = vpack.c.b16 %v2921, %v2920
        %v2945 = vpack.c.b16 %v2923, %v2922
        %v2946 = vpack.c.b16 %v2925, %v2924
        %v2947 = vpack.c.b16 %v2927, %v2926
        %v2948 = vpack.c.b16 %v2929, %v2928
        %v2949 = vpack.c.b16 %v2931, %v2930
        %v2950 = vpack.c.b16 %v2933, %v2932
        %v2951 = vpack.c.b16 %v2935, %v2934
        %2968 = vmatprep.subr.bf16.mxu0 0
        %2969 = vmatpush1.bf16.msra.mxu0 %v2936
        %2970 = vmatprep.subr.bf16.mxu0 0
        %2971 = vmatpush1.bf16.msra.mxu0 %v2937
        %2972 = vmatprep.subr.bf16.mxu0 0
        %2973 = vmatpush1.bf16.msra.mxu0 %v2938
        %2974 = vmatprep.subr.bf16.mxu0 0
        %2975 = vmatpush1.bf16.msra.mxu0 %v2939
        %2976 = vmatprep.subr.bf16.mxu0 0
        %2977 = vmatpush1.bf16.msra.mxu0 %v2940
        %2978 = vmatprep.subr.bf16.mxu0 0
        %2979 = vmatpush1.bf16.msra.mxu0 %v2941
        %2980 = vmatprep.subr.bf16.mxu0 0
        %2981 = vmatpush1.bf16.msra.mxu0 %v2942
        %2982 = vmatprep.subr.bf16.mxu0 0
        %2983 = vmatpush1.bf16.msra.mxu0 %v2943
        %2984 = vmatprep.subr.bf16.mxu0 0
        %2985 = vmatpush1.bf16.msra.mxu0 %v2944
        %2986 = vmatprep.subr.bf16.mxu0 0
        %2987 = vmatpush1.bf16.msra.mxu0 %v2945
        %2988 = vmatprep.subr.bf16.mxu0 0
        %2989 = vmatpush1.bf16.msra.mxu0 %v2946
        %2990 = vmatprep.subr.bf16.mxu0 0
        %2991 = vmatpush1.bf16.msra.mxu0 %v2947
        %2992 = vmatprep.subr.bf16.mxu0 0
        %2993 = vmatpush1.bf16.msra.mxu0 %v2948
        %2994 = vmatprep.subr.bf16.mxu0 0
        %2995 = vmatpush1.bf16.msra.mxu0 %v2949
        %2996 = vmatprep.subr.bf16.mxu0 0
        %2997 = vmatpush1.bf16.msra.mxu0 %v2950
        %2998 = vmatprep.subr.bf16.mxu0 0
        %2999 = vmatpush1.bf16.msra.mxu0 %v2951
        %3000 = vmatprep.mubr.bf16.mxu0 %v2835
        %3001 = vmatmul.mubr.bf16.gmra.mrb[0].mxu0 %v2834
        %v3002 = vpop.f32.mrb[0].mxu0
        %v3003 = vadd.f32 %v2870, %v3002
        %v3004 = vpop.f32.mrb[0].mxu0
        %v3005 = vpop.f32.mrb[0].mxu0
        %v3006 = vadd.f32 %v2870, %v3005
        %v3007 = vpop.f32.mrb[0].mxu0
        %3008 = vmatprep.mubr.bf16.mxu0 %v2837
        %3009 = vmatmul.mubr.bf16.gmra.mrb[0].mxu0 %v2836
        %v3010 = vpop.f32.mrb[0].mxu0
        %v3011 = vadd.f32 %v2870, %v3010
        %v3012 = vpop.f32.mrb[0].mxu0
        %v3013 = vpop.f32.mrb[0].mxu0
        %v3014 = vadd.f32 %v2870, %v3013
        %v3015 = vpop.f32.mrb[0].mxu0
        %3016 = vmatprep.mubr.bf16.mxu0 %v2839
        %3017 = vmatmul.mubr.bf16.gmra.mrb[0].mxu0 %v2838
        %v3018 = vpop.f32.mrb[0].mxu0
        %v3019 = vadd.f32 %v2870, %v3018
        %v3020 = vpop.f32.mrb[0].mxu0
        %v3021 = vpop.f32.mrb[0].mxu0
        %v3022 = vadd.f32 %v2870, %v3021
        %v3023 = vpop.f32.mrb[0].mxu0
        %3024 = vmatprep.mubr.bf16.mxu0 %v2841
        %3025 = vmatmul.mubr.bf16.gmra.mrb[0].mxu0 %v2840
        %v3026 = vpop.f32.mrb[0].mxu0
        %v3027 = vadd.f32 %v2870, %v3026
        %v3028 = vpop.f32.mrb[0].mxu0
        %v3029 = vpop.f32.mrb[0].mxu0
        %v3030 = vadd.f32 %v2870, %v3029
        %v3031 = vpop.f32.mrb[0].mxu0
        %3032 = vmatprep.mubr.bf16.mxu0 %v2843
        %3033 = vmatmul.mubr.bf16.gmra.mrb[0].mxu0 %v2842
        %v3034 = vpop.f32.mrb[0].mxu0
        %v3035 = vadd.f32 %v2870, %v3034
        %v3036 = vpop.f32.mrb[0].mxu0
        %v3037 = vpop.f32.mrb[0].mxu0
        %v3038 = vadd.f32 %v2870, %v3037
        %v3039 = vpop.f32.mrb[0].mxu0
        %3040 = vmatprep.mubr.bf16.mxu0 %v2845
        %3041 = vmatmul.mubr.bf16.gmra.mrb[0].mxu0 %v2844
        %v3042 = vpop.f32.mrb[0].mxu0
        %v3043 = vadd.f32 %v2870, %v3042
        %v3044 = vpop.f32.mrb[0].mxu0
        %v3045 = vpop.f32.mrb[0].mxu0
        %v3046 = vadd.f32 %v2870, %v3045
        %v3047 = vpop.f32.mrb[0].mxu0
        %3048 = vmatprep.mubr.bf16.mxu0 %v2847
        %3049 = vmatmul.mubr.bf16.gmra.mrb[0].mxu0 %v2846
        %v3050 = vpop.f32.mrb[0].mxu0
        %v3051 = vadd.f32 %v2870, %v3050
        %v3052 = vpop.f32.mrb[0].mxu0
        %v3053 = vpop.f32.mrb[0].mxu0
        %v3054 = vadd.f32 %v2870, %v3053
        %v3055 = vpop.f32.mrb[0].mxu0
        %3056 = vmatprep.mubr.bf16.mxu0 %v2849
        %3057 = vmatmul.mubr.bf16.gmra.mrb[0].mxu0 %v2848
        %v3058 = vpop.f32.mrb[0].mxu0
        %v3059 = vadd.f32 %v2870, %v3058
        %v3060 = vpop.f32.mrb[0].mxu0
        %v3061 = vpop.f32.mrb[0].mxu0
        %v3062 = vadd.f32 %v2870, %v3061
        %v3063 = vpop.f32.mrb[0].mxu0
        %3064 = vmatprep.mubr.bf16.mxu0 %v2851
        %3065 = vmatmul.mubr.bf16.gmra.mrb[0].mxu0 %v2850
        %v3066 = vpop.f32.mrb[0].mxu0
        %v3067 = vadd.f32 %v2870, %v3066
        %v3068 = vpop.f32.mrb[0].mxu0
        %v3069 = vpop.f32.mrb[0].mxu0
        %v3070 = vadd.f32 %v2870, %v3069
        %v3071 = vpop.f32.mrb[0].mxu0
        %3072 = vmatprep.mubr.bf16.mxu0 %v2853
        %3073 = vmatmul.mubr.bf16.gmra.mrb[0].mxu0 %v2852
        %v3074 = vpop.f32.mrb[0].mxu0
        %v3075 = vadd.f32 %v2870, %v3074
        %v3076 = vpop.f32.mrb[0].mxu0
        %v3077 = vpop.f32.mrb[0].mxu0
        %v3078 = vadd.f32 %v2870, %v3077
        %v3079 = vpop.f32.mrb[0].mxu0
        %3080 = vmatprep.mubr.bf16.mxu0 %v2855
        %3081 = vmatmul.mubr.bf16.gmra.mrb[0].mxu0 %v2854
        %v3082 = vpop.f32.mrb[0].mxu0
        %v3083 = vadd.f32 %v2870, %v3082
        %v3084 = vpop.f32.mrb[0].mxu0
        %v3085 = vpop.f32.mrb[0].mxu0
        %v3086 = vadd.f32 %v2870, %v3085
        %v3087 = vpop.f32.mrb[0].mxu0
        %3088 = vmatprep.mubr.bf16.mxu0 %v2857
        %3089 = vmatmul.mubr.bf16.gmra.mrb[0].mxu0 %v2856
        %v3090 = vpop.f32.mrb[0].mxu0
        %v3091 = vadd.f32 %v2870, %v3090
        %v3092 = vpop.f32.mrb[0].mxu0
        %v3093 = vpop.f32.mrb[0].mxu0
        %v3094 = vadd.f32 %v2870, %v3093
        %v3095 = vpop.f32.mrb[0].mxu0
        %3096 = vmatprep.mubr.bf16.mxu0 %v2859
        %3097 = vmatmul.mubr.bf16.gmra.mrb[0].mxu0 %v2858
        %v3098 = vpop.f32.mrb[0].mxu0
        %v3099 = vadd.f32 %v2870, %v3098
        %v3100 = vpop.f32.mrb[0].mxu0
        %v3101 = vpop.f32.mrb[0].mxu0
        %v3102 = vadd.f32 %v2870, %v3101
        %v3103 = vpop.f32.mrb[0].mxu0
        %3104 = vmatprep.mubr.bf16.mxu0 %v2861
        %3105 = vmatmul.mubr.bf16.gmra.mrb[0].mxu0 %v2860
        %v3106 = vpop.f32.mrb[0].mxu0
        %v3107 = vadd.f32 %v2870, %v3106
        %v3108 = vpop.f32.mrb[0].mxu0
        %v3109 = vpop.f32.mrb[0].mxu0
        %v3110 = vadd.f32 %v2870, %v3109
        %v3111 = vpop.f32.mrb[0].mxu0
        %3112 = vmatprep.mubr.bf16.mxu0 %v2863
        %3113 = vmatmul.mubr.bf16.gmra.mrb[0].mxu0 %v2862
        %v3114 = vpop.f32.mrb[0].mxu0
        %v3115 = vadd.f32 %v2870, %v3114
        %v3116 = vpop.f32.mrb[0].mxu0
        %v3117 = vpop.f32.mrb[0].mxu0
        %v3118 = vadd.f32 %v2870, %v3117
        %v3119 = vpop.f32.mrb[0].mxu0
        %3120 = vmatprep.mubr.bf16.mxu0 %v2865
        %3121 = vmatmul.mubr.bf16.gmra.mrb[0].mxu0 %v2864
        %v3122 = vpop.f32.mrb[0].mxu0
        %v3123 = vadd.f32 %v2870, %v3122
        %v3124 = vpop.f32.mrb[0].mxu0
        %v3125 = vpop.f32.mrb[0].mxu0
        %v3126 = vadd.f32 %v2870, %v3125
        %v3127 = vpop.f32.mrb[0].mxu0
        %3128 = vdwg.mxu0
        %v3129 = vmax.f32 %v3003, 0.0
        %v3130 = vmax.f32 %v3006, 0.0
        %v3131 = vmax.f32 %v3011, 0.0
        %v3132 = vmax.f32 %v3014, 0.0
        %v3133 = vmax.f32 %v3019, 0.0
        %v3134 = vmax.f32 %v3022, 0.0
        %v3135 = vmax.f32 %v3027, 0.0
        %v3136 = vmax.f32 %v3030, 0.0
        %v3137 = vmax.f32 %v3035, 0.0
        %v3138 = vmax.f32 %v3038, 0.0
        %v3139 = vmax.f32 %v3043, 0.0
        %v3140 = vmax.f32 %v3046, 0.0
        %v3141 = vmax.f32 %v3051, 0.0
        %v3142 = vmax.f32 %v3054, 0.0
        %v3143 = vmax.f32 %v3059, 0.0
        %v3144 = vmax.f32 %v3062, 0.0
        %v3145 = vmax.f32 %v3067, 0.0
        %v3146 = vmax.f32 %v3070, 0.0
        %v3147 = vmax.f32 %v3075, 0.0
        %v3148 = vmax.f32 %v3078, 0.0
        %v3149 = vmax.f32 %v3083, 0.0
        %v3150 = vmax.f32 %v3086, 0.0
        %v3151 = vmax.f32 %v3091, 0.0
        %v3152 = vmax.f32 %v3094, 0.0
        %v3153 = vmax.f32 %v3099, 0.0
        %v3154 = vmax.f32 %v3102, 0.0
        %v3155 = vmax.f32 %v3107, 0.0
        %v3156 = vmax.f32 %v3110, 0.0
        %v3157 = vmax.f32 %v3115, 0.0
        %v3158 = vmax.f32 %v3118, 0.0
        %v3159 = vmax.f32 %v3123, 0.0
        %v3160 = vmax.f32 %v3126, 0.0
        %v3161 = vlaneseq
        %v3162 = vshrl.u32 %v3161, 7
        %v3163 = vadd.s32 %v3162, 8
        %v3164 = vadd.s32 %v3162, 16
        %v3165 = vadd.s32 %v3162, 24
        %vm3166 = vcmp.lt.s32.totalorder %v3162, 23
        %vm3167 = vcmp.lt.s32.totalorder %v3163, 23
        %vm3168 = vcmp.lt.s32.totalorder %v3164, 23
        %vm3169 = vcmp.lt.s32.totalorder %v3165, 23
        %v3170 = vsel %vm3166, 1, 0
        %v3171 = vsel %vm3167, 1, 0
        %v3172 = vsel %vm3168, 1, 0
        %v3173 = vsel %vm3169, 1, 0
        %vm3174 = vcmp.eq.s32.totalorder %v3170, 1
        %vm3175 = vcmp.eq.s32.totalorder %v3171, 1
        %vm3176 = vcmp.eq.s32.totalorder %v3172, 1
        %vm3177 = vcmp.eq.s32.totalorder %v3173, 1
        %v3178 = vsel %vm3174, %v3129, 0.0
        %v3179 = vsel %vm3175, %v3130, 0.0
        %v3180 = vsel %vm3176, %v3131, 0.0
        %v3181 = vsel %vm3177, %v3132, 0.0
        %v3182 = vsel %vm3174, %v3133, 0.0
        %v3183 = vsel %vm3175, %v3134, 0.0
        %v3184 = vsel %vm3176, %v3135, 0.0
        %v3185 = vsel %vm3177, %v3136, 0.0
        %v3186 = vsel %vm3174, %v3137, 0.0
        %v3187 = vsel %vm3175, %v3138, 0.0
        %v3188 = vsel %vm3176, %v3139, 0.0
        %v3189 = vsel %vm3177, %v3140, 0.0
        %v3190 = vsel %vm3174, %v3141, 0.0
        %v3191 = vsel %vm3175, %v3142, 0.0
        %v3192 = vsel %vm3176, %v3143, 0.0
        %v3193 = vsel %vm3177, %v3144, 0.0
        %v3194 = vsel %vm3174, %v3145, 0.0
        %v3195 = vsel %vm3175, %v3146, 0.0
        %v3196 = vsel %vm3176, %v3147, 0.0
        %v3197 = vsel %vm3177, %v3148, 0.0
        %v3198 = vsel %vm3174, %v3149, 0.0
        %v3199 = vsel %vm3175, %v3150, 0.0
        %v3200 = vsel %vm3176, %v3151, 0.0
        %v3201 = vsel %vm3177, %v3152, 0.0
        %v3202 = vsel %vm3174, %v3153, 0.0
        %v3203 = vsel %vm3175, %v3154, 0.0
        %v3204 = vsel %vm3176, %v3155, 0.0
        %v3205 = vsel %vm3177, %v3156, 0.0
        %v3206 = vsel %vm3174, %v3157, 0.0
        %v3207 = vsel %vm3175, %v3158, 0.0
        %v3208 = vsel %vm3176, %v3159, 0.0
        %v3209 = vsel %vm3177, %v3160, 0.0
        %v3210 = vmax.f32 %v3178, %v3179
        %v3211 = vmax.f32 %v3210, %v3180
        %v3212 = vmax.f32 %v3211, %v3181
        %v3213 = vrot.slane %v3212, 4
        %v3214 = vmax.f32 %v3212, %v3213
        %v3215 = vrot.slane %v3214, 2
        %v3216 = vmax.f32 %v3214, %v3215
        %v3217 = vrot.slane %v3216, 1
        %v3218 = vmax.f32 %v3216, %v3217
        %v3219 = vmax.f32 %v3182, %v3183
        %v3220 = vmax.f32 %v3219, %v3184
        %v3221 = vmax.f32 %v3220, %v3185
        %v3222 = vrot.slane %v3221, 4
        %v3223 = vmax.f32 %v3221, %v3222
        %v3224 = vrot.slane %v3223, 2
        %v3225 = vmax.f32 %v3223, %v3224
        %v3226 = vrot.slane %v3225, 1
        %v3227 = vmax.f32 %v3225, %v3226
        %v3228 = vmax.f32 %v3186, %v3187
        %v3229 = vmax.f32 %v3228, %v3188
        %v3230 = vmax.f32 %v3229, %v3189
        %v3231 = vrot.slane %v3230, 4
        %v3232 = vmax.f32 %v3230, %v3231
        %v3233 = vrot.slane %v3232, 2
        %v3234 = vmax.f32 %v3232, %v3233
        %v3235 = vrot.slane %v3234, 1
        %v3236 = vmax.f32 %v3234, %v3235
        %v3237 = vmax.f32 %v3190, %v3191
        %v3238 = vmax.f32 %v3237, %v3192
        %v3239 = vmax.f32 %v3238, %v3193
        %v3240 = vrot.slane %v3239, 4
        %v3241 = vmax.f32 %v3239, %v3240
        %v3242 = vrot.slane %v3241, 2
        %v3243 = vmax.f32 %v3241, %v3242
        %v3244 = vrot.slane %v3243, 1
        %v3245 = vmax.f32 %v3243, %v3244
        %v3246 = vmax.f32 %v3194, %v3195
        %v3247 = vmax.f32 %v3246, %v3196
        %v3248 = vmax.f32 %v3247, %v3197
        %v3249 = vrot.slane %v3248, 4
        %v3250 = vmax.f32 %v3248, %v3249
        %v3251 = vrot.slane %v3250, 2
        %v3252 = vmax.f32 %v3250, %v3251
        %v3253 = vrot.slane %v3252, 1
        %v3254 = vmax.f32 %v3252, %v3253
        %v3255 = vmax.f32 %v3198, %v3199
        %v3256 = vmax.f32 %v3255, %v3200
        %v3257 = vmax.f32 %v3256, %v3201
        %v3258 = vrot.slane %v3257, 4
        %v3259 = vmax.f32 %v3257, %v3258
        %v3260 = vrot.slane %v3259, 2
        %v3261 = vmax.f32 %v3259, %v3260
        %v3262 = vrot.slane %v3261, 1
        %v3263 = vmax.f32 %v3261, %v3262
        %v3264 = vmax.f32 %v3202, %v3203
        %v3265 = vmax.f32 %v3264, %v3204
        %v3266 = vmax.f32 %v3265, %v3205
        %v3267 = vrot.slane %v3266, 4
        %v3268 = vmax.f32 %v3266, %v3267
        %v3269 = vrot.slane %v3268, 2
        %v3270 = vmax.f32 %v3268, %v3269
        %v3271 = vrot.slane %v3270, 1
        %v3272 = vmax.f32 %v3270, %v3271
        %v3273 = vmax.f32 %v3206, %v3207
        %v3274 = vmax.f32 %v3273, %v3208
        %v3275 = vmax.f32 %v3274, %v3209
        %v3276 = vrot.slane %v3275, 4
        %v3277 = vmax.f32 %v3275, %v3276
        %v3278 = vrot.slane %v3277, 2
        %v3279 = vmax.f32 %v3277, %v3278
        %v3280 = vrot.slane %v3279, 1
        %v3281 = vmax.f32 %v3279, %v3280
        %vm3290 = vcmask 1041409
        %v3291 = vsel %vm3290, %v3227, %v3218
        %vm3292 = vcmask 1042434
        %v3293 = vsel %vm3292, %v3236, %v3291
        %vm3294 = vcmask 1043459
        %v3295 = vsel %vm3294, %v3245, %v3293
        %vm3296 = vcmask 1044484
        %v3297 = vsel %vm3296, %v3254, %v3295
        %vm3298 = vcmask 1045509
        %v3299 = vsel %vm3298, %v3263, %v3297
        %vm3300 = vcmask 1046534
        %v3301 = vsel %vm3300, %v3272, %v3299
        %vm3302 = vcmask 1047559
        %v3303 = vsel %vm3302, %v3281, %v3301
        %3305 = vst [vmem:[%s404] sm:$0xff] %v3303
        %s3306 = sand.u32 %s239, 1
        %s3307 = scalar_lea.sflag [#allocation8], %s3306
        %s3308 = sand.u32 %s239, 1
        %s3309 = smul.addr %s3308, 8
        %s3310 = scalar_lea.vmem [#allocation9], %s3309
        // Predicated region
        $region53: #{tpu_custom_call.1} parent=47 // pred_check
          %p3311 = pneg %p249
        $region54: #{tpu_custom_call.1} parent=47 // pred_check_branch
          %3313 = sbr.rel (%p3311) target = $region56
        $region55: #{tpu_custom_call.1} parent=47 // pred_region
          %s3315 = ssub.s32 128, 128
          %3316 = vsyncadd %s3307, %s3315
          %s3317 = sadd.s32 %s36, %s35
          %s3318 = smul.addr %s3317, 128
          %s3319 = scalar_lea.hbm %s8, %s3318
          %s3321 = sshll.u32 %s3310, 4
          %s3322 = int_to_ptr.vmem [resolvable:$true] %s3321
          %3324 = dma.vmem_to_hbm [thread:$0]  %s3322, 128, %s3319, %s3307
        $region56: #{tpu_custom_call.1} parent=47 // pred_fallthru
          _
      $region48: #{tpu_custom_call.1} parent=5 // pred_fallthru
        _
      %p3325 = scmp.le.s32.totalorder 2, %s26
      // Predicated region
      $region57: #{tpu_custom_call.1} parent=5 // pred_check
        %p3326 = pneg %p3325
      $region58: #{tpu_custom_call.1} parent=5 // pred_check_branch
        %3328 = sbr.rel (%p3326) target = $region60
      $region59: #{tpu_custom_call.1} parent=5 // pred_region
        %s3329 = ssub.s32 %s26, 2
        // Predicated region
        $region61: #{tpu_custom_call.1} parent=59 // pred_check
          %p3330 = pneg %p255
        $region62: #{tpu_custom_call.1} parent=59 // pred_check_branch
          %3332 = sbr.rel (%p3330) target = $region64
        $region63: #{tpu_custom_call.1} parent=59 // pred_region
          %s3333 = sand.u32 %s240, 1
          %s3334 = scalar_lea.sflag [#allocation8], %s3333
          %s3335 = sand.u32 %s240, 1
          %s3336 = smul.addr %s3335, 8
          %s3337 = scalar_lea.vmem [#allocation9], %s3336
          %3338 = dma.done %s3334, 128
        $region64: #{tpu_custom_call.1} parent=59 // pred_fallthru
          _
      $region60: #{tpu_custom_call.1} parent=5 // pred_fallthru
        _
    $region6: #{tpu_custom_call.1} parent=1 // loop_footer
      %s30 = sadd.s32 1, %s26
    $region7: #{tpu_custom_call.1} parent=1 // loop_footer_branch
      %25 = sbr.rel target = $region3
    $region8: #{tpu_custom_call.1} parent=1 // loop_exit
      _
    %3339 = vsyncpa [#allocation7], 1
    %s3340 = scalar_lea.sflag [#allocation7], 1
    %3341 = vsyncpa %s3340, 1
    %3342 = vsyncpa [#allocation8], 1
    %s3343 = scalar_lea.sflag [#allocation8], 1
    %3344 = vsyncpa %s3343, 1

</llo_original>
